<compile_context>
chip_gen: v6e
topology: v6e:2x2x1
jax: 0.10.0
libtpu: 0.0.40
codegen_flags: <defaults>
</compile_context>

<pallas_src>
import functools

import jax
import jax.numpy as jnp
from jax.experimental import pallas as pl
from jax.experimental.pallas import tpu as pltpu


# ---------------------------------------------------------------------------
# In-kernel LSTM cell update (PyTorch gate order: input, forget, cand, output)
# ---------------------------------------------------------------------------
def _lstm_cell_update(gates, c_prev, H):
    # One sigmoid pass over the full (B, 4H) gate vreg, tanh only where needed:
    # 1 sigmoid + 2 tanh EUP passes per direction per step.
    sig = jax.nn.sigmoid(gates)
    i_g = sig[:, 0 * H:1 * H]
    f_g = sig[:, 1 * H:2 * H]
    o_g = sig[:, 3 * H:4 * H]
    g_g = jnp.tanh(gates[:, 2 * H:3 * H])
    c_new = f_g * c_prev + i_g * g_g
    h_new = o_g * jnp.tanh(c_new)
    return h_new, c_new


# ---------------------------------------------------------------------------
# Fused kernel factory: the entire model in one pallas_call invocation.
# ---------------------------------------------------------------------------
def _make_fused_lstm_kernel(*, num_layers, T, B, H, OUT):
    """Ref order (all full-array VMEM refs, no grid):

      x_ref                                   (T*B, F)     time-major, flattened
      per layer l: wih_ref (2, in_l, 4H), whh_ref (2, H, 4H), b_ref (2, 1, 4H)
      h0_ref (2L, B, H), c0_ref (2L, B, H)
      fcw_ref (OUT, 2H), fcb_ref (1, OUT)
      out_ref (B, OUT)
      scratch: yf_sc (T*B, H), yb_sc (T*B, H), gxf_sc (T*B, 4H), gxb_sc (T*B, 4H)
    """

    def kernel(*refs):
        x_ref = refs[0]
        layer_refs = [refs[1 + 3 * l:4 + 3 * l] for l in range(num_layers)]
        (h0_ref, c0_ref, fcw_ref, fcb_ref, out_ref,
         yf_sc, yb_sc, gxf_sc, gxb_sc) = refs[1 + 3 * num_layers:]

        for layer in range(num_layers):
            wih_ref, whh_ref, b_ref = layer_refs[layer]

            # ---- hoisted input projection: all T steps, both directions ----
            # (one MXU matmul per direction, off the recurrent critical path)
            if layer == 0:
                xin = x_ref[...]                                      # (T*B, F)
                gxf_sc[...] = jnp.dot(
                    xin, wih_ref[0], preferred_element_type=jnp.float32) + b_ref[0]
                gxb_sc[...] = jnp.dot(
                    xin, wih_ref[1], preferred_element_type=jnp.float32) + b_ref[1]
            else:
                # previous layer's fwd/bwd hidden sequences, kept in separate
                # halves so the (.., 2H) concat never has to be materialised.
                y_f = yf_sc[...]                                      # (T*B, H)
                y_b = yb_sc[...]                                      # (T*B, H)
                w_f = wih_ref[0]                                      # (2H, 4H)
                w_b = wih_ref[1]
                gxf_sc[...] = (
                    jnp.dot(y_f, w_f[:H, :], preferred_element_type=jnp.float32)
                    + jnp.dot(y_b, w_f[H:, :], preferred_element_type=jnp.float32)
                    + b_ref[0])
                gxb_sc[...] = (
                    jnp.dot(y_f, w_b[:H, :], preferred_element_type=jnp.float32)
                    + jnp.dot(y_b, w_b[H:, :], preferred_element_type=jnp.float32)
                    + b_ref[1])

            # Loop-invariant recurrent weights: loaded once, kept in f32.
            whh_f = whh_ref[0]                                        # (H, 4H)
            whh_b = whh_ref[1]                                        # (H, 4H)

            # Register-resident recurrence carries (PyTorch layout: 2*layer+dir).
            h_f = h0_ref[2 * layer + 0]
            c_f = c0_ref[2 * layer + 0]
            h_b = h0_ref[2 * layer + 1]
            c_b = c0_ref[2 * layer + 1]

            # ---- recurrence: BOTH directions interleaved in one time loop ----
            # fwd processes original time s, bwd processes original time T-1-s;
            # the two chains are independent so their latencies overlap.
            # Static Python loop -> all indices below are compile-time constants.
            for s in range(T):
                tf = s
                tb = T - 1 - s

                gates_f = gxf_sc[tf * B:(tf + 1) * B, :] + jnp.dot(
                    h_f, whh_f, preferred_element_type=jnp.float32)
                gates_b = gxb_sc[tb * B:(tb + 1) * B, :] + jnp.dot(
                    h_b, whh_b, preferred_element_type=jnp.float32)

                h_f, c_f = _lstm_cell_update(gates_f, c_f, H)
                h_b, c_b = _lstm_cell_update(gates_b, c_b, H)

                # Stores are off the carry dependency chain; original time order.
                yf_sc[tf * B:(tf + 1) * B, :] = h_f
                yb_sc[tb * B:(tb + 1) * B, :] = h_b

        # ---- FC head + sigmoid on the last original timestep of last layer ----
        last_f = yf_sc[(T - 1) * B:T * B, :]                          # (B, H)
        last_b = yb_sc[(T - 1) * B:T * B, :]                          # (B, H)
        fcw = fcw_ref[...]                                            # (OUT, 2H)
        cols = []
        for o in range(OUT):                                          # OUT == 1
            w_row = fcw[o:o + 1, :]                                   # (1, 2H)
            cols.append(
                jnp.sum(last_f * w_row[:, :H], axis=-1, keepdims=True)
                + jnp.sum(last_b * w_row[:, H:], axis=-1, keepdims=True))
        logits = jnp.concatenate(cols, axis=-1) + fcb_ref[...]        # (B, OUT)
        out_ref[...] = jax.nn.sigmoid(logits)

    return kernel


# ---------------------------------------------------------------------------
# Wrapper: one pallas_call for the whole model.
# ---------------------------------------------------------------------------
def lstm_model_forward(x_btf, params, h0, c0, *, num_layers):
    B, T, F = x_btf.shape
    H = params["lstm"][0]["w_hh"].shape[-1]
    OUT = params["fc_w"].shape[0]

    # batch_first (B, T, F) -> time-major rows (t*B + b, F); tiny XLA reshape.
    x_tm = jnp.transpose(x_btf, (1, 0, 2)).reshape(T * B, F)

    inputs = [x_tm]
    for layer in range(num_layers):
        p = params["lstm"][layer]
        inputs.append(jnp.transpose(p["w_ih"], (0, 2, 1)))   # (2, in_dim, 4H)
        inputs.append(jnp.transpose(p["w_hh"], (0, 2, 1)))   # (2, H, 4H)
        inputs.append((p["b_ih"] + p["b_hh"])[:, None, :])   # (2, 1, 4H)
    inputs += [h0, c0, params["fc_w"], params["fc_b"][None, :]]

    vmem = pl.BlockSpec(memory_space=pltpu.MemorySpace.VMEM)
    kernel = _make_fused_lstm_kernel(num_layers=num_layers, T=T, B=B, H=H, OUT=OUT)

    return pl.pallas_call(
        kernel,
        out_shape=jax.ShapeDtypeStruct((B, OUT), jnp.float32),
        in_specs=[vmem] * len(inputs),
        out_specs=vmem,
        scratch_shapes=[
            pltpu.VMEM((T * B, H), jnp.float32),       # fwd hidden sequence
            pltpu.VMEM((T * B, H), jnp.float32),       # bwd hidden sequence
            pltpu.VMEM((T * B, 4 * H), jnp.float32),   # fwd input-projected gates
            pltpu.VMEM((T * B, 4 * H), jnp.float32),   # bwd input-projected gates
        ],
    )(*inputs)


# ---------------------------------------------------------------------------
# Pure-JAX reference (same math, f32 throughout) for a correctness check.
# ---------------------------------------------------------------------------
def _ref_cell(gx, h, c, whh_t):
    H = h.shape[-1]
    gates = gx + h @ whh_t
    i = jax.nn.sigmoid(gates[:, 0 * H:1 * H])
    f = jax.nn.sigmoid(gates[:, 1 * H:2 * H])
    g = jnp.tanh(gates[:, 2 * H:3 * H])
    o = jax.nn.sigmoid(gates[:, 3 * H:4 * H])
    c_new = f * c + i * g
    return o * jnp.tanh(c_new), c_new


def lstm_model_reference(x_btf, params, h0, c0, *, num_layers):
    T = x_btf.shape[1]
    layer_in = jnp.transpose(x_btf, (1, 0, 2))
    for layer in range(num_layers):
        p = params["lstm"][layer]
        bias = p["b_ih"] + p["b_hh"]
        outs = []
        for d in range(2):
            gx = jnp.einsum("tbi,gi->tbg", layer_in, p["w_ih"][d]) + bias[d]
            whh_t = p["w_hh"][d].T
            h, c = h0[2 * layer + d], c0[2 * layer + d]
            hs = [None] * T
            order = range(T) if d == 0 else range(T - 1, -1, -1)
            for t in order:
                h, c = _ref_cell(gx[t], h, c, whh_t)
                hs[t] = h
            outs.append(jnp.stack(hs, axis=0))
        layer_in = jnp.concatenate(outs, axis=-1)
    last = layer_in[-1]
    return jax.nn.sigmoid(last @ params["fc_w"].T + params["fc_b"])


# ---------------------------------------------------------------------------
# Deterministic parameter init (PyTorch-style uniform(-k, k)), stacked per
# direction: index 0 = forward, 1 = reverse.
# ---------------------------------------------------------------------------
def init_params(key, input_size, hidden_size, num_layers, output_size):
    H = hidden_size
    k = 1.0 / jnp.sqrt(jnp.float32(H))
    lstm_layers = []
    for layer in range(num_layers):
        in_dim = input_size if layer == 0 else 2 * H
        key, k1, k2, k3, k4 = jax.random.split(key, 5)
        lstm_layers.append({
            "w_ih": jax.random.uniform(k1, (2, 4 * H, in_dim), jnp.float32, -k, k),
            "w_hh": jax.random.uniform(k2, (2, 4 * H, H), jnp.float32, -k, k),
            "b_ih": jax.random.uniform(k3, (2, 4 * H), jnp.float32, -k, k),
            "b_hh": jax.random.uniform(k4, (2, 4 * H), jnp.float32, -k, k),
        })
    key, kf1, kf2 = jax.random.split(key, 3)
    kfc = 1.0 / jnp.sqrt(jnp.float32(2 * H))
    fc_w = jax.random.uniform(kf1, (output_size, 2 * H), jnp.float32, -kfc, kfc)
    fc_b = jax.random.uniform(kf2, (output_size,), jnp.float32, -kfc, kfc)
    return {"lstm": lstm_layers, "fc_w": fc_w, "fc_b": fc_b}, key


if __name__ == "__main__":
    # Small shapes consistent with the module.
    B, T = 2, 8                  # batch, sequence length
    INPUT_SIZE = 16
    HIDDEN = 32
    NUM_LAYERS = 2
    OUTPUT_SIZE = 1

    key = jax.random.PRNGKey(0)
    params, key = init_params(key, INPUT_SIZE, HIDDEN, NUM_LAYERS, OUTPUT_SIZE)

    key, kx, kh, kc = jax.random.split(key, 4)
    x = jax.random.normal(kx, (B, T, INPUT_SIZE), jnp.float32)
    # torch.randn initial states (drawn once here; see TODO at top).
    h0 = jax.random.normal(kh, (NUM_LAYERS * 2, B, HIDDEN), jnp.float32)
    c0 = jax.random.normal(kc, (NUM_LAYERS * 2, B, HIDDEN), jnp.float32)

    fwd = jax.jit(functools.partial(lstm_model_forward, num_layers=NUM_LAYERS))
    out = jax.block_until_ready(fwd(x, params, h0, c0))

    # Correctness check against a pure-JAX f32 reference.
    ref_fn = jax.jit(functools.partial(lstm_model_reference,
                                       num_layers=NUM_LAYERS))
    ref = jax.block_until_ready(ref_fn(x, params, h0, c0))
    max_err = float(jnp.max(jnp.abs(out - ref)))
    assert max_err < 2e-2, f"kernel vs reference mismatch: {max_err}"

    assert out.shape == (B, OUTPUT_SIZE)
    assert bool(jnp.all(jnp.isfinite(out)))
    assert bool(jnp.all((out >= 0.0) & (out <= 1.0)))
    print("KERNEL_OK")
</pallas_src>

<mosaic_0001>
module attributes {stable_mosaic.version = 11 : i64} {
  func.func @kernel(%arg0: memref<16x16xf32, #tpu.memory_space<vmem>>, %arg1: memref<2x16x128xf32, #tpu.memory_space<vmem>>, %arg2: memref<2x32x128xf32, #tpu.memory_space<vmem>>, %arg3: memref<2x1x128xf32, #tpu.memory_space<vmem>>, %arg4: memref<2x64x128xf32, #tpu.memory_space<vmem>>, %arg5: memref<2x32x128xf32, #tpu.memory_space<vmem>>, %arg6: memref<2x1x128xf32, #tpu.memory_space<vmem>>, %arg7: memref<4x2x32xf32, #tpu.memory_space<vmem>>, %arg8: memref<4x2x32xf32, #tpu.memory_space<vmem>>, %arg9: memref<1x64xf32, #tpu.memory_space<vmem>>, %arg10: memref<1x1xf32, #tpu.memory_space<vmem>>, %arg11: memref<2x1xf32, #tpu.memory_space<vmem>>, %arg12: memref<16x32xf32, #tpu.memory_space<vmem>>, %arg13: memref<16x32xf32, #tpu.memory_space<vmem>>, %arg14: memref<16x128xf32, #tpu.memory_space<vmem>>, %arg15: memref<16x128xf32, #tpu.memory_space<vmem>>) attributes {dimension_semantics = [], scalar_prefetch = 0 : i64, scratch_operands = 4 : i64, tpu.core_type = #tpu.core_type<tc>} {
    %c0 = arith.constant 0 : index
    %c0_0 = arith.constant 0 : index
    %0 = vector.load %arg0[%c0, %c0_0] : memref<16x16xf32, #tpu.memory_space<vmem>>, vector<16x16xf32>
    %c0_1 = arith.constant 0 : index
    %c0_2 = arith.constant 0 : index
    %c0_3 = arith.constant 0 : index
    %1 = vector.load %arg1[%c0_1, %c0_2, %c0_3] : memref<2x16x128xf32, #tpu.memory_space<vmem>>, vector<1x16x128xf32>
    %2 = vector.shape_cast %1 : vector<1x16x128xf32> to vector<16x128xf32>
    %cst = arith.constant dense<0.000000e+00> : vector<16x128xf32>
    %3 = tpu.matmul %0, %2, %cst {dimension_numbers = #tpu.dot_dimension_numbers<[1], [0], [0], [1], [0, 0, 1, 1], [], []>} : vector<16x16xf32>, vector<16x128xf32>, vector<16x128xf32> -> vector<16x128xf32>
    %c0_4 = arith.constant 0 : index
    %c0_5 = arith.constant 0 : index
    %c0_6 = arith.constant 0 : index
    %4 = vector.load %arg3[%c0_4, %c0_5, %c0_6] : memref<2x1x128xf32, #tpu.memory_space<vmem>>, vector<1x1x128xf32>
    %5 = vector.shape_cast %4 : vector<1x1x128xf32> to vector<1x128xf32>
    %6 = vector.broadcast %5 : vector<1x128xf32> to vector<16x128xf32>
    %7 = arith.addf %3, %6 : vector<16x128xf32>
    %c0_7 = arith.constant 0 : index
    %c0_8 = arith.constant 0 : index
    %8 = vector.load %arg14[%c0_7, %c0_8] : memref<16x128xf32, #tpu.memory_space<vmem>>, vector<16x128xf32>
    tpu.vector_store %arg14[%c0_7, %c0_8], %7 {strides = array<i32>} : memref<16x128xf32, #tpu.memory_space<vmem>>, vector<16x128xf32>,
    %c1 = arith.constant 1 : index
    %c0_9 = arith.constant 0 : index
    %c0_10 = arith.constant 0 : index
    %9 = vector.load %arg1[%c1, %c0_9, %c0_10] : memref<2x16x128xf32, #tpu.memory_space<vmem>>, vector<1x16x128xf32>
    %10 = vector.shape_cast %9 : vector<1x16x128xf32> to vector<16x128xf32>
    %cst_11 = arith.constant dense<0.000000e+00> : vector<16x128xf32>
    %11 = tpu.matmul %0, %10, %cst_11 {dimension_numbers = #tpu.dot_dimension_numbers<[1], [0], [0], [1], [0, 0, 1, 1], [], []>} : vector<16x16xf32>, vector<16x128xf32>, vector<16x128xf32> -> vector<16x128xf32>
    %c1_12 = arith.constant 1 : index
    %c0_13 = arith.constant 0 : index
    %c0_14 = arith.constant 0 : index
    %12 = vector.load %arg3[%c1_12, %c0_13, %c0_14] : memref<2x1x128xf32, #tpu.memory_space<vmem>>, vector<1x1x128xf32>
    %13 = vector.shape_cast %12 : vector<1x1x128xf32> to vector<1x128xf32>
    %14 = vector.broadcast %13 : vector<1x128xf32> to vector<16x128xf32>
    %15 = arith.addf %11, %14 : vector<16x128xf32>
    %c0_15 = arith.constant 0 : index
    %c0_16 = arith.constant 0 : index
    %16 = vector.load %arg15[%c0_15, %c0_16] : memref<16x128xf32, #tpu.memory_space<vmem>>, vector<16x128xf32>
    tpu.vector_store %arg15[%c0_15, %c0_16], %15 {strides = array<i32>} : memref<16x128xf32, #tpu.memory_space<vmem>>, vector<16x128xf32>,
    %c0_17 = arith.constant 0 : index
    %c0_18 = arith.constant 0 : index
    %c0_19 = arith.constant 0 : index
    %17 = vector.load %arg2[%c0_17, %c0_18, %c0_19] : memref<2x32x128xf32, #tpu.memory_space<vmem>>, vector<1x32x128xf32>
    %18 = vector.shape_cast %17 : vector<1x32x128xf32> to vector<32x128xf32>
    %c1_20 = arith.constant 1 : index
    %c0_21 = arith.constant 0 : index
    %c0_22 = arith.constant 0 : index
    %19 = vector.load %arg2[%c1_20, %c0_21, %c0_22] : memref<2x32x128xf32, #tpu.memory_space<vmem>>, vector<1x32x128xf32>
    %20 = vector.shape_cast %19 : vector<1x32x128xf32> to vector<32x128xf32>
    %c0_23 = arith.constant 0 : index
    %c0_24 = arith.constant 0 : index
    %c0_25 = arith.constant 0 : index
    %21 = vector.load %arg7[%c0_23, %c0_24, %c0_25] : memref<4x2x32xf32, #tpu.memory_space<vmem>>, vector<1x2x32xf32>
    %22 = vector.shape_cast %21 : vector<1x2x32xf32> to vector<2x32xf32>
    %c0_26 = arith.constant 0 : index
    %c0_27 = arith.constant 0 : index
    %c0_28 = arith.constant 0 : index
    %23 = vector.load %arg8[%c0_26, %c0_27, %c0_28] : memref<4x2x32xf32, #tpu.memory_space<vmem>>, vector<1x2x32xf32>
    %24 = vector.shape_cast %23 : vector<1x2x32xf32> to vector<2x32xf32>
    %c1_29 = arith.constant 1 : index
    %c0_30 = arith.constant 0 : index
    %c0_31 = arith.constant 0 : index
    %25 = vector.load %arg7[%c1_29, %c0_30, %c0_31] : memref<4x2x32xf32, #tpu.memory_space<vmem>>, vector<1x2x32xf32>
    %26 = vector.shape_cast %25 : vector<1x2x32xf32> to vector<2x32xf32>
    %c1_32 = arith.constant 1 : index
    %c0_33 = arith.constant 0 : index
    %c0_34 = arith.constant 0 : index
    %27 = vector.load %arg8[%c1_32, %c0_33, %c0_34] : memref<4x2x32xf32, #tpu.memory_space<vmem>>, vector<1x2x32xf32>
    %28 = vector.shape_cast %27 : vector<1x2x32xf32> to vector<2x32xf32>
    %c0_35 = arith.constant 0 : index
    %c0_36 = arith.constant 0 : index
    %29 = vector.load %arg14[%c0_35, %c0_36] : memref<16x128xf32, #tpu.memory_space<vmem>>, vector<2x128xf32>
    %cst_37 = arith.constant dense<0.000000e+00> : vector<2x128xf32>
    %30 = tpu.matmul %22, %18, %cst_37 {dimension_numbers = #tpu.dot_dimension_numbers<[1], [0], [0], [1], [0, 0, 1, 1], [], []>} : vector<2x32xf32>, vector<32x128xf32>, vector<2x128xf32> -> vector<2x128xf32>
    %31 = arith.addf %29, %30 : vector<2x128xf32>
    %c14 = arith.constant 14 : index
    %c0_38 = arith.constant 0 : index
    %32 = vector.load %arg15[%c14, %c0_38] : memref<16x128xf32, #tpu.memory_space<vmem>>, vector<2x128xf32>
    %cst_39 = arith.constant dense<0.000000e+00> : vector<2x128xf32>
    %33 = tpu.matmul %26, %20, %cst_39 {dimension_numbers = #tpu.dot_dimension_numbers<[1], [0], [0], [1], [0, 0, 1, 1], [], []>} : vector<2x32xf32>, vector<32x128xf32>, vector<2x128xf32> -> vector<2x128xf32>
    %34 = arith.addf %32, %33 : vector<2x128xf32>
    %35 = arith.negf %31 : vector<2x128xf32>
    %36 = math.exp %35 : vector<2x128xf32>
    %cst_40 = arith.constant 1.000000e+00 : f32
    %37 = vector.broadcast %cst_40 : f32 to vector<2x128xf32>
    %38 = arith.addf %37, %36 : vector<2x128xf32>
    %39 = arith.divf %37, %38 : vector<2x128xf32>
    %40 = vector.extract_strided_slice %39 {offsets = [0, 0], sizes = [2, 32], strides = [1, 1]} : vector<2x128xf32> to vector<2x32xf32>
    %41 = vector.extract_strided_slice %39 {offsets = [0, 32], sizes = [2, 32], strides = [1, 1]} : vector<2x128xf32> to vector<2x32xf32>
    %42 = vector.extract_strided_slice %39 {offsets = [0, 96], sizes = [2, 32], strides = [1, 1]} : vector<2x128xf32> to vector<2x32xf32>
    %43 = vector.extract_strided_slice %31 {offsets = [0, 64], sizes = [2, 32], strides = [1, 1]} : vector<2x128xf32> to vector<2x32xf32>
    %44 = math.tanh %43 : vector<2x32xf32>
    %45 = arith.mulf %41, %24 : vector<2x32xf32>
    %46 = arith.mulf %40, %44 : vector<2x32xf32>
    %47 = arith.addf %45, %46 : vector<2x32xf32>
    %48 = math.tanh %47 : vector<2x32xf32>
    %49 = arith.mulf %42, %48 : vector<2x32xf32>
    %50 = arith.negf %34 : vector<2x128xf32>
    %51 = math.exp %50 : vector<2x128xf32>
    %cst_41 = arith.constant 1.000000e+00 : f32
    %52 = vector.broadcast %cst_41 : f32 to vector<2x128xf32>
    %53 = arith.addf %52, %51 : vector<2x128xf32>
    %54 = arith.divf %52, %53 : vector<2x128xf32>
    %55 = vector.extract_strided_slice %54 {offsets = [0, 0], sizes = [2, 32], strides = [1, 1]} : vector<2x128xf32> to vector<2x32xf32>
    %56 = vector.extract_strided_slice %54 {offsets = [0, 32], sizes = [2, 32], strides = [1, 1]} : vector<2x128xf32> to vector<2x32xf32>
    %57 = vector.extract_strided_slice %54 {offsets = [0, 96], sizes = [2, 32], strides = [1, 1]} : vector<2x128xf32> to vector<2x32xf32>
    %58 = vector.extract_strided_slice %34 {offsets = [0, 64], sizes = [2, 32], strides = [1, 1]} : vector<2x128xf32> to vector<2x32xf32>
    %59 = math.tanh %58 : vector<2x32xf32>
    %60 = arith.mulf %56, %28 : vector<2x32xf32>
    %61 = arith.mulf %55, %59 : vector<2x32xf32>
    %62 = arith.addf %60, %61 : vector<2x32xf32>
    %63 = math.tanh %62 : vector<2x32xf32>
    %64 = arith.mulf %57, %63 : vector<2x32xf32>
    %c0_42 = arith.constant 0 : index
    %c0_43 = arith.constant 0 : index
    %65 = vector.load %arg12[%c0_42, %c0_43] : memref<16x32xf32, #tpu.memory_space<vmem>>, vector<2x32xf32>
    tpu.vector_store %arg12[%c0_42, %c0_43], %49 {strides = array<i32>} : memref<16x32xf32, #tpu.memory_space<vmem>>, vector<2x32xf32>,
    %c14_44 = arith.constant 14 : index
    %c0_45 = arith.constant 0 : index
    %66 = vector.load %arg13[%c14_44, %c0_45] : memref<16x32xf32, #tpu.memory_space<vmem>>, vector<2x32xf32>
    tpu.vector_store %arg13[%c14_44, %c0_45], %64 {strides = array<i32>} : memref<16x32xf32, #tpu.memory_space<vmem>>, vector<2x32xf32>,
    %c2 = arith.constant 2 : index
    %c0_46 = arith.constant 0 : index
    %67 = vector.load %arg14[%c2, %c0_46] : memref<16x128xf32, #tpu.memory_space<vmem>>, vector<2x128xf32>
    %cst_47 = arith.constant dense<0.000000e+00> : vector<2x128xf32>
    %68 = tpu.matmul %49, %18, %cst_47 {dimension_numbers = #tpu.dot_dimension_numbers<[1], [0], [0], [1], [0, 0, 1, 1], [], []>} : vector<2x32xf32>, vector<32x128xf32>, vector<2x128xf32> -> vector<2x128xf32>
    %69 = arith.addf %67, %68 : vector<2x128xf32>
    %c12 = arith.constant 12 : index
    %c0_48 = arith.constant 0 : index
    %70 = vector.load %arg15[%c12, %c0_48] : memref<16x128xf32, #tpu.memory_space<vmem>>, vector<2x128xf32>
    %cst_49 = arith.constant dense<0.000000e+00> : vector<2x128xf32>
    %71 = tpu.matmul %64, %20, %cst_49 {dimension_numbers = #tpu.dot_dimension_numbers<[1], [0], [0], [1], [0, 0, 1, 1], [], []>} : vector<2x32xf32>, vector<32x128xf32>, vector<2x128xf32> -> vector<2x128xf32>
    %72 = arith.addf %70, %71 : vector<2x128xf32>
    %73 = arith.negf %69 : vector<2x128xf32>
    %74 = math.exp %73 : vector<2x128xf32>
    %cst_50 = arith.constant 1.000000e+00 : f32
    %75 = vector.broadcast %cst_50 : f32 to vector<2x128xf32>
    %76 = arith.addf %75, %74 : vector<2x128xf32>
    %77 = arith.divf %75, %76 : vector<2x128xf32>
    %78 = vector.extract_strided_slice %77 {offsets = [0, 0], sizes = [2, 32], strides = [1, 1]} : vector<2x128xf32> to vector<2x32xf32>
    %79 = vector.extract_strided_slice %77 {offsets = [0, 32], sizes = [2, 32], strides = [1, 1]} : vector<2x128xf32> to vector<2x32xf32>
    %80 = vector.extract_strided_slice %77 {offsets = [0, 96], sizes = [2, 32], strides = [1, 1]} : vector<2x128xf32> to vector<2x32xf32>
    %81 = vector.extract_strided_slice %69 {offsets = [0, 64], sizes = [2, 32], strides = [1, 1]} : vector<2x128xf32> to vector<2x32xf32>
    %82 = math.tanh %81 : vector<2x32xf32>
    %83 = arith.mulf %79, %47 : vector<2x32xf32>
    %84 = arith.mulf %78, %82 : vector<2x32xf32>
    %85 = arith.addf %83, %84 : vector<2x32xf32>
    %86 = math.tanh %85 : vector<2x32xf32>
    %87 = arith.mulf %80, %86 : vector<2x32xf32>
    %88 = arith.negf %72 : vector<2x128xf32>
    %89 = math.exp %88 : vector<2x128xf32>
    %cst_51 = arith.constant 1.000000e+00 : f32
    %90 = vector.broadcast %cst_51 : f32 to vector<2x128xf32>
    %91 = arith.addf %90, %89 : vector<2x128xf32>
    %92 = arith.divf %90, %91 : vector<2x128xf32>
    %93 = vector.extract_strided_slice %92 {offsets = [0, 0], sizes = [2, 32], strides = [1, 1]} : vector<2x128xf32> to vector<2x32xf32>
    %94 = vector.extract_strided_slice %92 {offsets = [0, 32], sizes = [2, 32], strides = [1, 1]} : vector<2x128xf32> to vector<2x32xf32>
    %95 = vector.extract_strided_slice %92 {offsets = [0, 96], sizes = [2, 32], strides = [1, 1]} : vector<2x128xf32> to vector<2x32xf32>
    %96 = vector.extract_strided_slice %72 {offsets = [0, 64], sizes = [2, 32], strides = [1, 1]} : vector<2x128xf32> to vector<2x32xf32>
    %97 = math.tanh %96 : vector<2x32xf32>
    %98 = arith.mulf %94, %62 : vector<2x32xf32>
    %99 = arith.mulf %93, %97 : vector<2x32xf32>
    %100 = arith.addf %98, %99 : vector<2x32xf32>
    %101 = math.tanh %100 : vector<2x32xf32>
    %102 = arith.mulf %95, %101 : vector<2x32xf32>
    %c2_52 = arith.constant 2 : index
    %c0_53 = arith.constant 0 : index
    %103 = vector.load %arg12[%c2_52, %c0_53] : memref<16x32xf32, #tpu.memory_space<vmem>>, vector<2x32xf32>
    tpu.vector_store %arg12[%c2_52, %c0_53], %87 {strides = array<i32>} : memref<16x32xf32, #tpu.memory_space<vmem>>, vector<2x32xf32>,
    %c12_54 = arith.constant 12 : index
    %c0_55 = arith.constant 0 : index
    %104 = vector.load %arg13[%c12_54, %c0_55] : memref<16x32xf32, #tpu.memory_space<vmem>>, vector<2x32xf32>
    tpu.vector_store %arg13[%c12_54, %c0_55], %102 {strides = array<i32>} : memref<16x32xf32, #tpu.memory_space<vmem>>, vector<2x32xf32>,
    %c4 = arith.constant 4 : index
    %c0_56 = arith.constant 0 : index
    %105 = vector.load %arg14[%c4, %c0_56] : memref<16x128xf32, #tpu.memory_space<vmem>>, vector<2x128xf32>
    %cst_57 = arith.constant dense<0.000000e+00> : vector<2x128xf32>
    %106 = tpu.matmul %87, %18, %cst_57 {dimension_numbers = #tpu.dot_dimension_numbers<[1], [0], [0], [1], [0, 0, 1, 1], [], []>} : vector<2x32xf32>, vector<32x128xf32>, vector<2x128xf32> -> vector<2x128xf32>
    %107 = arith.addf %105, %106 : vector<2x128xf32>
    %c10 = arith.constant 10 : index
    %c0_58 = arith.constant 0 : index
    %108 = vector.load %arg15[%c10, %c0_58] : memref<16x128xf32, #tpu.memory_space<vmem>>, vector<2x128xf32>
    %cst_59 = arith.constant dense<0.000000e+00> : vector<2x128xf32>
    %109 = tpu.matmul %102, %20, %cst_59 {dimension_numbers = #tpu.dot_dimension_numbers<[1], [0], [0], [1], [0, 0, 1, 1], [], []>} : vector<2x32xf32>, vector<32x128xf32>, vector<2x128xf32> -> vector<2x128xf32>
    %110 = arith.addf %108, %109 : vector<2x128xf32>
    %111 = arith.negf %107 : vector<2x128xf32>
    %112 = math.exp %111 : vector<2x128xf32>
    %cst_60 = arith.constant 1.000000e+00 : f32
    %113 = vector.broadcast %cst_60 : f32 to vector<2x128xf32>
    %114 = arith.addf %113, %112 : vector<2x128xf32>
    %115 = arith.divf %113, %114 : vector<2x128xf32>
    %116 = vector.extract_strided_slice %115 {offsets = [0, 0], sizes = [2, 32], strides = [1, 1]} : vector<2x128xf32> to vector<2x32xf32>
    %117 = vector.extract_strided_slice %115 {offsets = [0, 32], sizes = [2, 32], strides = [1, 1]} : vector<2x128xf32> to vector<2x32xf32>
    %118 = vector.extract_strided_slice %115 {offsets = [0, 96], sizes = [2, 32], strides = [1, 1]} : vector<2x128xf32> to vector<2x32xf32>
    %119 = vector.extract_strided_slice %107 {offsets = [0, 64], sizes = [2, 32], strides = [1, 1]} : vector<2x128xf32> to vector<2x32xf32>
    %120 = math.tanh %119 : vector<2x32xf32>
    %121 = arith.mulf %117, %85 : vector<2x32xf32>
    %122 = arith.mulf %116, %120 : vector<2x32xf32>
    %123 = arith.addf %121, %122 : vector<2x32xf32>
    %124 = math.tanh %123 : vector<2x32xf32>
    %125 = arith.mulf %118, %124 : vector<2x32xf32>
    %126 = arith.negf %110 : vector<2x128xf32>
    %127 = math.exp %126 : vector<2x128xf32>
    %cst_61 = arith.constant 1.000000e+00 : f32
    %128 = vector.broadcast %cst_61 : f32 to vector<2x128xf32>
    %129 = arith.addf %128, %127 : vector<2x128xf32>
    %130 = arith.divf %128, %129 : vector<2x128xf32>
    %131 = vector.extract_strided_slice %130 {offsets = [0, 0], sizes = [2, 32], strides = [1, 1]} : vector<2x128xf32> to vector<2x32xf32>
    %132 = vector.extract_strided_slice %130 {offsets = [0, 32], sizes = [2, 32], strides = [1, 1]} : vector<2x128xf32> to vector<2x32xf32>
    %133 = vector.extract_strided_slice %130 {offsets = [0, 96], sizes = [2, 32], strides = [1, 1]} : vector<2x128xf32> to vector<2x32xf32>
    %134 = vector.extract_strided_slice %110 {offsets = [0, 64], sizes = [2, 32], strides = [1, 1]} : vector<2x128xf32> to vector<2x32xf32>
    %135 = math.tanh %134 : vector<2x32xf32>
    %136 = arith.mulf %132, %100 : vector<2x32xf32>
    %137 = arith.mulf %131, %135 : vector<2x32xf32>
    %138 = arith.addf %136, %137 : vector<2x32xf32>
    %139 = math.tanh %138 : vector<2x32xf32>
    %140 = arith.mulf %133, %139 : vector<2x32xf32>
    %c4_62 = arith.constant 4 : index
    %c0_63 = arith.constant 0 : index
    %141 = vector.load %arg12[%c4_62, %c0_63] : memref<16x32xf32, #tpu.memory_space<vmem>>, vector<2x32xf32>
    tpu.vector_store %arg12[%c4_62, %c0_63], %125 {strides = array<i32>} : memref<16x32xf32, #tpu.memory_space<vmem>>, vector<2x32xf32>,
    %c10_64 = arith.constant 10 : index
    %c0_65 = arith.constant 0 : index
    %142 = vector.load %arg13[%c10_64, %c0_65] : memref<16x32xf32, #tpu.memory_space<vmem>>, vector<2x32xf32>
    tpu.vector_store %arg13[%c10_64, %c0_65], %140 {strides = array<i32>} : memref<16x32xf32, #tpu.memory_space<vmem>>, vector<2x32xf32>,
    %c6 = arith.constant 6 : index
    %c0_66 = arith.constant 0 : index
    %143 = vector.load %arg14[%c6, %c0_66] : memref<16x128xf32, #tpu.memory_space<vmem>>, vector<2x128xf32>
    %cst_67 = arith.constant dense<0.000000e+00> : vector<2x128xf32>
    %144 = tpu.matmul %125, %18, %cst_67 {dimension_numbers = #tpu.dot_dimension_numbers<[1], [0], [0], [1], [0, 0, 1, 1], [], []>} : vector<2x32xf32>, vector<32x128xf32>, vector<2x128xf32> -> vector<2x128xf32>
    %145 = arith.addf %143, %144 : vector<2x128xf32>
    %c8 = arith.constant 8 : index
    %c0_68 = arith.constant 0 : index
    %146 = vector.load %arg15[%c8, %c0_68] : memref<16x128xf32, #tpu.memory_space<vmem>>, vector<2x128xf32>
    %cst_69 = arith.constant dense<0.000000e+00> : vector<2x128xf32>
    %147 = tpu.matmul %140, %20, %cst_69 {dimension_numbers = #tpu.dot_dimension_numbers<[1], [0], [0], [1], [0, 0, 1, 1], [], []>} : vector<2x32xf32>, vector<32x128xf32>, vector<2x128xf32> -> vector<2x128xf32>
    %148 = arith.addf %146, %147 : vector<2x128xf32>
    %149 = arith.negf %145 : vector<2x128xf32>
    %150 = math.exp %149 : vector<2x128xf32>
    %cst_70 = arith.constant 1.000000e+00 : f32
    %151 = vector.broadcast %cst_70 : f32 to vector<2x128xf32>
    %152 = arith.addf %151, %150 : vector<2x128xf32>
    %153 = arith.divf %151, %152 : vector<2x128xf32>
    %154 = vector.extract_strided_slice %153 {offsets = [0, 0], sizes = [2, 32], strides = [1, 1]} : vector<2x128xf32> to vector<2x32xf32>
    %155 = vector.extract_strided_slice %153 {offsets = [0, 32], sizes = [2, 32], strides = [1, 1]} : vector<2x128xf32> to vector<2x32xf32>
    %156 = vector.extract_strided_slice %153 {offsets = [0, 96], sizes = [2, 32], strides = [1, 1]} : vector<2x128xf32> to vector<2x32xf32>
    %157 = vector.extract_strided_slice %145 {offsets = [0, 64], sizes = [2, 32], strides = [1, 1]} : vector<2x128xf32> to vector<2x32xf32>
    %158 = math.tanh %157 : vector<2x32xf32>
    %159 = arith.mulf %155, %123 : vector<2x32xf32>
    %160 = arith.mulf %154, %158 : vector<2x32xf32>
    %161 = arith.addf %159, %160 : vector<2x32xf32>
    %162 = math.tanh %161 : vector<2x32xf32>
    %163 = arith.mulf %156, %162 : vector<2x32xf32>
    %164 = arith.negf %148 : vector<2x128xf32>
    %165 = math.exp %164 : vector<2x128xf32>
    %cst_71 = arith.constant 1.000000e+00 : f32
    %166 = vector.broadcast %cst_71 : f32 to vector<2x128xf32>
    %167 = arith.addf %166, %165 : vector<2x128xf32>
    %168 = arith.divf %166, %167 : vector<2x128xf32>
    %169 = vector.extract_strided_slice %168 {offsets = [0, 0], sizes = [2, 32], strides = [1, 1]} : vector<2x128xf32> to vector<2x32xf32>
    %170 = vector.extract_strided_slice %168 {offsets = [0, 32], sizes = [2, 32], strides = [1, 1]} : vector<2x128xf32> to vector<2x32xf32>
    %171 = vector.extract_strided_slice %168 {offsets = [0, 96], sizes = [2, 32], strides = [1, 1]} : vector<2x128xf32> to vector<2x32xf32>
    %172 = vector.extract_strided_slice %148 {offsets = [0, 64], sizes = [2, 32], strides = [1, 1]} : vector<2x128xf32> to vector<2x32xf32>
    %173 = math.tanh %172 : vector<2x32xf32>
    %174 = arith.mulf %170, %138 : vector<2x32xf32>
    %175 = arith.mulf %169, %173 : vector<2x32xf32>
    %176 = arith.addf %174, %175 : vector<2x32xf32>
    %177 = math.tanh %176 : vector<2x32xf32>
    %178 = arith.mulf %171, %177 : vector<2x32xf32>
    %c6_72 = arith.constant 6 : index
    %c0_73 = arith.constant 0 : index
    %179 = vector.load %arg12[%c6_72, %c0_73] : memref<16x32xf32, #tpu.memory_space<vmem>>, vector<2x32xf32>
    tpu.vector_store %arg12[%c6_72, %c0_73], %163 {strides = array<i32>} : memref<16x32xf32, #tpu.memory_space<vmem>>, vector<2x32xf32>,
    %c8_74 = arith.constant 8 : index
    %c0_75 = arith.constant 0 : index
    %180 = vector.load %arg13[%c8_74, %c0_75] : memref<16x32xf32, #tpu.memory_space<vmem>>, vector<2x32xf32>
    tpu.vector_store %arg13[%c8_74, %c0_75], %178 {strides = array<i32>} : memref<16x32xf32, #tpu.memory_space<vmem>>, vector<2x32xf32>,
    %c8_76 = arith.constant 8 : index
    %c0_77 = arith.constant 0 : index
    %181 = vector.load %arg14[%c8_76, %c0_77] : memref<16x128xf32, #tpu.memory_space<vmem>>, vector<2x128xf32>
    %cst_78 = arith.constant dense<0.000000e+00> : vector<2x128xf32>
    %182 = tpu.matmul %163, %18, %cst_78 {dimension_numbers = #tpu.dot_dimension_numbers<[1], [0], [0], [1], [0, 0, 1, 1], [], []>} : vector<2x32xf32>, vector<32x128xf32>, vector<2x128xf32> -> vector<2x128xf32>
    %183 = arith.addf %181, %182 : vector<2x128xf32>
    %c6_79 = arith.constant 6 : index
    %c0_80 = arith.constant 0 : index
    %184 = vector.load %arg15[%c6_79, %c0_80] : memref<16x128xf32, #tpu.memory_space<vmem>>, vector<2x128xf32>
    %cst_81 = arith.constant dense<0.000000e+00> : vector<2x128xf32>
    %185 = tpu.matmul %178, %20, %cst_81 {dimension_numbers = #tpu.dot_dimension_numbers<[1], [0], [0], [1], [0, 0, 1, 1], [], []>} : vector<2x32xf32>, vector<32x128xf32>, vector<2x128xf32> -> vector<2x128xf32>
    %186 = arith.addf %184, %185 : vector<2x128xf32>
    %187 = arith.negf %183 : vector<2x128xf32>
    %188 = math.exp %187 : vector<2x128xf32>
    %cst_82 = arith.constant 1.000000e+00 : f32
    %189 = vector.broadcast %cst_82 : f32 to vector<2x128xf32>
    %190 = arith.addf %189, %188 : vector<2x128xf32>
    %191 = arith.divf %189, %190 : vector<2x128xf32>
    %192 = vector.extract_strided_slice %191 {offsets = [0, 0], sizes = [2, 32], strides = [1, 1]} : vector<2x128xf32> to vector<2x32xf32>
    %193 = vector.extract_strided_slice %191 {offsets = [0, 32], sizes = [2, 32], strides = [1, 1]} : vector<2x128xf32> to vector<2x32xf32>
    %194 = vector.extract_strided_slice %191 {offsets = [0, 96], sizes = [2, 32], strides = [1, 1]} : vector<2x128xf32> to vector<2x32xf32>
    %195 = vector.extract_strided_slice %183 {offsets = [0, 64], sizes = [2, 32], strides = [1, 1]} : vector<2x128xf32> to vector<2x32xf32>
    %196 = math.tanh %195 : vector<2x32xf32>
    %197 = arith.mulf %193, %161 : vector<2x32xf32>
    %198 = arith.mulf %192, %196 : vector<2x32xf32>
    %199 = arith.addf %197, %198 : vector<2x32xf32>
    %200 = math.tanh %199 : vector<2x32xf32>
    %201 = arith.mulf %194, %200 : vector<2x32xf32>
    %202 = arith.negf %186 : vector<2x128xf32>
    %203 = math.exp %202 : vector<2x128xf32>
    %cst_83 = arith.constant 1.000000e+00 : f32
    %204 = vector.broadcast %cst_83 : f32 to vector<2x128xf32>
    %205 = arith.addf %204, %203 : vector<2x128xf32>
    %206 = arith.divf %204, %205 : vector<2x128xf32>
    %207 = vector.extract_strided_slice %206 {offsets = [0, 0], sizes = [2, 32], strides = [1, 1]} : vector<2x128xf32> to vector<2x32xf32>
    %208 = vector.extract_strided_slice %206 {offsets = [0, 32], sizes = [2, 32], strides = [1, 1]} : vector<2x128xf32> to vector<2x32xf32>
    %209 = vector.extract_strided_slice %206 {offsets = [0, 96], sizes = [2, 32], strides = [1, 1]} : vector<2x128xf32> to vector<2x32xf32>
    %210 = vector.extract_strided_slice %186 {offsets = [0, 64], sizes = [2, 32], strides = [1, 1]} : vector<2x128xf32> to vector<2x32xf32>
    %211 = math.tanh %210 : vector<2x32xf32>
    %212 = arith.mulf %208, %176 : vector<2x32xf32>
    %213 = arith.mulf %207, %211 : vector<2x32xf32>
    %214 = arith.addf %212, %213 : vector<2x32xf32>
    %215 = math.tanh %214 : vector<2x32xf32>
    %216 = arith.mulf %209, %215 : vector<2x32xf32>
    %c8_84 = arith.constant 8 : index
    %c0_85 = arith.constant 0 : index
    %217 = vector.load %arg12[%c8_84, %c0_85] : memref<16x32xf32, #tpu.memory_space<vmem>>, vector<2x32xf32>
    tpu.vector_store %arg12[%c8_84, %c0_85], %201 {strides = array<i32>} : memref<16x32xf32, #tpu.memory_space<vmem>>, vector<2x32xf32>,
    %c6_86 = arith.constant 6 : index
    %c0_87 = arith.constant 0 : index
    %218 = vector.load %arg13[%c6_86, %c0_87] : memref<16x32xf32, #tpu.memory_space<vmem>>, vector<2x32xf32>
    tpu.vector_store %arg13[%c6_86, %c0_87], %216 {strides = array<i32>} : memref<16x32xf32, #tpu.memory_space<vmem>>, vector<2x32xf32>,
    %c10_88 = arith.constant 10 : index
    %c0_89 = arith.constant 0 : index
    %219 = vector.load %arg14[%c10_88, %c0_89] : memref<16x128xf32, #tpu.memory_space<vmem>>, vector<2x128xf32>
    %cst_90 = arith.constant dense<0.000000e+00> : vector<2x128xf32>
    %220 = tpu.matmul %201, %18, %cst_90 {dimension_numbers = #tpu.dot_dimension_numbers<[1], [0], [0], [1], [0, 0, 1, 1], [], []>} : vector<2x32xf32>, vector<32x128xf32>, vector<2x128xf32> -> vector<2x128xf32>
    %221 = arith.addf %219, %220 : vector<2x128xf32>
    %c4_91 = arith.constant 4 : index
    %c0_92 = arith.constant 0 : index
    %222 = vector.load %arg15[%c4_91, %c0_92] : memref<16x128xf32, #tpu.memory_space<vmem>>, vector<2x128xf32>
    %cst_93 = arith.constant dense<0.000000e+00> : vector<2x128xf32>
    %223 = tpu.matmul %216, %20, %cst_93 {dimension_numbers = #tpu.dot_dimension_numbers<[1], [0], [0], [1], [0, 0, 1, 1], [], []>} : vector<2x32xf32>, vector<32x128xf32>, vector<2x128xf32> -> vector<2x128xf32>
    %224 = arith.addf %222, %223 : vector<2x128xf32>
    %225 = arith.negf %221 : vector<2x128xf32>
    %226 = math.exp %225 : vector<2x128xf32>
    %cst_94 = arith.constant 1.000000e+00 : f32
    %227 = vector.broadcast %cst_94 : f32 to vector<2x128xf32>
    %228 = arith.addf %227, %226 : vector<2x128xf32>
    %229 = arith.divf %227, %228 : vector<2x128xf32>
    %230 = vector.extract_strided_slice %229 {offsets = [0, 0], sizes = [2, 32], strides = [1, 1]} : vector<2x128xf32> to vector<2x32xf32>
    %231 = vector.extract_strided_slice %229 {offsets = [0, 32], sizes = [2, 32], strides = [1, 1]} : vector<2x128xf32> to vector<2x32xf32>
    %232 = vector.extract_strided_slice %229 {offsets = [0, 96], sizes = [2, 32], strides = [1, 1]} : vector<2x128xf32> to vector<2x32xf32>
    %233 = vector.extract_strided_slice %221 {offsets = [0, 64], sizes = [2, 32], strides = [1, 1]} : vector<2x128xf32> to vector<2x32xf32>
    %234 = math.tanh %233 : vector<2x32xf32>
    %235 = arith.mulf %231, %199 : vector<2x32xf32>
    %236 = arith.mulf %230, %234 : vector<2x32xf32>
    %237 = arith.addf %235, %236 : vector<2x32xf32>
    %238 = math.tanh %237 : vector<2x32xf32>
    %239 = arith.mulf %232, %238 : vector<2x32xf32>
    %240 = arith.negf %224 : vector<2x128xf32>
    %241 = math.exp %240 : vector<2x128xf32>
    %cst_95 = arith.constant 1.000000e+00 : f32
    %242 = vector.broadcast %cst_95 : f32 to vector<2x128xf32>
    %243 = arith.addf %242, %241 : vector<2x128xf32>
    %244 = arith.divf %242, %243 : vector<2x128xf32>
    %245 = vector.extract_strided_slice %244 {offsets = [0, 0], sizes = [2, 32], strides = [1, 1]} : vector<2x128xf32> to vector<2x32xf32>
    %246 = vector.extract_strided_slice %244 {offsets = [0, 32], sizes = [2, 32], strides = [1, 1]} : vector<2x128xf32> to vector<2x32xf32>
    %247 = vector.extract_strided_slice %244 {offsets = [0, 96], sizes = [2, 32], strides = [1, 1]} : vector<2x128xf32> to vector<2x32xf32>
    %248 = vector.extract_strided_slice %224 {offsets = [0, 64], sizes = [2, 32], strides = [1, 1]} : vector<2x128xf32> to vector<2x32xf32>
    %249 = math.tanh %248 : vector<2x32xf32>
    %250 = arith.mulf %246, %214 : vector<2x32xf32>
    %251 = arith.mulf %245, %249 : vector<2x32xf32>
    %252 = arith.addf %250, %251 : vector<2x32xf32>
    %253 = math.tanh %252 : vector<2x32xf32>
    %254 = arith.mulf %247, %253 : vector<2x32xf32>
    %c10_96 = arith.constant 10 : index
    %c0_97 = arith.constant 0 : index
    %255 = vector.load %arg12[%c10_96, %c0_97] : memref<16x32xf32, #tpu.memory_space<vmem>>, vector<2x32xf32>
    tpu.vector_store %arg12[%c10_96, %c0_97], %239 {strides = array<i32>} : memref<16x32xf32, #tpu.memory_space<vmem>>, vector<2x32xf32>,
    %c4_98 = arith.constant 4 : index
    %c0_99 = arith.constant 0 : index
    %256 = vector.load %arg13[%c4_98, %c0_99] : memref<16x32xf32, #tpu.memory_space<vmem>>, vector<2x32xf32>
    tpu.vector_store %arg13[%c4_98, %c0_99], %254 {strides = array<i32>} : memref<16x32xf32, #tpu.memory_space<vmem>>, vector<2x32xf32>,
    %c12_100 = arith.constant 12 : index
    %c0_101 = arith.constant 0 : index
    %257 = vector.load %arg14[%c12_100, %c0_101] : memref<16x128xf32, #tpu.memory_space<vmem>>, vector<2x128xf32>
    %cst_102 = arith.constant dense<0.000000e+00> : vector<2x128xf32>
    %258 = tpu.matmul %239, %18, %cst_102 {dimension_numbers = #tpu.dot_dimension_numbers<[1], [0], [0], [1], [0, 0, 1, 1], [], []>} : vector<2x32xf32>, vector<32x128xf32>, vector<2x128xf32> -> vector<2x128xf32>
    %259 = arith.addf %257, %258 : vector<2x128xf32>
    %c2_103 = arith.constant 2 : index
    %c0_104 = arith.constant 0 : index
    %260 = vector.load %arg15[%c2_103, %c0_104] : memref<16x128xf32, #tpu.memory_space<vmem>>, vector<2x128xf32>
    %cst_105 = arith.constant dense<0.000000e+00> : vector<2x128xf32>
    %261 = tpu.matmul %254, %20, %cst_105 {dimension_numbers = #tpu.dot_dimension_numbers<[1], [0], [0], [1], [0, 0, 1, 1], [], []>} : vector<2x32xf32>, vector<32x128xf32>, vector<2x128xf32> -> vector<2x128xf32>
    %262 = arith.addf %260, %261 : vector<2x128xf32>
    %263 = arith.negf %259 : vector<2x128xf32>
    %264 = math.exp %263 : vector<2x128xf32>
    %cst_106 = arith.constant 1.000000e+00 : f32
    %265 = vector.broadcast %cst_106 : f32 to vector<2x128xf32>
    %266 = arith.addf %265, %264 : vector<2x128xf32>
    %267 = arith.divf %265, %266 : vector<2x128xf32>
    %268 = vector.extract_strided_slice %267 {offsets = [0, 0], sizes = [2, 32], strides = [1, 1]} : vector<2x128xf32> to vector<2x32xf32>
    %269 = vector.extract_strided_slice %267 {offsets = [0, 32], sizes = [2, 32], strides = [1, 1]} : vector<2x128xf32> to vector<2x32xf32>
    %270 = vector.extract_strided_slice %267 {offsets = [0, 96], sizes = [2, 32], strides = [1, 1]} : vector<2x128xf32> to vector<2x32xf32>
    %271 = vector.extract_strided_slice %259 {offsets = [0, 64], sizes = [2, 32], strides = [1, 1]} : vector<2x128xf32> to vector<2x32xf32>
    %272 = math.tanh %271 : vector<2x32xf32>
    %273 = arith.mulf %269, %237 : vector<2x32xf32>
    %274 = arith.mulf %268, %272 : vector<2x32xf32>
    %275 = arith.addf %273, %274 : vector<2x32xf32>
    %276 = math.tanh %275 : vector<2x32xf32>
    %277 = arith.mulf %270, %276 : vector<2x32xf32>
    %278 = arith.negf %262 : vector<2x128xf32>
    %279 = math.exp %278 : vector<2x128xf32>
    %cst_107 = arith.constant 1.000000e+00 : f32
    %280 = vector.broadcast %cst_107 : f32 to vector<2x128xf32>
    %281 = arith.addf %280, %279 : vector<2x128xf32>
    %282 = arith.divf %280, %281 : vector<2x128xf32>
    %283 = vector.extract_strided_slice %282 {offsets = [0, 0], sizes = [2, 32], strides = [1, 1]} : vector<2x128xf32> to vector<2x32xf32>
    %284 = vector.extract_strided_slice %282 {offsets = [0, 32], sizes = [2, 32], strides = [1, 1]} : vector<2x128xf32> to vector<2x32xf32>
    %285 = vector.extract_strided_slice %282 {offsets = [0, 96], sizes = [2, 32], strides = [1, 1]} : vector<2x128xf32> to vector<2x32xf32>
    %286 = vector.extract_strided_slice %262 {offsets = [0, 64], sizes = [2, 32], strides = [1, 1]} : vector<2x128xf32> to vector<2x32xf32>
    %287 = math.tanh %286 : vector<2x32xf32>
    %288 = arith.mulf %284, %252 : vector<2x32xf32>
    %289 = arith.mulf %283, %287 : vector<2x32xf32>
    %290 = arith.addf %288, %289 : vector<2x32xf32>
    %291 = math.tanh %290 : vector<2x32xf32>
    %292 = arith.mulf %285, %291 : vector<2x32xf32>
    %c12_108 = arith.constant 12 : index
    %c0_109 = arith.constant 0 : index
    %293 = vector.load %arg12[%c12_108, %c0_109] : memref<16x32xf32, #tpu.memory_space<vmem>>, vector<2x32xf32>
    tpu.vector_store %arg12[%c12_108, %c0_109], %277 {strides = array<i32>} : memref<16x32xf32, #tpu.memory_space<vmem>>, vector<2x32xf32>,
    %c2_110 = arith.constant 2 : index
    %c0_111 = arith.constant 0 : index
    %294 = vector.load %arg13[%c2_110, %c0_111] : memref<16x32xf32, #tpu.memory_space<vmem>>, vector<2x32xf32>
    tpu.vector_store %arg13[%c2_110, %c0_111], %292 {strides = array<i32>} : memref<16x32xf32, #tpu.memory_space<vmem>>, vector<2x32xf32>,
    %c14_112 = arith.constant 14 : index
    %c0_113 = arith.constant 0 : index
    %295 = vector.load %arg14[%c14_112, %c0_113] : memref<16x128xf32, #tpu.memory_space<vmem>>, vector<2x128xf32>
    %cst_114 = arith.constant dense<0.000000e+00> : vector<2x128xf32>
    %296 = tpu.matmul %277, %18, %cst_114 {dimension_numbers = #tpu.dot_dimension_numbers<[1], [0], [0], [1], [0, 0, 1, 1], [], []>} : vector<2x32xf32>, vector<32x128xf32>, vector<2x128xf32> -> vector<2x128xf32>
    %297 = arith.addf %295, %296 : vector<2x128xf32>
    %c0_115 = arith.constant 0 : index
    %c0_116 = arith.constant 0 : index
    %298 = vector.load %arg15[%c0_115, %c0_116] : memref<16x128xf32, #tpu.memory_space<vmem>>, vector<2x128xf32>
    %cst_117 = arith.constant dense<0.000000e+00> : vector<2x128xf32>
    %299 = tpu.matmul %292, %20, %cst_117 {dimension_numbers = #tpu.dot_dimension_numbers<[1], [0], [0], [1], [0, 0, 1, 1], [], []>} : vector<2x32xf32>, vector<32x128xf32>, vector<2x128xf32> -> vector<2x128xf32>
    %300 = arith.addf %298, %299 : vector<2x128xf32>
    %301 = arith.negf %297 : vector<2x128xf32>
    %302 = math.exp %301 : vector<2x128xf32>
    %cst_118 = arith.constant 1.000000e+00 : f32
    %303 = vector.broadcast %cst_118 : f32 to vector<2x128xf32>
    %304 = arith.addf %303, %302 : vector<2x128xf32>
    %305 = arith.divf %303, %304 : vector<2x128xf32>
    %306 = vector.extract_strided_slice %305 {offsets = [0, 0], sizes = [2, 32], strides = [1, 1]} : vector<2x128xf32> to vector<2x32xf32>
    %307 = vector.extract_strided_slice %305 {offsets = [0, 32], sizes = [2, 32], strides = [1, 1]} : vector<2x128xf32> to vector<2x32xf32>
    %308 = vector.extract_strided_slice %305 {offsets = [0, 96], sizes = [2, 32], strides = [1, 1]} : vector<2x128xf32> to vector<2x32xf32>
    %309 = vector.extract_strided_slice %297 {offsets = [0, 64], sizes = [2, 32], strides = [1, 1]} : vector<2x128xf32> to vector<2x32xf32>
    %310 = math.tanh %309 : vector<2x32xf32>
    %311 = arith.mulf %307, %275 : vector<2x32xf32>
    %312 = arith.mulf %306, %310 : vector<2x32xf32>
    %313 = arith.addf %311, %312 : vector<2x32xf32>
    %314 = math.tanh %313 : vector<2x32xf32>
    %315 = arith.mulf %308, %314 : vector<2x32xf32>
    %316 = arith.negf %300 : vector<2x128xf32>
    %317 = math.exp %316 : vector<2x128xf32>
    %cst_119 = arith.constant 1.000000e+00 : f32
    %318 = vector.broadcast %cst_119 : f32 to vector<2x128xf32>
    %319 = arith.addf %318, %317 : vector<2x128xf32>
    %320 = arith.divf %318, %319 : vector<2x128xf32>
    %321 = vector.extract_strided_slice %320 {offsets = [0, 0], sizes = [2, 32], strides = [1, 1]} : vector<2x128xf32> to vector<2x32xf32>
    %322 = vector.extract_strided_slice %320 {offsets = [0, 32], sizes = [2, 32], strides = [1, 1]} : vector<2x128xf32> to vector<2x32xf32>
    %323 = vector.extract_strided_slice %320 {offsets = [0, 96], sizes = [2, 32], strides = [1, 1]} : vector<2x128xf32> to vector<2x32xf32>
    %324 = vector.extract_strided_slice %300 {offsets = [0, 64], sizes = [2, 32], strides = [1, 1]} : vector<2x128xf32> to vector<2x32xf32>
    %325 = math.tanh %324 : vector<2x32xf32>
    %326 = arith.mulf %322, %290 : vector<2x32xf32>
    %327 = arith.mulf %321, %325 : vector<2x32xf32>
    %328 = arith.addf %326, %327 : vector<2x32xf32>
    %329 = math.tanh %328 : vector<2x32xf32>
    %330 = arith.mulf %323, %329 : vector<2x32xf32>
    %c14_120 = arith.constant 14 : index
    %c0_121 = arith.constant 0 : index
    %331 = vector.load %arg12[%c14_120, %c0_121] : memref<16x32xf32, #tpu.memory_space<vmem>>, vector<2x32xf32>
    tpu.vector_store %arg12[%c14_120, %c0_121], %315 {strides = array<i32>} : memref<16x32xf32, #tpu.memory_space<vmem>>, vector<2x32xf32>,
    %c0_122 = arith.constant 0 : index
    %c0_123 = arith.constant 0 : index
    %332 = vector.load %arg13[%c0_122, %c0_123] : memref<16x32xf32, #tpu.memory_space<vmem>>, vector<2x32xf32>
    tpu.vector_store %arg13[%c0_122, %c0_123], %330 {strides = array<i32>} : memref<16x32xf32, #tpu.memory_space<vmem>>, vector<2x32xf32>,
    %c0_124 = arith.constant 0 : index
    %c0_125 = arith.constant 0 : index
    %333 = vector.load %arg12[%c0_124, %c0_125] : memref<16x32xf32, #tpu.memory_space<vmem>>, vector<16x32xf32>
    %c0_126 = arith.constant 0 : index
    %c0_127 = arith.constant 0 : index
    %334 = vector.load %arg13[%c0_126, %c0_127] : memref<16x32xf32, #tpu.memory_space<vmem>>, vector<16x32xf32>
    %c0_128 = arith.constant 0 : index
    %c0_129 = arith.constant 0 : index
    %c0_130 = arith.constant 0 : index
    %335 = vector.load %arg4[%c0_128, %c0_129, %c0_130] : memref<2x64x128xf32, #tpu.memory_space<vmem>>, vector<1x64x128xf32>
    %336 = vector.shape_cast %335 : vector<1x64x128xf32> to vector<64x128xf32>
    %c1_131 = arith.constant 1 : index
    %c0_132 = arith.constant 0 : index
    %c0_133 = arith.constant 0 : index
    %337 = vector.load %arg4[%c1_131, %c0_132, %c0_133] : memref<2x64x128xf32, #tpu.memory_space<vmem>>, vector<1x64x128xf32>
    %338 = vector.shape_cast %337 : vector<1x64x128xf32> to vector<64x128xf32>
    %339 = vector.extract_strided_slice %336 {offsets = [0, 0], sizes = [32, 128], strides = [1, 1]} : vector<64x128xf32> to vector<32x128xf32>
    %cst_134 = arith.constant dense<0.000000e+00> : vector<16x128xf32>
    %340 = tpu.matmul %333, %339, %cst_134 {dimension_numbers = #tpu.dot_dimension_numbers<[1], [0], [0], [1], [0, 0, 1, 1], [], []>} : vector<16x32xf32>, vector<32x128xf32>, vector<16x128xf32> -> vector<16x128xf32>
    %341 = vector.extract_strided_slice %336 {offsets = [32, 0], sizes = [32, 128], strides = [1, 1]} : vector<64x128xf32> to vector<32x128xf32>
    %cst_135 = arith.constant dense<0.000000e+00> : vector<16x128xf32>
    %342 = tpu.matmul %334, %341, %cst_135 {dimension_numbers = #tpu.dot_dimension_numbers<[1], [0], [0], [1], [0, 0, 1, 1], [], []>} : vector<16x32xf32>, vector<32x128xf32>, vector<16x128xf32> -> vector<16x128xf32>
    %343 = arith.addf %340, %342 : vector<16x128xf32>
    %c0_136 = arith.constant 0 : index
    %c0_137 = arith.constant 0 : index
    %c0_138 = arith.constant 0 : index
    %344 = vector.load %arg6[%c0_136, %c0_137, %c0_138] : memref<2x1x128xf32, #tpu.memory_space<vmem>>, vector<1x1x128xf32>
    %345 = vector.shape_cast %344 : vector<1x1x128xf32> to vector<1x128xf32>
    %346 = vector.broadcast %345 : vector<1x128xf32> to vector<16x128xf32>
    %347 = arith.addf %343, %346 : vector<16x128xf32>
    %c0_139 = arith.constant 0 : index
    %c0_140 = arith.constant 0 : index
    %348 = vector.load %arg14[%c0_139, %c0_140] : memref<16x128xf32, #tpu.memory_space<vmem>>, vector<16x128xf32>
    tpu.vector_store %arg14[%c0_139, %c0_140], %347 {strides = array<i32>} : memref<16x128xf32, #tpu.memory_space<vmem>>, vector<16x128xf32>,
    %349 = vector.extract_strided_slice %338 {offsets = [0, 0], sizes = [32, 128], strides = [1, 1]} : vector<64x128xf32> to vector<32x128xf32>
    %cst_141 = arith.constant dense<0.000000e+00> : vector<16x128xf32>
    %350 = tpu.matmul %333, %349, %cst_141 {dimension_numbers = #tpu.dot_dimension_numbers<[1], [0], [0], [1], [0, 0, 1, 1], [], []>} : vector<16x32xf32>, vector<32x128xf32>, vector<16x128xf32> -> vector<16x128xf32>
    %351 = vector.extract_strided_slice %338 {offsets = [32, 0], sizes = [32, 128], strides = [1, 1]} : vector<64x128xf32> to vector<32x128xf32>
    %cst_142 = arith.constant dense<0.000000e+00> : vector<16x128xf32>
    %352 = tpu.matmul %334, %351, %cst_142 {dimension_numbers = #tpu.dot_dimension_numbers<[1], [0], [0], [1], [0, 0, 1, 1], [], []>} : vector<16x32xf32>, vector<32x128xf32>, vector<16x128xf32> -> vector<16x128xf32>
    %353 = arith.addf %350, %352 : vector<16x128xf32>
    %c1_143 = arith.constant 1 : index
    %c0_144 = arith.constant 0 : index
    %c0_145 = arith.constant 0 : index
    %354 = vector.load %arg6[%c1_143, %c0_144, %c0_145] : memref<2x1x128xf32, #tpu.memory_space<vmem>>, vector<1x1x128xf32>
    %355 = vector.shape_cast %354 : vector<1x1x128xf32> to vector<1x128xf32>
    %356 = vector.broadcast %355 : vector<1x128xf32> to vector<16x128xf32>
    %357 = arith.addf %353, %356 : vector<16x128xf32>
    %c0_146 = arith.constant 0 : index
    %c0_147 = arith.constant 0 : index
    %358 = vector.load %arg15[%c0_146, %c0_147] : memref<16x128xf32, #tpu.memory_space<vmem>>, vector<16x128xf32>
    tpu.vector_store %arg15[%c0_146, %c0_147], %357 {strides = array<i32>} : memref<16x128xf32, #tpu.memory_space<vmem>>, vector<16x128xf32>,
    %c0_148 = arith.constant 0 : index
    %c0_149 = arith.constant 0 : index
    %c0_150 = arith.constant 0 : index
    %359 = vector.load %arg5[%c0_148, %c0_149, %c0_150] : memref<2x32x128xf32, #tpu.memory_space<vmem>>, vector<1x32x128xf32>
    %360 = vector.shape_cast %359 : vector<1x32x128xf32> to vector<32x128xf32>
    %c1_151 = arith.constant 1 : index
    %c0_152 = arith.constant 0 : index
    %c0_153 = arith.constant 0 : index
    %361 = vector.load %arg5[%c1_151, %c0_152, %c0_153] : memref<2x32x128xf32, #tpu.memory_space<vmem>>, vector<1x32x128xf32>
    %362 = vector.shape_cast %361 : vector<1x32x128xf32> to vector<32x128xf32>
    %c2_154 = arith.constant 2 : index
    %c0_155 = arith.constant 0 : index
    %c0_156 = arith.constant 0 : index
    %363 = vector.load %arg7[%c2_154, %c0_155, %c0_156] : memref<4x2x32xf32, #tpu.memory_space<vmem>>, vector<1x2x32xf32>
    %364 = vector.shape_cast %363 : vector<1x2x32xf32> to vector<2x32xf32>
    %c2_157 = arith.constant 2 : index
    %c0_158 = arith.constant 0 : index
    %c0_159 = arith.constant 0 : index
    %365 = vector.load %arg8[%c2_157, %c0_158, %c0_159] : memref<4x2x32xf32, #tpu.memory_space<vmem>>, vector<1x2x32xf32>
    %366 = vector.shape_cast %365 : vector<1x2x32xf32> to vector<2x32xf32>
    %c3 = arith.constant 3 : index
    %c0_160 = arith.constant 0 : index
    %c0_161 = arith.constant 0 : index
    %367 = vector.load %arg7[%c3, %c0_160, %c0_161] : memref<4x2x32xf32, #tpu.memory_space<vmem>>, vector<1x2x32xf32>
    %368 = vector.shape_cast %367 : vector<1x2x32xf32> to vector<2x32xf32>
    %c3_162 = arith.constant 3 : index
    %c0_163 = arith.constant 0 : index
    %c0_164 = arith.constant 0 : index
    %369 = vector.load %arg8[%c3_162, %c0_163, %c0_164] : memref<4x2x32xf32, #tpu.memory_space<vmem>>, vector<1x2x32xf32>
    %370 = vector.shape_cast %369 : vector<1x2x32xf32> to vector<2x32xf32>
    %c0_165 = arith.constant 0 : index
    %c0_166 = arith.constant 0 : index
    %371 = vector.load %arg14[%c0_165, %c0_166] : memref<16x128xf32, #tpu.memory_space<vmem>>, vector<2x128xf32>
    %cst_167 = arith.constant dense<0.000000e+00> : vector<2x128xf32>
    %372 = tpu.matmul %364, %360, %cst_167 {dimension_numbers = #tpu.dot_dimension_numbers<[1], [0], [0], [1], [0, 0, 1, 1], [], []>} : vector<2x32xf32>, vector<32x128xf32>, vector<2x128xf32> -> vector<2x128xf32>
    %373 = arith.addf %371, %372 : vector<2x128xf32>
    %c14_168 = arith.constant 14 : index
    %c0_169 = arith.constant 0 : index
    %374 = vector.load %arg15[%c14_168, %c0_169] : memref<16x128xf32, #tpu.memory_space<vmem>>, vector<2x128xf32>
    %cst_170 = arith.constant dense<0.000000e+00> : vector<2x128xf32>
    %375 = tpu.matmul %368, %362, %cst_170 {dimension_numbers = #tpu.dot_dimension_numbers<[1], [0], [0], [1], [0, 0, 1, 1], [], []>} : vector<2x32xf32>, vector<32x128xf32>, vector<2x128xf32> -> vector<2x128xf32>
    %376 = arith.addf %374, %375 : vector<2x128xf32>
    %377 = arith.negf %373 : vector<2x128xf32>
    %378 = math.exp %377 : vector<2x128xf32>
    %cst_171 = arith.constant 1.000000e+00 : f32
    %379 = vector.broadcast %cst_171 : f32 to vector<2x128xf32>
    %380 = arith.addf %379, %378 : vector<2x128xf32>
    %381 = arith.divf %379, %380 : vector<2x128xf32>
    %382 = vector.extract_strided_slice %381 {offsets = [0, 0], sizes = [2, 32], strides = [1, 1]} : vector<2x128xf32> to vector<2x32xf32>
    %383 = vector.extract_strided_slice %381 {offsets = [0, 32], sizes = [2, 32], strides = [1, 1]} : vector<2x128xf32> to vector<2x32xf32>
    %384 = vector.extract_strided_slice %381 {offsets = [0, 96], sizes = [2, 32], strides = [1, 1]} : vector<2x128xf32> to vector<2x32xf32>
    %385 = vector.extract_strided_slice %373 {offsets = [0, 64], sizes = [2, 32], strides = [1, 1]} : vector<2x128xf32> to vector<2x32xf32>
    %386 = math.tanh %385 : vector<2x32xf32>
    %387 = arith.mulf %383, %366 : vector<2x32xf32>
    %388 = arith.mulf %382, %386 : vector<2x32xf32>
    %389 = arith.addf %387, %388 : vector<2x32xf32>
    %390 = math.tanh %389 : vector<2x32xf32>
    %391 = arith.mulf %384, %390 : vector<2x32xf32>
    %392 = arith.negf %376 : vector<2x128xf32>
    %393 = math.exp %392 : vector<2x128xf32>
    %cst_172 = arith.constant 1.000000e+00 : f32
    %394 = vector.broadcast %cst_172 : f32 to vector<2x128xf32>
    %395 = arith.addf %394, %393 : vector<2x128xf32>
    %396 = arith.divf %394, %395 : vector<2x128xf32>
    %397 = vector.extract_strided_slice %396 {offsets = [0, 0], sizes = [2, 32], strides = [1, 1]} : vector<2x128xf32> to vector<2x32xf32>
    %398 = vector.extract_strided_slice %396 {offsets = [0, 32], sizes = [2, 32], strides = [1, 1]} : vector<2x128xf32> to vector<2x32xf32>
    %399 = vector.extract_strided_slice %396 {offsets = [0, 96], sizes = [2, 32], strides = [1, 1]} : vector<2x128xf32> to vector<2x32xf32>
    %400 = vector.extract_strided_slice %376 {offsets = [0, 64], sizes = [2, 32], strides = [1, 1]} : vector<2x128xf32> to vector<2x32xf32>
    %401 = math.tanh %400 : vector<2x32xf32>
    %402 = arith.mulf %398, %370 : vector<2x32xf32>
    %403 = arith.mulf %397, %401 : vector<2x32xf32>
    %404 = arith.addf %402, %403 : vector<2x32xf32>
    %405 = math.tanh %404 : vector<2x32xf32>
    %406 = arith.mulf %399, %405 : vector<2x32xf32>
    %c0_173 = arith.constant 0 : index
    %c0_174 = arith.constant 0 : index
    %407 = vector.load %arg12[%c0_173, %c0_174] : memref<16x32xf32, #tpu.memory_space<vmem>>, vector<2x32xf32>
    tpu.vector_store %arg12[%c0_173, %c0_174], %391 {strides = array<i32>} : memref<16x32xf32, #tpu.memory_space<vmem>>, vector<2x32xf32>,
    %c14_175 = arith.constant 14 : index
    %c0_176 = arith.constant 0 : index
    %408 = vector.load %arg13[%c14_175, %c0_176] : memref<16x32xf32, #tpu.memory_space<vmem>>, vector<2x32xf32>
    tpu.vector_store %arg13[%c14_175, %c0_176], %406 {strides = array<i32>} : memref<16x32xf32, #tpu.memory_space<vmem>>, vector<2x32xf32>,
    %c2_177 = arith.constant 2 : index
    %c0_178 = arith.constant 0 : index
    %409 = vector.load %arg14[%c2_177, %c0_178] : memref<16x128xf32, #tpu.memory_space<vmem>>, vector<2x128xf32>
    %cst_179 = arith.constant dense<0.000000e+00> : vector<2x128xf32>
    %410 = tpu.matmul %391, %360, %cst_179 {dimension_numbers = #tpu.dot_dimension_numbers<[1], [0], [0], [1], [0, 0, 1, 1], [], []>} : vector<2x32xf32>, vector<32x128xf32>, vector<2x128xf32> -> vector<2x128xf32>
    %411 = arith.addf %409, %410 : vector<2x128xf32>
    %c12_180 = arith.constant 12 : index
    %c0_181 = arith.constant 0 : index
    %412 = vector.load %arg15[%c12_180, %c0_181] : memref<16x128xf32, #tpu.memory_space<vmem>>, vector<2x128xf32>
    %cst_182 = arith.constant dense<0.000000e+00> : vector<2x128xf32>
    %413 = tpu.matmul %406, %362, %cst_182 {dimension_numbers = #tpu.dot_dimension_numbers<[1], [0], [0], [1], [0, 0, 1, 1], [], []>} : vector<2x32xf32>, vector<32x128xf32>, vector<2x128xf32> -> vector<2x128xf32>
    %414 = arith.addf %412, %413 : vector<2x128xf32>
    %415 = arith.negf %411 : vector<2x128xf32>
    %416 = math.exp %415 : vector<2x128xf32>
    %cst_183 = arith.constant 1.000000e+00 : f32
    %417 = vector.broadcast %cst_183 : f32 to vector<2x128xf32>
    %418 = arith.addf %417, %416 : vector<2x128xf32>
    %419 = arith.divf %417, %418 : vector<2x128xf32>
    %420 = vector.extract_strided_slice %419 {offsets = [0, 0], sizes = [2, 32], strides = [1, 1]} : vector<2x128xf32> to vector<2x32xf32>
    %421 = vector.extract_strided_slice %419 {offsets = [0, 32], sizes = [2, 32], strides = [1, 1]} : vector<2x128xf32> to vector<2x32xf32>
    %422 = vector.extract_strided_slice %419 {offsets = [0, 96], sizes = [2, 32], strides = [1, 1]} : vector<2x128xf32> to vector<2x32xf32>
    %423 = vector.extract_strided_slice %411 {offsets = [0, 64], sizes = [2, 32], strides = [1, 1]} : vector<2x128xf32> to vector<2x32xf32>
    %424 = math.tanh %423 : vector<2x32xf32>
    %425 = arith.mulf %421, %389 : vector<2x32xf32>
    %426 = arith.mulf %420, %424 : vector<2x32xf32>
    %427 = arith.addf %425, %426 : vector<2x32xf32>
    %428 = math.tanh %427 : vector<2x32xf32>
    %429 = arith.mulf %422, %428 : vector<2x32xf32>
    %430 = arith.negf %414 : vector<2x128xf32>
    %431 = math.exp %430 : vector<2x128xf32>
    %cst_184 = arith.constant 1.000000e+00 : f32
    %432 = vector.broadcast %cst_184 : f32 to vector<2x128xf32>
    %433 = arith.addf %432, %431 : vector<2x128xf32>
    %434 = arith.divf %432, %433 : vector<2x128xf32>
    %435 = vector.extract_strided_slice %434 {offsets = [0, 0], sizes = [2, 32], strides = [1, 1]} : vector<2x128xf32> to vector<2x32xf32>
    %436 = vector.extract_strided_slice %434 {offsets = [0, 32], sizes = [2, 32], strides = [1, 1]} : vector<2x128xf32> to vector<2x32xf32>
    %437 = vector.extract_strided_slice %434 {offsets = [0, 96], sizes = [2, 32], strides = [1, 1]} : vector<2x128xf32> to vector<2x32xf32>
    %438 = vector.extract_strided_slice %414 {offsets = [0, 64], sizes = [2, 32], strides = [1, 1]} : vector<2x128xf32> to vector<2x32xf32>
    %439 = math.tanh %438 : vector<2x32xf32>
    %440 = arith.mulf %436, %404 : vector<2x32xf32>
    %441 = arith.mulf %435, %439 : vector<2x32xf32>
    %442 = arith.addf %440, %441 : vector<2x32xf32>
    %443 = math.tanh %442 : vector<2x32xf32>
    %444 = arith.mulf %437, %443 : vector<2x32xf32>
    %c2_185 = arith.constant 2 : index
    %c0_186 = arith.constant 0 : index
    %445 = vector.load %arg12[%c2_185, %c0_186] : memref<16x32xf32, #tpu.memory_space<vmem>>, vector<2x32xf32>
    tpu.vector_store %arg12[%c2_185, %c0_186], %429 {strides = array<i32>} : memref<16x32xf32, #tpu.memory_space<vmem>>, vector<2x32xf32>,
    %c12_187 = arith.constant 12 : index
    %c0_188 = arith.constant 0 : index
    %446 = vector.load %arg13[%c12_187, %c0_188] : memref<16x32xf32, #tpu.memory_space<vmem>>, vector<2x32xf32>
    tpu.vector_store %arg13[%c12_187, %c0_188], %444 {strides = array<i32>} : memref<16x32xf32, #tpu.memory_space<vmem>>, vector<2x32xf32>,
    %c4_189 = arith.constant 4 : index
    %c0_190 = arith.constant 0 : index
    %447 = vector.load %arg14[%c4_189, %c0_190] : memref<16x128xf32, #tpu.memory_space<vmem>>, vector<2x128xf32>
    %cst_191 = arith.constant dense<0.000000e+00> : vector<2x128xf32>
    %448 = tpu.matmul %429, %360, %cst_191 {dimension_numbers = #tpu.dot_dimension_numbers<[1], [0], [0], [1], [0, 0, 1, 1], [], []>} : vector<2x32xf32>, vector<32x128xf32>, vector<2x128xf32> -> vector<2x128xf32>
    %449 = arith.addf %447, %448 : vector<2x128xf32>
    %c10_192 = arith.constant 10 : index
    %c0_193 = arith.constant 0 : index
    %450 = vector.load %arg15[%c10_192, %c0_193] : memref<16x128xf32, #tpu.memory_space<vmem>>, vector<2x128xf32>
    %cst_194 = arith.constant dense<0.000000e+00> : vector<2x128xf32>
    %451 = tpu.matmul %444, %362, %cst_194 {dimension_numbers = #tpu.dot_dimension_numbers<[1], [0], [0], [1], [0, 0, 1, 1], [], []>} : vector<2x32xf32>, vector<32x128xf32>, vector<2x128xf32> -> vector<2x128xf32>
    %452 = arith.addf %450, %451 : vector<2x128xf32>
    %453 = arith.negf %449 : vector<2x128xf32>
    %454 = math.exp %453 : vector<2x128xf32>
    %cst_195 = arith.constant 1.000000e+00 : f32
    %455 = vector.broadcast %cst_195 : f32 to vector<2x128xf32>
    %456 = arith.addf %455, %454 : vector<2x128xf32>
    %457 = arith.divf %455, %456 : vector<2x128xf32>
    %458 = vector.extract_strided_slice %457 {offsets = [0, 0], sizes = [2, 32], strides = [1, 1]} : vector<2x128xf32> to vector<2x32xf32>
    %459 = vector.extract_strided_slice %457 {offsets = [0, 32], sizes = [2, 32], strides = [1, 1]} : vector<2x128xf32> to vector<2x32xf32>
    %460 = vector.extract_strided_slice %457 {offsets = [0, 96], sizes = [2, 32], strides = [1, 1]} : vector<2x128xf32> to vector<2x32xf32>
    %461 = vector.extract_strided_slice %449 {offsets = [0, 64], sizes = [2, 32], strides = [1, 1]} : vector<2x128xf32> to vector<2x32xf32>
    %462 = math.tanh %461 : vector<2x32xf32>
    %463 = arith.mulf %459, %427 : vector<2x32xf32>
    %464 = arith.mulf %458, %462 : vector<2x32xf32>
    %465 = arith.addf %463, %464 : vector<2x32xf32>
    %466 = math.tanh %465 : vector<2x32xf32>
    %467 = arith.mulf %460, %466 : vector<2x32xf32>
    %468 = arith.negf %452 : vector<2x128xf32>
    %469 = math.exp %468 : vector<2x128xf32>
    %cst_196 = arith.constant 1.000000e+00 : f32
    %470 = vector.broadcast %cst_196 : f32 to vector<2x128xf32>
    %471 = arith.addf %470, %469 : vector<2x128xf32>
    %472 = arith.divf %470, %471 : vector<2x128xf32>
    %473 = vector.extract_strided_slice %472 {offsets = [0, 0], sizes = [2, 32], strides = [1, 1]} : vector<2x128xf32> to vector<2x32xf32>
    %474 = vector.extract_strided_slice %472 {offsets = [0, 32], sizes = [2, 32], strides = [1, 1]} : vector<2x128xf32> to vector<2x32xf32>
    %475 = vector.extract_strided_slice %472 {offsets = [0, 96], sizes = [2, 32], strides = [1, 1]} : vector<2x128xf32> to vector<2x32xf32>
    %476 = vector.extract_strided_slice %452 {offsets = [0, 64], sizes = [2, 32], strides = [1, 1]} : vector<2x128xf32> to vector<2x32xf32>
    %477 = math.tanh %476 : vector<2x32xf32>
    %478 = arith.mulf %474, %442 : vector<2x32xf32>
    %479 = arith.mulf %473, %477 : vector<2x32xf32>
    %480 = arith.addf %478, %479 : vector<2x32xf32>
    %481 = math.tanh %480 : vector<2x32xf32>
    %482 = arith.mulf %475, %481 : vector<2x32xf32>
    %c4_197 = arith.constant 4 : index
    %c0_198 = arith.constant 0 : index
    %483 = vector.load %arg12[%c4_197, %c0_198] : memref<16x32xf32, #tpu.memory_space<vmem>>, vector<2x32xf32>
    tpu.vector_store %arg12[%c4_197, %c0_198], %467 {strides = array<i32>} : memref<16x32xf32, #tpu.memory_space<vmem>>, vector<2x32xf32>,
    %c10_199 = arith.constant 10 : index
    %c0_200 = arith.constant 0 : index
    %484 = vector.load %arg13[%c10_199, %c0_200] : memref<16x32xf32, #tpu.memory_space<vmem>>, vector<2x32xf32>
    tpu.vector_store %arg13[%c10_199, %c0_200], %482 {strides = array<i32>} : memref<16x32xf32, #tpu.memory_space<vmem>>, vector<2x32xf32>,
    %c6_201 = arith.constant 6 : index
    %c0_202 = arith.constant 0 : index
    %485 = vector.load %arg14[%c6_201, %c0_202] : memref<16x128xf32, #tpu.memory_space<vmem>>, vector<2x128xf32>
    %cst_203 = arith.constant dense<0.000000e+00> : vector<2x128xf32>
    %486 = tpu.matmul %467, %360, %cst_203 {dimension_numbers = #tpu.dot_dimension_numbers<[1], [0], [0], [1], [0, 0, 1, 1], [], []>} : vector<2x32xf32>, vector<32x128xf32>, vector<2x128xf32> -> vector<2x128xf32>
    %487 = arith.addf %485, %486 : vector<2x128xf32>
    %c8_204 = arith.constant 8 : index
    %c0_205 = arith.constant 0 : index
    %488 = vector.load %arg15[%c8_204, %c0_205] : memref<16x128xf32, #tpu.memory_space<vmem>>, vector<2x128xf32>
    %cst_206 = arith.constant dense<0.000000e+00> : vector<2x128xf32>
    %489 = tpu.matmul %482, %362, %cst_206 {dimension_numbers = #tpu.dot_dimension_numbers<[1], [0], [0], [1], [0, 0, 1, 1], [], []>} : vector<2x32xf32>, vector<32x128xf32>, vector<2x128xf32> -> vector<2x128xf32>
    %490 = arith.addf %488, %489 : vector<2x128xf32>
    %491 = arith.negf %487 : vector<2x128xf32>
    %492 = math.exp %491 : vector<2x128xf32>
    %cst_207 = arith.constant 1.000000e+00 : f32
    %493 = vector.broadcast %cst_207 : f32 to vector<2x128xf32>
    %494 = arith.addf %493, %492 : vector<2x128xf32>
    %495 = arith.divf %493, %494 : vector<2x128xf32>
    %496 = vector.extract_strided_slice %495 {offsets = [0, 0], sizes = [2, 32], strides = [1, 1]} : vector<2x128xf32> to vector<2x32xf32>
    %497 = vector.extract_strided_slice %495 {offsets = [0, 32], sizes = [2, 32], strides = [1, 1]} : vector<2x128xf32> to vector<2x32xf32>
    %498 = vector.extract_strided_slice %495 {offsets = [0, 96], sizes = [2, 32], strides = [1, 1]} : vector<2x128xf32> to vector<2x32xf32>
    %499 = vector.extract_strided_slice %487 {offsets = [0, 64], sizes = [2, 32], strides = [1, 1]} : vector<2x128xf32> to vector<2x32xf32>
    %500 = math.tanh %499 : vector<2x32xf32>
    %501 = arith.mulf %497, %465 : vector<2x32xf32>
    %502 = arith.mulf %496, %500 : vector<2x32xf32>
    %503 = arith.addf %501, %502 : vector<2x32xf32>
    %504 = math.tanh %503 : vector<2x32xf32>
    %505 = arith.mulf %498, %504 : vector<2x32xf32>
    %506 = arith.negf %490 : vector<2x128xf32>
    %507 = math.exp %506 : vector<2x128xf32>
    %cst_208 = arith.constant 1.000000e+00 : f32
    %508 = vector.broadcast %cst_208 : f32 to vector<2x128xf32>
    %509 = arith.addf %508, %507 : vector<2x128xf32>
    %510 = arith.divf %508, %509 : vector<2x128xf32>
    %511 = vector.extract_strided_slice %510 {offsets = [0, 0], sizes = [2, 32], strides = [1, 1]} : vector<2x128xf32> to vector<2x32xf32>
    %512 = vector.extract_strided_slice %510 {offsets = [0, 32], sizes = [2, 32], strides = [1, 1]} : vector<2x128xf32> to vector<2x32xf32>
    %513 = vector.extract_strided_slice %510 {offsets = [0, 96], sizes = [2, 32], strides = [1, 1]} : vector<2x128xf32> to vector<2x32xf32>
    %514 = vector.extract_strided_slice %490 {offsets = [0, 64], sizes = [2, 32], strides = [1, 1]} : vector<2x128xf32> to vector<2x32xf32>
    %515 = math.tanh %514 : vector<2x32xf32>
    %516 = arith.mulf %512, %480 : vector<2x32xf32>
    %517 = arith.mulf %511, %515 : vector<2x32xf32>
    %518 = arith.addf %516, %517 : vector<2x32xf32>
    %519 = math.tanh %518 : vector<2x32xf32>
    %520 = arith.mulf %513, %519 : vector<2x32xf32>
    %c6_209 = arith.constant 6 : index
    %c0_210 = arith.constant 0 : index
    %521 = vector.load %arg12[%c6_209, %c0_210] : memref<16x32xf32, #tpu.memory_space<vmem>>, vector<2x32xf32>
    tpu.vector_store %arg12[%c6_209, %c0_210], %505 {strides = array<i32>} : memref<16x32xf32, #tpu.memory_space<vmem>>, vector<2x32xf32>,
    %c8_211 = arith.constant 8 : index
    %c0_212 = arith.constant 0 : index
    %522 = vector.load %arg13[%c8_211, %c0_212] : memref<16x32xf32, #tpu.memory_space<vmem>>, vector<2x32xf32>
    tpu.vector_store %arg13[%c8_211, %c0_212], %520 {strides = array<i32>} : memref<16x32xf32, #tpu.memory_space<vmem>>, vector<2x32xf32>,
    %c8_213 = arith.constant 8 : index
    %c0_214 = arith.constant 0 : index
    %523 = vector.load %arg14[%c8_213, %c0_214] : memref<16x128xf32, #tpu.memory_space<vmem>>, vector<2x128xf32>
    %cst_215 = arith.constant dense<0.000000e+00> : vector<2x128xf32>
    %524 = tpu.matmul %505, %360, %cst_215 {dimension_numbers = #tpu.dot_dimension_numbers<[1], [0], [0], [1], [0, 0, 1, 1], [], []>} : vector<2x32xf32>, vector<32x128xf32>, vector<2x128xf32> -> vector<2x128xf32>
    %525 = arith.addf %523, %524 : vector<2x128xf32>
    %c6_216 = arith.constant 6 : index
    %c0_217 = arith.constant 0 : index
    %526 = vector.load %arg15[%c6_216, %c0_217] : memref<16x128xf32, #tpu.memory_space<vmem>>, vector<2x128xf32>
    %cst_218 = arith.constant dense<0.000000e+00> : vector<2x128xf32>
    %527 = tpu.matmul %520, %362, %cst_218 {dimension_numbers = #tpu.dot_dimension_numbers<[1], [0], [0], [1], [0, 0, 1, 1], [], []>} : vector<2x32xf32>, vector<32x128xf32>, vector<2x128xf32> -> vector<2x128xf32>
    %528 = arith.addf %526, %527 : vector<2x128xf32>
    %529 = arith.negf %525 : vector<2x128xf32>
    %530 = math.exp %529 : vector<2x128xf32>
    %cst_219 = arith.constant 1.000000e+00 : f32
    %531 = vector.broadcast %cst_219 : f32 to vector<2x128xf32>
    %532 = arith.addf %531, %530 : vector<2x128xf32>
    %533 = arith.divf %531, %532 : vector<2x128xf32>
    %534 = vector.extract_strided_slice %533 {offsets = [0, 0], sizes = [2, 32], strides = [1, 1]} : vector<2x128xf32> to vector<2x32xf32>
    %535 = vector.extract_strided_slice %533 {offsets = [0, 32], sizes = [2, 32], strides = [1, 1]} : vector<2x128xf32> to vector<2x32xf32>
    %536 = vector.extract_strided_slice %533 {offsets = [0, 96], sizes = [2, 32], strides = [1, 1]} : vector<2x128xf32> to vector<2x32xf32>
    %537 = vector.extract_strided_slice %525 {offsets = [0, 64], sizes = [2, 32], strides = [1, 1]} : vector<2x128xf32> to vector<2x32xf32>
    %538 = math.tanh %537 : vector<2x32xf32>
    %539 = arith.mulf %535, %503 : vector<2x32xf32>
    %540 = arith.mulf %534, %538 : vector<2x32xf32>
    %541 = arith.addf %539, %540 : vector<2x32xf32>
    %542 = math.tanh %541 : vector<2x32xf32>
    %543 = arith.mulf %536, %542 : vector<2x32xf32>
    %544 = arith.negf %528 : vector<2x128xf32>
    %545 = math.exp %544 : vector<2x128xf32>
    %cst_220 = arith.constant 1.000000e+00 : f32
    %546 = vector.broadcast %cst_220 : f32 to vector<2x128xf32>
    %547 = arith.addf %546, %545 : vector<2x128xf32>
    %548 = arith.divf %546, %547 : vector<2x128xf32>
    %549 = vector.extract_strided_slice %548 {offsets = [0, 0], sizes = [2, 32], strides = [1, 1]} : vector<2x128xf32> to vector<2x32xf32>
    %550 = vector.extract_strided_slice %548 {offsets = [0, 32], sizes = [2, 32], strides = [1, 1]} : vector<2x128xf32> to vector<2x32xf32>
    %551 = vector.extract_strided_slice %548 {offsets = [0, 96], sizes = [2, 32], strides = [1, 1]} : vector<2x128xf32> to vector<2x32xf32>
    %552 = vector.extract_strided_slice %528 {offsets = [0, 64], sizes = [2, 32], strides = [1, 1]} : vector<2x128xf32> to vector<2x32xf32>
    %553 = math.tanh %552 : vector<2x32xf32>
    %554 = arith.mulf %550, %518 : vector<2x32xf32>
    %555 = arith.mulf %549, %553 : vector<2x32xf32>
    %556 = arith.addf %554, %555 : vector<2x32xf32>
    %557 = math.tanh %556 : vector<2x32xf32>
    %558 = arith.mulf %551, %557 : vector<2x32xf32>
    %c8_221 = arith.constant 8 : index
    %c0_222 = arith.constant 0 : index
    %559 = vector.load %arg12[%c8_221, %c0_222] : memref<16x32xf32, #tpu.memory_space<vmem>>, vector<2x32xf32>
    tpu.vector_store %arg12[%c8_221, %c0_222], %543 {strides = array<i32>} : memref<16x32xf32, #tpu.memory_space<vmem>>, vector<2x32xf32>,
    %c6_223 = arith.constant 6 : index
    %c0_224 = arith.constant 0 : index
    %560 = vector.load %arg13[%c6_223, %c0_224] : memref<16x32xf32, #tpu.memory_space<vmem>>, vector<2x32xf32>
    tpu.vector_store %arg13[%c6_223, %c0_224], %558 {strides = array<i32>} : memref<16x32xf32, #tpu.memory_space<vmem>>, vector<2x32xf32>,
    %c10_225 = arith.constant 10 : index
    %c0_226 = arith.constant 0 : index
    %561 = vector.load %arg14[%c10_225, %c0_226] : memref<16x128xf32, #tpu.memory_space<vmem>>, vector<2x128xf32>
    %cst_227 = arith.constant dense<0.000000e+00> : vector<2x128xf32>
    %562 = tpu.matmul %543, %360, %cst_227 {dimension_numbers = #tpu.dot_dimension_numbers<[1], [0], [0], [1], [0, 0, 1, 1], [], []>} : vector<2x32xf32>, vector<32x128xf32>, vector<2x128xf32> -> vector<2x128xf32>
    %563 = arith.addf %561, %562 : vector<2x128xf32>
    %c4_228 = arith.constant 4 : index
    %c0_229 = arith.constant 0 : index
    %564 = vector.load %arg15[%c4_228, %c0_229] : memref<16x128xf32, #tpu.memory_space<vmem>>, vector<2x128xf32>
    %cst_230 = arith.constant dense<0.000000e+00> : vector<2x128xf32>
    %565 = tpu.matmul %558, %362, %cst_230 {dimension_numbers = #tpu.dot_dimension_numbers<[1], [0], [0], [1], [0, 0, 1, 1], [], []>} : vector<2x32xf32>, vector<32x128xf32>, vector<2x128xf32> -> vector<2x128xf32>
    %566 = arith.addf %564, %565 : vector<2x128xf32>
    %567 = arith.negf %563 : vector<2x128xf32>
    %568 = math.exp %567 : vector<2x128xf32>
    %cst_231 = arith.constant 1.000000e+00 : f32
    %569 = vector.broadcast %cst_231 : f32 to vector<2x128xf32>
    %570 = arith.addf %569, %568 : vector<2x128xf32>
    %571 = arith.divf %569, %570 : vector<2x128xf32>
    %572 = vector.extract_strided_slice %571 {offsets = [0, 0], sizes = [2, 32], strides = [1, 1]} : vector<2x128xf32> to vector<2x32xf32>
    %573 = vector.extract_strided_slice %571 {offsets = [0, 32], sizes = [2, 32], strides = [1, 1]} : vector<2x128xf32> to vector<2x32xf32>
    %574 = vector.extract_strided_slice %571 {offsets = [0, 96], sizes = [2, 32], strides = [1, 1]} : vector<2x128xf32> to vector<2x32xf32>
    %575 = vector.extract_strided_slice %563 {offsets = [0, 64], sizes = [2, 32], strides = [1, 1]} : vector<2x128xf32> to vector<2x32xf32>
    %576 = math.tanh %575 : vector<2x32xf32>
    %577 = arith.mulf %573, %541 : vector<2x32xf32>
    %578 = arith.mulf %572, %576 : vector<2x32xf32>
    %579 = arith.addf %577, %578 : vector<2x32xf32>
    %580 = math.tanh %579 : vector<2x32xf32>
    %581 = arith.mulf %574, %580 : vector<2x32xf32>
    %582 = arith.negf %566 : vector<2x128xf32>
    %583 = math.exp %582 : vector<2x128xf32>
    %cst_232 = arith.constant 1.000000e+00 : f32
    %584 = vector.broadcast %cst_232 : f32 to vector<2x128xf32>
    %585 = arith.addf %584, %583 : vector<2x128xf32>
    %586 = arith.divf %584, %585 : vector<2x128xf32>
    %587 = vector.extract_strided_slice %586 {offsets = [0, 0], sizes = [2, 32], strides = [1, 1]} : vector<2x128xf32> to vector<2x32xf32>
    %588 = vector.extract_strided_slice %586 {offsets = [0, 32], sizes = [2, 32], strides = [1, 1]} : vector<2x128xf32> to vector<2x32xf32>
    %589 = vector.extract_strided_slice %586 {offsets = [0, 96], sizes = [2, 32], strides = [1, 1]} : vector<2x128xf32> to vector<2x32xf32>
    %590 = vector.extract_strided_slice %566 {offsets = [0, 64], sizes = [2, 32], strides = [1, 1]} : vector<2x128xf32> to vector<2x32xf32>
    %591 = math.tanh %590 : vector<2x32xf32>
    %592 = arith.mulf %588, %556 : vector<2x32xf32>
    %593 = arith.mulf %587, %591 : vector<2x32xf32>
    %594 = arith.addf %592, %593 : vector<2x32xf32>
    %595 = math.tanh %594 : vector<2x32xf32>
    %596 = arith.mulf %589, %595 : vector<2x32xf32>
    %c10_233 = arith.constant 10 : index
    %c0_234 = arith.constant 0 : index
    %597 = vector.load %arg12[%c10_233, %c0_234] : memref<16x32xf32, #tpu.memory_space<vmem>>, vector<2x32xf32>
    tpu.vector_store %arg12[%c10_233, %c0_234], %581 {strides = array<i32>} : memref<16x32xf32, #tpu.memory_space<vmem>>, vector<2x32xf32>,
    %c4_235 = arith.constant 4 : index
    %c0_236 = arith.constant 0 : index
    %598 = vector.load %arg13[%c4_235, %c0_236] : memref<16x32xf32, #tpu.memory_space<vmem>>, vector<2x32xf32>
    tpu.vector_store %arg13[%c4_235, %c0_236], %596 {strides = array<i32>} : memref<16x32xf32, #tpu.memory_space<vmem>>, vector<2x32xf32>,
    %c12_237 = arith.constant 12 : index
    %c0_238 = arith.constant 0 : index
    %599 = vector.load %arg14[%c12_237, %c0_238] : memref<16x128xf32, #tpu.memory_space<vmem>>, vector<2x128xf32>
    %cst_239 = arith.constant dense<0.000000e+00> : vector<2x128xf32>
    %600 = tpu.matmul %581, %360, %cst_239 {dimension_numbers = #tpu.dot_dimension_numbers<[1], [0], [0], [1], [0, 0, 1, 1], [], []>} : vector<2x32xf32>, vector<32x128xf32>, vector<2x128xf32> -> vector<2x128xf32>
    %601 = arith.addf %599, %600 : vector<2x128xf32>
    %c2_240 = arith.constant 2 : index
    %c0_241 = arith.constant 0 : index
    %602 = vector.load %arg15[%c2_240, %c0_241] : memref<16x128xf32, #tpu.memory_space<vmem>>, vector<2x128xf32>
    %cst_242 = arith.constant dense<0.000000e+00> : vector<2x128xf32>
    %603 = tpu.matmul %596, %362, %cst_242 {dimension_numbers = #tpu.dot_dimension_numbers<[1], [0], [0], [1], [0, 0, 1, 1], [], []>} : vector<2x32xf32>, vector<32x128xf32>, vector<2x128xf32> -> vector<2x128xf32>
    %604 = arith.addf %602, %603 : vector<2x128xf32>
    %605 = arith.negf %601 : vector<2x128xf32>
    %606 = math.exp %605 : vector<2x128xf32>
    %cst_243 = arith.constant 1.000000e+00 : f32
    %607 = vector.broadcast %cst_243 : f32 to vector<2x128xf32>
    %608 = arith.addf %607, %606 : vector<2x128xf32>
    %609 = arith.divf %607, %608 : vector<2x128xf32>
    %610 = vector.extract_strided_slice %609 {offsets = [0, 0], sizes = [2, 32], strides = [1, 1]} : vector<2x128xf32> to vector<2x32xf32>
    %611 = vector.extract_strided_slice %609 {offsets = [0, 32], sizes = [2, 32], strides = [1, 1]} : vector<2x128xf32> to vector<2x32xf32>
    %612 = vector.extract_strided_slice %609 {offsets = [0, 96], sizes = [2, 32], strides = [1, 1]} : vector<2x128xf32> to vector<2x32xf32>
    %613 = vector.extract_strided_slice %601 {offsets = [0, 64], sizes = [2, 32], strides = [1, 1]} : vector<2x128xf32> to vector<2x32xf32>
    %614 = math.tanh %613 : vector<2x32xf32>
    %615 = arith.mulf %611, %579 : vector<2x32xf32>
    %616 = arith.mulf %610, %614 : vector<2x32xf32>
    %617 = arith.addf %615, %616 : vector<2x32xf32>
    %618 = math.tanh %617 : vector<2x32xf32>
    %619 = arith.mulf %612, %618 : vector<2x32xf32>
    %620 = arith.negf %604 : vector<2x128xf32>
    %621 = math.exp %620 : vector<2x128xf32>
    %cst_244 = arith.constant 1.000000e+00 : f32
    %622 = vector.broadcast %cst_244 : f32 to vector<2x128xf32>
    %623 = arith.addf %622, %621 : vector<2x128xf32>
    %624 = arith.divf %622, %623 : vector<2x128xf32>
    %625 = vector.extract_strided_slice %624 {offsets = [0, 0], sizes = [2, 32], strides = [1, 1]} : vector<2x128xf32> to vector<2x32xf32>
    %626 = vector.extract_strided_slice %624 {offsets = [0, 32], sizes = [2, 32], strides = [1, 1]} : vector<2x128xf32> to vector<2x32xf32>
    %627 = vector.extract_strided_slice %624 {offsets = [0, 96], sizes = [2, 32], strides = [1, 1]} : vector<2x128xf32> to vector<2x32xf32>
    %628 = vector.extract_strided_slice %604 {offsets = [0, 64], sizes = [2, 32], strides = [1, 1]} : vector<2x128xf32> to vector<2x32xf32>
    %629 = math.tanh %628 : vector<2x32xf32>
    %630 = arith.mulf %626, %594 : vector<2x32xf32>
    %631 = arith.mulf %625, %629 : vector<2x32xf32>
    %632 = arith.addf %630, %631 : vector<2x32xf32>
    %633 = math.tanh %632 : vector<2x32xf32>
    %634 = arith.mulf %627, %633 : vector<2x32xf32>
    %c12_245 = arith.constant 12 : index
    %c0_246 = arith.constant 0 : index
    %635 = vector.load %arg12[%c12_245, %c0_246] : memref<16x32xf32, #tpu.memory_space<vmem>>, vector<2x32xf32>
    tpu.vector_store %arg12[%c12_245, %c0_246], %619 {strides = array<i32>} : memref<16x32xf32, #tpu.memory_space<vmem>>, vector<2x32xf32>,
    %c2_247 = arith.constant 2 : index
    %c0_248 = arith.constant 0 : index
    %636 = vector.load %arg13[%c2_247, %c0_248] : memref<16x32xf32, #tpu.memory_space<vmem>>, vector<2x32xf32>
    tpu.vector_store %arg13[%c2_247, %c0_248], %634 {strides = array<i32>} : memref<16x32xf32, #tpu.memory_space<vmem>>, vector<2x32xf32>,
    %c14_249 = arith.constant 14 : index
    %c0_250 = arith.constant 0 : index
    %637 = vector.load %arg14[%c14_249, %c0_250] : memref<16x128xf32, #tpu.memory_space<vmem>>, vector<2x128xf32>
    %cst_251 = arith.constant dense<0.000000e+00> : vector<2x128xf32>
    %638 = tpu.matmul %619, %360, %cst_251 {dimension_numbers = #tpu.dot_dimension_numbers<[1], [0], [0], [1], [0, 0, 1, 1], [], []>} : vector<2x32xf32>, vector<32x128xf32>, vector<2x128xf32> -> vector<2x128xf32>
    %639 = arith.addf %637, %638 : vector<2x128xf32>
    %c0_252 = arith.constant 0 : index
    %c0_253 = arith.constant 0 : index
    %640 = vector.load %arg15[%c0_252, %c0_253] : memref<16x128xf32, #tpu.memory_space<vmem>>, vector<2x128xf32>
    %cst_254 = arith.constant dense<0.000000e+00> : vector<2x128xf32>
    %641 = tpu.matmul %634, %362, %cst_254 {dimension_numbers = #tpu.dot_dimension_numbers<[1], [0], [0], [1], [0, 0, 1, 1], [], []>} : vector<2x32xf32>, vector<32x128xf32>, vector<2x128xf32> -> vector<2x128xf32>
    %642 = arith.addf %640, %641 : vector<2x128xf32>
    %643 = arith.negf %639 : vector<2x128xf32>
    %644 = math.exp %643 : vector<2x128xf32>
    %cst_255 = arith.constant 1.000000e+00 : f32
    %645 = vector.broadcast %cst_255 : f32 to vector<2x128xf32>
    %646 = arith.addf %645, %644 : vector<2x128xf32>
    %647 = arith.divf %645, %646 : vector<2x128xf32>
    %648 = vector.extract_strided_slice %647 {offsets = [0, 0], sizes = [2, 32], strides = [1, 1]} : vector<2x128xf32> to vector<2x32xf32>
    %649 = vector.extract_strided_slice %647 {offsets = [0, 32], sizes = [2, 32], strides = [1, 1]} : vector<2x128xf32> to vector<2x32xf32>
    %650 = vector.extract_strided_slice %647 {offsets = [0, 96], sizes = [2, 32], strides = [1, 1]} : vector<2x128xf32> to vector<2x32xf32>
    %651 = vector.extract_strided_slice %639 {offsets = [0, 64], sizes = [2, 32], strides = [1, 1]} : vector<2x128xf32> to vector<2x32xf32>
    %652 = math.tanh %651 : vector<2x32xf32>
    %653 = arith.mulf %649, %617 : vector<2x32xf32>
    %654 = arith.mulf %648, %652 : vector<2x32xf32>
    %655 = arith.addf %653, %654 : vector<2x32xf32>
    %656 = math.tanh %655 : vector<2x32xf32>
    %657 = arith.mulf %650, %656 : vector<2x32xf32>
    %658 = arith.negf %642 : vector<2x128xf32>
    %659 = math.exp %658 : vector<2x128xf32>
    %cst_256 = arith.constant 1.000000e+00 : f32
    %660 = vector.broadcast %cst_256 : f32 to vector<2x128xf32>
    %661 = arith.addf %660, %659 : vector<2x128xf32>
    %662 = arith.divf %660, %661 : vector<2x128xf32>
    %663 = vector.extract_strided_slice %662 {offsets = [0, 0], sizes = [2, 32], strides = [1, 1]} : vector<2x128xf32> to vector<2x32xf32>
    %664 = vector.extract_strided_slice %662 {offsets = [0, 32], sizes = [2, 32], strides = [1, 1]} : vector<2x128xf32> to vector<2x32xf32>
    %665 = vector.extract_strided_slice %662 {offsets = [0, 96], sizes = [2, 32], strides = [1, 1]} : vector<2x128xf32> to vector<2x32xf32>
    %666 = vector.extract_strided_slice %642 {offsets = [0, 64], sizes = [2, 32], strides = [1, 1]} : vector<2x128xf32> to vector<2x32xf32>
    %667 = math.tanh %666 : vector<2x32xf32>
    %668 = arith.mulf %664, %632 : vector<2x32xf32>
    %669 = arith.mulf %663, %667 : vector<2x32xf32>
    %670 = arith.addf %668, %669 : vector<2x32xf32>
    %671 = math.tanh %670 : vector<2x32xf32>
    %672 = arith.mulf %665, %671 : vector<2x32xf32>
    %c14_257 = arith.constant 14 : index
    %c0_258 = arith.constant 0 : index
    %673 = vector.load %arg12[%c14_257, %c0_258] : memref<16x32xf32, #tpu.memory_space<vmem>>, vector<2x32xf32>
    tpu.vector_store %arg12[%c14_257, %c0_258], %657 {strides = array<i32>} : memref<16x32xf32, #tpu.memory_space<vmem>>, vector<2x32xf32>,
    %c0_259 = arith.constant 0 : index
    %c0_260 = arith.constant 0 : index
    %674 = vector.load %arg13[%c0_259, %c0_260] : memref<16x32xf32, #tpu.memory_space<vmem>>, vector<2x32xf32>
    tpu.vector_store %arg13[%c0_259, %c0_260], %672 {strides = array<i32>} : memref<16x32xf32, #tpu.memory_space<vmem>>, vector<2x32xf32>,
    %c14_261 = arith.constant 14 : index
    %c0_262 = arith.constant 0 : index
    %675 = vector.load %arg12[%c14_261, %c0_262] : memref<16x32xf32, #tpu.memory_space<vmem>>, vector<2x32xf32>
    %c14_263 = arith.constant 14 : index
    %c0_264 = arith.constant 0 : index
    %676 = vector.load %arg13[%c14_263, %c0_264] : memref<16x32xf32, #tpu.memory_space<vmem>>, vector<2x32xf32>
    %c0_265 = arith.constant 0 : index
    %c0_266 = arith.constant 0 : index
    %677 = vector.load %arg9[%c0_265, %c0_266] : memref<1x64xf32, #tpu.memory_space<vmem>>, vector<1x64xf32>
    %678 = vector.extract_strided_slice %677 {offsets = [0, 0], sizes = [1, 32], strides = [1, 1]} : vector<1x64xf32> to vector<1x32xf32>
    %679 = vector.broadcast %678 : vector<1x32xf32> to vector<2x32xf32>
    %680 = arith.mulf %675, %679 : vector<2x32xf32>
    %cst_267 = arith.constant dense<0.000000e+00> : vector<2xf32>
    %681 = vector.multi_reduction <add>, %680, %cst_267 [1] : vector<2x32xf32> to vector<2xf32>
    %682 = vector.shape_cast %681 : vector<2xf32> to vector<2x1xf32>
    %683 = vector.extract_strided_slice %677 {offsets = [0, 32], sizes = [1, 32], strides = [1, 1]} : vector<1x64xf32> to vector<1x32xf32>
    %684 = vector.broadcast %683 : vector<1x32xf32> to vector<2x32xf32>
    %685 = arith.mulf %676, %684 : vector<2x32xf32>
    %cst_268 = arith.constant dense<0.000000e+00> : vector<2xf32>
    %686 = vector.multi_reduction <add>, %685, %cst_268 [1] : vector<2x32xf32> to vector<2xf32>
    %687 = vector.shape_cast %686 : vector<2xf32> to vector<2x1xf32>
    %688 = arith.addf %682, %687 : vector<2x1xf32>
    %c0_269 = arith.constant 0 : index
    %c0_270 = arith.constant 0 : index
    %689 = vector.load %arg10[%c0_269, %c0_270] : memref<1x1xf32, #tpu.memory_space<vmem>>, vector<1x1xf32>
    %690 = vector.broadcast %689 : vector<1x1xf32> to vector<2x1xf32>
    %691 = arith.addf %688, %690 : vector<2x1xf32>
    %692 = arith.negf %691 : vector<2x1xf32>
    %693 = math.exp %692 : vector<2x1xf32>
    %cst_271 = arith.constant 1.000000e+00 : f32
    %694 = vector.broadcast %cst_271 : f32 to vector<2x1xf32>
    %695 = arith.addf %694, %693 : vector<2x1xf32>
    %696 = arith.divf %694, %695 : vector<2x1xf32>
    %c0_272 = arith.constant 0 : index
    %c0_273 = arith.constant 0 : index
    %697 = vector.load %arg11[%c0_272, %c0_273] : memref<2x1xf32, #tpu.memory_space<vmem>>, vector<2x1xf32>
    tpu.vector_store %arg11[%c0_272, %c0_273], %696 {strides = array<i32>} : memref<2x1xf32, #tpu.memory_space<vmem>>, vector<2x1xf32>,
    return
  }
}

</mosaic_0001>

<llo_original>
// kernel: lstm_model_forward.1
$region0: #{lstm_model_forward.1}
  #allocation0 [shape = 'u32[]', space=smem, size = 0x4, offset = 0x4, fixed_abs, tag = 'smem constant byte address 0x4 - core index']
  #allocation1 [shape = 'u32[144,128]{1,0:T(1,128)}', space=vmem, size = 0x12000, scoped, tag = 'internal scratch']
  #allocation2 [shape = 'f32[16,32]{1,0:T(8,128)}', space=vmem, size = 0x2000, scoped, tag = 'scratch operand']
  #allocation3 [shape = 'f32[16,32]{1,0:T(8,128)}', space=vmem, size = 0x2000, scoped, tag = 'scratch operand']
  #allocation4 [shape = 'f32[16,128]{1,0:T(8,128)}', space=vmem, size = 0x2000, scoped, tag = 'scratch operand']
  #allocation5 [shape = 'f32[16,128]{1,0:T(8,128)}', space=vmem, size = 0x2000, scoped, tag = 'scratch operand']
  #allocation6 [shape = 'f32[1,1]{1,0:T(1,128)S(1)}', space=vmem, size = 0x200, scoped, tag = 'scoped memory for lstm_model_forward.1']
  %s0 = inlined_call_operand.vmem [shape: f32[16,16], index: 0, kind: input, shape index: {}]
  %s1 = inlined_call_operand.hbm [shape: f32[2,16,128], index: 1, kind: input, shape index: {}]
  %s2 = inlined_call_operand.vmem [shape: f32[2,32,128], index: 2, kind: input, shape index: {}]
  %s3 = inlined_call_operand.vmem [shape: f32[2,1,128], index: 3, kind: input, shape index: {}]
  %s4 = inlined_call_operand.hbm [shape: f32[2,64,128], index: 4, kind: input, shape index: {}]
  %s5 = inlined_call_operand.hbm [shape: f32[2,32,128], index: 5, kind: input, shape index: {}]
  %s6 = inlined_call_operand.vmem [shape: f32[2,1,128], index: 6, kind: input, shape index: {}]
  %s7 = inlined_call_operand.vmem [shape: f32[4,2,32], index: 7, kind: input, shape index: {}]
  %s8 = inlined_call_operand.vmem [shape: f32[4,2,32], index: 8, kind: input, shape index: {}]
  %s9 = inlined_call_operand.hbm [shape: f32[1,64], index: 9, kind: input, shape index: {}]
  %s10 = inlined_call_operand.<no memory space> [shape: f32[1,1], index: 10, kind: input, shape index: {}]
  %s11 = inlined_call_operand.vmem [shape: f32[2,1], index: 11, kind: output, shape index: {}]
  %s12 = sld [smem:[#allocation0]]
  $region70: #{lstm_model_forward.1} parent=0
    _
  %s14 = ssub.s32 1, %s12
  %s15 = scalar_select 0, %s14, %s12
  %v16 = vstv %s10
  %17 = vst [vmem:[#allocation6] sm:$0x1] %v16
  $region1: #{lstm_model_forward.1} parent=0
    #allocation7 [shape = 'u8[16384]{0}', space=vmem, size = 0x4000, scoped, tag = 'input window, operand 1, single buffered']
    #allocation8 [shape = 's32[1]{0}', space=sflag, size = 0x4, scoped, tag = 'scoped memory for lstm_model_forward.1']
    #allocation9 [shape = 'u8[65536]{0}', space=vmem, size = 0x10000, scoped, tag = 'input window, operand 4, single buffered']
    #allocation10 [shape = 's32[1]{0}', space=sflag, size = 0x4, scoped, tag = 'scoped memory for lstm_model_forward.1']
    #allocation11 [shape = 'u8[32768]{0}', space=vmem, size = 0x8000, scoped, tag = 'input window, operand 5, single buffered']
    #allocation12 [shape = 'u8[512]{0}', space=vmem, size = 0x400, scoped, tag = 'input window, operand 9, single buffered']
    #allocation13 [shape = 's32[1]{0}', space=sflag, size = 0x4, scoped, tag = 'scoped memory for lstm_model_forward.1']
    %18 = vsyncpa [#allocation8], 0
    %19 = vsyncpa [#allocation10], 0
    %20 = vsyncpa [#allocation13], 0
    // Predicated region
    $region2: #{lstm_model_forward.1} parent=1 // pred_check
      _
    $region3: #{lstm_model_forward.1} parent=1 // pred_check_branch
      %22 = sbr.rel (0) target = $region5
    $region4: #{lstm_model_forward.1} parent=1 // pred_region
      _
    $region5: #{lstm_model_forward.1} parent=1 // pred_fallthru
      _
    // Predicated region
    $region6: #{lstm_model_forward.1} parent=1 // pred_check
      _
    $region7: #{lstm_model_forward.1} parent=1 // pred_check_branch
      %24 = sbr.rel (0) target = $region9
    $region8: #{lstm_model_forward.1} parent=1 // pred_region
      %s26 = ssub.s32 512, 512
      %27 = vsyncadd [#allocation8], %s26
      %s28 = sshll.u32 [#allocation7], 4
      %s29 = int_to_ptr.vmem [resolvable:$true] %s28
      %34 = dma.hbm_to_vmem [thread:$0]  %s1, 512, %s29, [#allocation8], 128, 128, 8
    $region9: #{lstm_model_forward.1} parent=1 // pred_fallthru
      _
    // Predicated region
    $region10: #{lstm_model_forward.1} parent=1 // pred_check
      _
    $region11: #{lstm_model_forward.1} parent=1 // pred_check_branch
      %36 = sbr.rel (0) target = $region13
    $region12: #{lstm_model_forward.1} parent=1 // pred_region
      _
    $region13: #{lstm_model_forward.1} parent=1 // pred_fallthru
      _
    // Predicated region
    $region14: #{lstm_model_forward.1} parent=1 // pred_check
      _
    $region15: #{lstm_model_forward.1} parent=1 // pred_check_branch
      %38 = sbr.rel (0) target = $region17
    $region16: #{lstm_model_forward.1} parent=1 // pred_region
      _
    $region17: #{lstm_model_forward.1} parent=1 // pred_fallthru
      _
    // Predicated region
    $region18: #{lstm_model_forward.1} parent=1 // pred_check
      _
    $region19: #{lstm_model_forward.1} parent=1 // pred_check_branch
      %40 = sbr.rel (0) target = $region21
    $region20: #{lstm_model_forward.1} parent=1 // pred_region
      %s42 = ssub.s32 2048, 2048
      %43 = vsyncadd [#allocation10], %s42
      %s44 = sshll.u32 [#allocation9], 4
      %s45 = int_to_ptr.vmem [resolvable:$true] %s44
      %50 = dma.hbm_to_vmem [thread:$0]  %s4, 2048, %s45, [#allocation10], 128, 128, 8
    $region21: #{lstm_model_forward.1} parent=1 // pred_fallthru
      _
    // Predicated region
    $region22: #{lstm_model_forward.1} parent=1 // pred_check
      _
    $region23: #{lstm_model_forward.1} parent=1 // pred_check_branch
      %52 = sbr.rel (0) target = $region25
    $region24: #{lstm_model_forward.1} parent=1 // pred_region
      %s54 = ssub.s32 1024, 1024
      %55 = vsyncadd [#allocation10], %s54
      %s56 = sshll.u32 [#allocation11], 4
      %s57 = int_to_ptr.vmem [resolvable:$true] %s56
      %62 = dma.hbm_to_vmem [thread:$0]  %s5, 1024, %s57, [#allocation10], 128, 128, 8
    $region25: #{lstm_model_forward.1} parent=1 // pred_fallthru
      _
    // Predicated region
    $region26: #{lstm_model_forward.1} parent=1 // pred_check
      _
    $region27: #{lstm_model_forward.1} parent=1 // pred_check_branch
      %64 = sbr.rel (0) target = $region29
    $region28: #{lstm_model_forward.1} parent=1 // pred_region
      _
    $region29: #{lstm_model_forward.1} parent=1 // pred_fallthru
      _
    // Predicated region
    $region30: #{lstm_model_forward.1} parent=1 // pred_check
      _
    $region31: #{lstm_model_forward.1} parent=1 // pred_check_branch
      %66 = sbr.rel (0) target = $region33
    $region32: #{lstm_model_forward.1} parent=1 // pred_region
      _
    $region33: #{lstm_model_forward.1} parent=1 // pred_fallthru
      _
    // Predicated region
    $region34: #{lstm_model_forward.1} parent=1 // pred_check
      _
    $region35: #{lstm_model_forward.1} parent=1 // pred_check_branch
      %68 = sbr.rel (0) target = $region37
    $region36: #{lstm_model_forward.1} parent=1 // pred_region
      _
    $region37: #{lstm_model_forward.1} parent=1 // pred_fallthru
      _
    // Predicated region
    $region38: #{lstm_model_forward.1} parent=1 // pred_check
      _
    $region39: #{lstm_model_forward.1} parent=1 // pred_check_branch
      %70 = sbr.rel (0) target = $region41
    $region40: #{lstm_model_forward.1} parent=1 // pred_region
      %s72 = ssub.s32 16, 16
      %73 = vsyncadd [#allocation13], %s72
      %s75 = sshll.u32 [#allocation12], 4
      %s76 = int_to_ptr.vmem [resolvable:$true] %s75
      %78 = dma.hbm_to_vmem [thread:$0]  %s9, 16, %s76, [#allocation13]
    $region41: #{lstm_model_forward.1} parent=1 // pred_fallthru
      _
    // Predicated region
    $region42: #{lstm_model_forward.1} parent=1 // pred_check
      _
    $region43: #{lstm_model_forward.1} parent=1 // pred_check_branch
      %80 = sbr.rel (0) target = $region45
    $region44: #{lstm_model_forward.1} parent=1 // pred_region
      _
    $region45: #{lstm_model_forward.1} parent=1 // pred_fallthru
      _
    // Predicated region
    $region46: #{lstm_model_forward.1} parent=1 // pred_check
      _
    $region47: #{lstm_model_forward.1} parent=1 // pred_check_branch
      %82 = sbr.rel (0) target = $region49
    $region48: #{lstm_model_forward.1} parent=1 // pred_region
      %83 = dma.done [#allocation8], 512
    $region49: #{lstm_model_forward.1} parent=1 // pred_fallthru
      _
    // Predicated region
    $region50: #{lstm_model_forward.1} parent=1 // pred_check
      _
    $region51: #{lstm_model_forward.1} parent=1 // pred_check_branch
      %85 = sbr.rel (0) target = $region53
    $region52: #{lstm_model_forward.1} parent=1 // pred_region
      %86 = dma.done [#allocation10], 2048
    $region53: #{lstm_model_forward.1} parent=1 // pred_fallthru
      _
    // Predicated region
    $region54: #{lstm_model_forward.1} parent=1 // pred_check
      _
    $region55: #{lstm_model_forward.1} parent=1 // pred_check_branch
      %88 = sbr.rel (0) target = $region57
    $region56: #{lstm_model_forward.1} parent=1 // pred_region
      %89 = dma.done [#allocation10], 1024
    $region57: #{lstm_model_forward.1} parent=1 // pred_fallthru
      _
    // Predicated region
    $region58: #{lstm_model_forward.1} parent=1 // pred_check
      _
    $region59: #{lstm_model_forward.1} parent=1 // pred_check_branch
      %91 = sbr.rel (0) target = $region61
    $region60: #{lstm_model_forward.1} parent=1 // pred_region
      %92 = dma.done [#allocation13], 16
    $region61: #{lstm_model_forward.1} parent=1 // pred_fallthru
      _
    %v93 = vld [vmem:[%s0] sm:$0xff]
    %v94 = vld [vmem:[%s0 + $0x8] sm:$0xff]
    %v95 = vld [vmem:[#allocation7] sm:$0xff]
    %v96 = vld [vmem:[#allocation7 + $0x8] sm:$0xff]
    %v97 = vld [vmem:[%s3] sm:$0x1]
    %v99 = vlaneseq
    %v100 = vshrl.u32 %v99, 7
    %v101 = vsub.s32 0, %v100
    %v102 = vrot.slane %v97, %v101
    %vm104 = vcmask 130048
    %v106 = vsel %vm104, %v93, 0
    %v109 = vsel %vm104, %v94, 0
    %111 = vmatprep.subr.mxu0 0.0
    %112 = vmatpush1.msra.mxu0 0.0
    %113 = vmatprep.subr.mxu0 0.0
    %114 = vmatpush1.msra.mxu0 0.0
    %115 = vmatprep.subr.mxu0 0.0
    %116 = vmatpush1.msra.mxu0 0.0
    %117 = vmatprep.subr.mxu0 0.0
    %118 = vmatpush1.msra.mxu0 0.0
    %119 = vmatprep.subr.mxu0 0.0
    %120 = vmatpush1.msra.mxu0 0.0
    %121 = vmatprep.subr.mxu0 0.0
    %122 = vmatpush1.msra.mxu0 0.0
    %123 = vmatprep.subr.mxu0 0.0
    %124 = vmatpush1.msra.mxu0 0.0
    %125 = vmatprep.subr.mxu0 0.0
    %126 = vmatpush1.msra.mxu0 0.0
    %127 = vmatprep.subr.mxu0 0.0
    %128 = vmatpush1.msra.mxu0 0.0
    %129 = vmatprep.subr.mxu0 0.0
    %130 = vmatpush1.msra.mxu0 0.0
    %131 = vmatprep.subr.mxu0 0.0
    %132 = vmatpush1.msra.mxu0 0.0
    %133 = vmatprep.subr.mxu0 0.0
    %134 = vmatpush1.msra.mxu0 0.0
    %135 = vmatprep.subr.mxu0 0.0
    %136 = vmatpush1.msra.mxu0 0.0
    %137 = vmatprep.subr.mxu0 0.0
    %138 = vmatpush1.msra.mxu0 0.0
    %139 = vmatprep.subr.mxu0 0.0
    %140 = vmatpush1.msra.mxu0 %v96
    %141 = vmatprep.subr.mxu0 0.0
    %142 = vmatpush1.msra.mxu0 %v95
    %143 = vmatprep.subr.mxu0 0.0
    %144 = vmatpush2.msra.mxu0 0.0
    %145 = vmatprep.subr.mxu0 0.0
    %146 = vmatpush2.msra.mxu0 0.0
    %147 = vmatprep.subr.mxu0 0.0
    %148 = vmatpush2.msra.mxu0 0.0
    %149 = vmatprep.subr.mxu0 0.0
    %150 = vmatpush2.msra.mxu0 0.0
    %151 = vmatprep.subr.mxu0 0.0
    %152 = vmatpush2.msra.mxu0 0.0
    %153 = vmatprep.subr.mxu0 0.0
    %154 = vmatpush2.msra.mxu0 0.0
    %155 = vmatprep.subr.mxu0 0.0
    %156 = vmatpush2.msra.mxu0 0.0
    %157 = vmatprep.subr.mxu0 0.0
    %158 = vmatpush2.msra.mxu0 0.0
    %159 = vmatprep.subr.mxu0 0.0
    %160 = vmatpush2.msra.mxu0 0.0
    %161 = vmatprep.subr.mxu0 0.0
    %162 = vmatpush2.msra.mxu0 0.0
    %163 = vmatprep.subr.mxu0 0.0
    %164 = vmatpush2.msra.mxu0 0.0
    %165 = vmatprep.subr.mxu0 0.0
    %166 = vmatpush2.msra.mxu0 0.0
    %167 = vmatprep.subr.mxu0 0.0
    %168 = vmatpush2.msra.mxu0 0.0
    %169 = vmatprep.subr.mxu0 0.0
    %170 = vmatpush2.msra.mxu0 0.0
    %171 = vmatprep.subr.mxu0 0.0
    %172 = vmatpush2.msra.mxu0 0.0
    %173 = vmatprep.subr.mxu0 0.0
    %174 = vmatpush2.msra.mxu0 0.0
    %175 = vmatprep.mubr.f32.mxu0 0.0
    %176 = vmatmul.mubr.f32.gmra.mxu0 %v106
    %v177 = vpop.f32.mrf.mxu0
    %v178 = vadd.f32 %v102, %v177
    %v179 = vpop.f32.mrf.mxu0
    %180 = vmatprep.mubr.f32.mxu0 0.0
    %181 = vmatmul.mubr.f32.gmra.mxu0 %v109
    %v182 = vpop.f32.mrf.mxu0
    %v183 = vadd.f32 %v102, %v182
    %v184 = vpop.f32.mrf.mxu0
    %185 = vdwg.mxu0
    %186 = vst [vmem:[#allocation4] sm:$0xff] %v178
    %187 = vst [vmem:[#allocation4 + $0x8] sm:$0xff] %v183
    %s188 = scalar_lea.vmem [#allocation7], 16
    %v189 = vld [vmem:[%s188] sm:$0xff]
    %v190 = vld [vmem:[%s188 + $0x8] sm:$0xff]
    %s191 = scalar_lea.vmem %s3, 1
    %v192 = vld [vmem:[%s191] sm:$0x1]
    %v194 = vlaneseq
    %v195 = vshrl.u32 %v194, 7
    %v196 = vsub.s32 0, %v195
    %v197 = vrot.slane %v192, %v196
    %199 = vmatprep.subr.mxu0 0.0
    %200 = vmatpush1.msra.mxu0 0.0
    %201 = vmatprep.subr.mxu0 0.0
    %202 = vmatpush1.msra.mxu0 0.0
    %203 = vmatprep.subr.mxu0 0.0
    %204 = vmatpush1.msra.mxu0 0.0
    %205 = vmatprep.subr.mxu0 0.0
    %206 = vmatpush1.msra.mxu0 0.0
    %207 = vmatprep.subr.mxu0 0.0
    %208 = vmatpush1.msra.mxu0 0.0
    %209 = vmatprep.subr.mxu0 0.0
    %210 = vmatpush1.msra.mxu0 0.0
    %211 = vmatprep.subr.mxu0 0.0
    %212 = vmatpush1.msra.mxu0 0.0
    %213 = vmatprep.subr.mxu0 0.0
    %214 = vmatpush1.msra.mxu0 0.0
    %215 = vmatprep.subr.mxu0 0.0
    %216 = vmatpush1.msra.mxu0 0.0
    %217 = vmatprep.subr.mxu0 0.0
    %218 = vmatpush1.msra.mxu0 0.0
    %219 = vmatprep.subr.mxu0 0.0
    %220 = vmatpush1.msra.mxu0 0.0
    %221 = vmatprep.subr.mxu0 0.0
    %222 = vmatpush1.msra.mxu0 0.0
    %223 = vmatprep.subr.mxu0 0.0
    %224 = vmatpush1.msra.mxu0 0.0
    %225 = vmatprep.subr.mxu0 0.0
    %226 = vmatpush1.msra.mxu0 0.0
    %227 = vmatprep.subr.mxu0 0.0
    %228 = vmatpush1.msra.mxu0 %v190
    %229 = vmatprep.subr.mxu0 0.0
    %230 = vmatpush1.msra.mxu0 %v189
    %231 = vmatprep.subr.mxu0 0.0
    %232 = vmatpush2.msra.mxu0 0.0
    %233 = vmatprep.subr.mxu0 0.0
    %234 = vmatpush2.msra.mxu0 0.0
    %235 = vmatprep.subr.mxu0 0.0
    %236 = vmatpush2.msra.mxu0 0.0
    %237 = vmatprep.subr.mxu0 0.0
    %238 = vmatpush2.msra.mxu0 0.0
    %239 = vmatprep.subr.mxu0 0.0
    %240 = vmatpush2.msra.mxu0 0.0
    %241 = vmatprep.subr.mxu0 0.0
    %242 = vmatpush2.msra.mxu0 0.0
    %243 = vmatprep.subr.mxu0 0.0
    %244 = vmatpush2.msra.mxu0 0.0
    %245 = vmatprep.subr.mxu0 0.0
    %246 = vmatpush2.msra.mxu0 0.0
    %247 = vmatprep.subr.mxu0 0.0
    %248 = vmatpush2.msra.mxu0 0.0
    %249 = vmatprep.subr.mxu0 0.0
    %250 = vmatpush2.msra.mxu0 0.0
    %251 = vmatprep.subr.mxu0 0.0
    %252 = vmatpush2.msra.mxu0 0.0
    %253 = vmatprep.subr.mxu0 0.0
    %254 = vmatpush2.msra.mxu0 0.0
    %255 = vmatprep.subr.mxu0 0.0
    %256 = vmatpush2.msra.mxu0 0.0
    %257 = vmatprep.subr.mxu0 0.0
    %258 = vmatpush2.msra.mxu0 0.0
    %259 = vmatprep.subr.mxu0 0.0
    %260 = vmatpush2.msra.mxu0 0.0
    %261 = vmatprep.subr.mxu0 0.0
    %262 = vmatpush2.msra.mxu0 0.0
    %263 = vmatprep.mubr.f32.mxu0 0.0
    %264 = vmatmul.mubr.f32.gmra.mxu0 %v106
    %v265 = vpop.f32.mrf.mxu0
    %v266 = vadd.f32 %v197, %v265
    %v267 = vpop.f32.mrf.mxu0
    %268 = vmatprep.mubr.f32.mxu0 0.0
    %269 = vmatmul.mubr.f32.gmra.mxu0 %v109
    %v270 = vpop.f32.mrf.mxu0
    %v271 = vadd.f32 %v197, %v270
    %v272 = vpop.f32.mrf.mxu0
    %273 = vdwg.mxu0
    %274 = vst [vmem:[#allocation5] sm:$0xff] %v266
    %275 = vst [vmem:[#allocation5 + $0x8] sm:$0xff] %v271
    %v276 = vld [vmem:[%s2] sm:$0xff]
    %v277 = vld [vmem:[%s2 + $0x8] sm:$0xff]
    %v278 = vld [vmem:[%s2 + $0x10] sm:$0xff]
    %v279 = vld [vmem:[%s2 + $0x18] sm:$0xff]
    %s280 = scalar_lea.vmem %s2, 32
    %v281 = vld [vmem:[%s280] sm:$0xff]
    %v282 = vld [vmem:[%s280 + $0x8] sm:$0xff]
    %v283 = vld [vmem:[%s280 + $0x10] sm:$0xff]
    %v284 = vld [vmem:[%s280 + $0x18] sm:$0xff]
    %v285 = vld [vmem:[%s7] sm:$0x3]
    %v286 = vld [vmem:[%s8] sm:$0x3]
    %s287 = scalar_lea.vmem %s7, 2
    %v288 = vld [vmem:[%s287] sm:$0x3]
    %s289 = scalar_lea.vmem %s8, 2
    %v290 = vld [vmem:[%s289] sm:$0x3]
    %v291 = vld [vmem:[#allocation4] sm:$0x3]
    %vm292 = vcmask 261120
    %v294 = vsel %vm292, %v285, 0
    %296 = vmatprep.subr.mxu0 0.0
    %297 = vmatpush1.msra.mxu0 0.0
    %298 = vmatprep.subr.mxu0 0.0
    %299 = vmatpush1.msra.mxu0 0.0
    %300 = vmatprep.subr.mxu0 0.0
    %301 = vmatpush1.msra.mxu0 0.0
    %302 = vmatprep.subr.mxu0 0.0
    %303 = vmatpush1.msra.mxu0 0.0
    %304 = vmatprep.subr.mxu0 0.0
    %305 = vmatpush1.msra.mxu0 0.0
    %306 = vmatprep.subr.mxu0 0.0
    %307 = vmatpush1.msra.mxu0 0.0
    %308 = vmatprep.subr.mxu0 0.0
    %309 = vmatpush1.msra.mxu0 0.0
    %310 = vmatprep.subr.mxu0 0.0
    %311 = vmatpush1.msra.mxu0 0.0
    %312 = vmatprep.subr.mxu0 0.0
    %313 = vmatpush1.msra.mxu0 0.0
    %314 = vmatprep.subr.mxu0 0.0
    %315 = vmatpush1.msra.mxu0 0.0
    %316 = vmatprep.subr.mxu0 0.0
    %317 = vmatpush1.msra.mxu0 0.0
    %318 = vmatprep.subr.mxu0 0.0
    %319 = vmatpush1.msra.mxu0 0.0
    %320 = vmatprep.subr.mxu0 0.0
    %321 = vmatpush1.msra.mxu0 %v279
    %322 = vmatprep.subr.mxu0 0.0
    %323 = vmatpush1.msra.mxu0 %v278
    %324 = vmatprep.subr.mxu0 0.0
    %325 = vmatpush1.msra.mxu0 %v277
    %326 = vmatprep.subr.mxu0 0.0
    %327 = vmatpush1.msra.mxu0 %v276
    %328 = vmatprep.subr.mxu0 0.0
    %329 = vmatpush2.msra.mxu0 0.0
    %330 = vmatprep.subr.mxu0 0.0
    %331 = vmatpush2.msra.mxu0 0.0
    %332 = vmatprep.subr.mxu0 0.0
    %333 = vmatpush2.msra.mxu0 0.0
    %334 = vmatprep.subr.mxu0 0.0
    %335 = vmatpush2.msra.mxu0 0.0
    %336 = vmatprep.subr.mxu0 0.0
    %337 = vmatpush2.msra.mxu0 0.0
    %338 = vmatprep.subr.mxu0 0.0
    %339 = vmatpush2.msra.mxu0 0.0
    %340 = vmatprep.subr.mxu0 0.0
    %341 = vmatpush2.msra.mxu0 0.0
    %342 = vmatprep.subr.mxu0 0.0
    %343 = vmatpush2.msra.mxu0 0.0
    %344 = vmatprep.subr.mxu0 0.0
    %345 = vmatpush2.msra.mxu0 0.0
    %346 = vmatprep.subr.mxu0 0.0
    %347 = vmatpush2.msra.mxu0 0.0
    %348 = vmatprep.subr.mxu0 0.0
    %349 = vmatpush2.msra.mxu0 0.0
    %350 = vmatprep.subr.mxu0 0.0
    %351 = vmatpush2.msra.mxu0 0.0
    %352 = vmatprep.subr.mxu0 0.0
    %353 = vmatpush2.msra.mxu0 0.0
    %354 = vmatprep.subr.mxu0 0.0
    %355 = vmatpush2.msra.mxu0 0.0
    %356 = vmatprep.subr.mxu0 0.0
    %357 = vmatpush2.msra.mxu0 0.0
    %358 = vmatprep.subr.mxu0 0.0
    %359 = vmatpush2.msra.mxu0 0.0
    %360 = vmatprep.mubr.f32.mxu0 0.0
    %361 = vmatmul.mubr.f32.gmra.mxu0 %v294
    %v362 = vpop.f32.mrf.mxu0
    %v363 = vadd.f32 0.0, %v362
    %v364 = vpop.f32.mrf.mxu0
    %365 = vdwg.mxu0
    %v366 = vadd.f32 %v291, %v363
    %v367 = vld [vmem:[#allocation5 + $0xe] sm:$0x3]
    %v369 = vsel %vm292, %v288, 0
    %371 = vmatprep.subr.mxu0 0.0
    %372 = vmatpush1.msra.mxu0 0.0
    %373 = vmatprep.subr.mxu0 0.0
    %374 = vmatpush1.msra.mxu0 0.0
    %375 = vmatprep.subr.mxu0 0.0
    %376 = vmatpush1.msra.mxu0 0.0
    %377 = vmatprep.subr.mxu0 0.0
    %378 = vmatpush1.msra.mxu0 0.0
    %379 = vmatprep.subr.mxu0 0.0
    %380 = vmatpush1.msra.mxu0 0.0
    %381 = vmatprep.subr.mxu0 0.0
    %382 = vmatpush1.msra.mxu0 0.0
    %383 = vmatprep.subr.mxu0 0.0
    %384 = vmatpush1.msra.mxu0 0.0
    %385 = vmatprep.subr.mxu0 0.0
    %386 = vmatpush1.msra.mxu0 0.0
    %387 = vmatprep.subr.mxu0 0.0
    %388 = vmatpush1.msra.mxu0 0.0
    %389 = vmatprep.subr.mxu0 0.0
    %390 = vmatpush1.msra.mxu0 0.0
    %391 = vmatprep.subr.mxu0 0.0
    %392 = vmatpush1.msra.mxu0 0.0
    %393 = vmatprep.subr.mxu0 0.0
    %394 = vmatpush1.msra.mxu0 0.0
    %395 = vmatprep.subr.mxu0 0.0
    %396 = vmatpush1.msra.mxu0 %v284
    %397 = vmatprep.subr.mxu0 0.0
    %398 = vmatpush1.msra.mxu0 %v283
    %399 = vmatprep.subr.mxu0 0.0
    %400 = vmatpush1.msra.mxu0 %v282
    %401 = vmatprep.subr.mxu0 0.0
    %402 = vmatpush1.msra.mxu0 %v281
    %403 = vmatprep.subr.mxu0 0.0
    %404 = vmatpush2.msra.mxu0 0.0
    %405 = vmatprep.subr.mxu0 0.0
    %406 = vmatpush2.msra.mxu0 0.0
    %407 = vmatprep.subr.mxu0 0.0
    %408 = vmatpush2.msra.mxu0 0.0
    %409 = vmatprep.subr.mxu0 0.0
    %410 = vmatpush2.msra.mxu0 0.0
    %411 = vmatprep.subr.mxu0 0.0
    %412 = vmatpush2.msra.mxu0 0.0
    %413 = vmatprep.subr.mxu0 0.0
    %414 = vmatpush2.msra.mxu0 0.0
    %415 = vmatprep.subr.mxu0 0.0
    %416 = vmatpush2.msra.mxu0 0.0
    %417 = vmatprep.subr.mxu0 0.0
    %418 = vmatpush2.msra.mxu0 0.0
    %419 = vmatprep.subr.mxu0 0.0
    %420 = vmatpush2.msra.mxu0 0.0
    %421 = vmatprep.subr.mxu0 0.0
    %422 = vmatpush2.msra.mxu0 0.0
    %423 = vmatprep.subr.mxu0 0.0
    %424 = vmatpush2.msra.mxu0 0.0
    %425 = vmatprep.subr.mxu0 0.0
    %426 = vmatpush2.msra.mxu0 0.0
    %427 = vmatprep.subr.mxu0 0.0
    %428 = vmatpush2.msra.mxu0 0.0
    %429 = vmatprep.subr.mxu0 0.0
    %430 = vmatpush2.msra.mxu0 0.0
    %431 = vmatprep.subr.mxu0 0.0
    %432 = vmatpush2.msra.mxu0 0.0
    %433 = vmatprep.subr.mxu0 0.0
    %434 = vmatpush2.msra.mxu0 0.0
    %435 = vmatprep.mubr.f32.mxu0 0.0
    %436 = vmatmul.mubr.f32.gmra.mxu0 %v369
    %v437 = vpop.f32.mrf.mxu0
    %v438 = vadd.f32 0.0, %v437
    %v439 = vpop.f32.mrf.mxu0
    %440 = vdwg.mxu0
    %v441 = vadd.f32 %v367, %v438
    %v442 = vxor.u32 %v366, 2147483648
    %v443 = vmul.f32 %v442, 1.442695
    %v444 = vpow.pop %v443
    %v445 = vadd.f32 %v444, 1.0
    %v446 = vrcp.pop %v445
    %v447 = vmul.f32 1.0, %v446
    %v448 = vtanh.pop %v366
    %450 = vrot.lane.b32.xlu0 %v286, 32
    %v451 = vpop.permute.xlu0 %450
    %v453 = vmul.f32 %v447, %v451
    %455 = vrot.lane.b32.xlu0 %v448, 64
    %v456 = vpop.permute.xlu0 %455
    %v458 = vmul.f32 %v447, %v456
    %460 = vrot.lane.b32.xlu0 %v458, 32
    %v461 = vpop.permute.xlu0 %460
    %v463 = vadd.f32 %v453, %v461
    %v464 = vtanh.pop %v463
    %466 = vrot.lane.b32.xlu0 %v464, 64
    %v467 = vpop.permute.xlu0 %466
    %v469 = vmul.f32 %v447, %v467
    %v470 = vxor.u32 %v441, 2147483648
    %v471 = vmul.f32 %v470, 1.442695
    %v472 = vpow.pop %v471
    %v473 = vadd.f32 %v472, 1.0
    %v474 = vrcp.pop %v473
    %v475 = vmul.f32 1.0, %v474
    %v476 = vtanh.pop %v441
    %478 = vrot.lane.b32.xlu0 %v290, 32
    %v479 = vpop.permute.xlu0 %478
    %v481 = vmul.f32 %v475, %v479
    %483 = vrot.lane.b32.xlu0 %v476, 64
    %v484 = vpop.permute.xlu0 %483
    %v486 = vmul.f32 %v475, %v484
    %488 = vrot.lane.b32.xlu0 %v486, 32
    %v489 = vpop.permute.xlu0 %488
    %v491 = vadd.f32 %v481, %v489
    %v492 = vtanh.pop %v491
    %494 = vrot.lane.b32.xlu0 %v492, 64
    %v495 = vpop.permute.xlu0 %494
    %v497 = vmul.f32 %v475, %v495
    %499 = vrot.lane.b32.xlu0 %v469, 32
    %v500 = vpop.permute.xlu0 %499
    %vm502 = vcmask 254976
    %503 = vst.msk [vmem:[#allocation2] sm:$0x3] %vm502, %v500
    %505 = vrot.lane.b32.xlu0 %v497, 32
    %v506 = vpop.permute.xlu0 %505
    %508 = vst.msk [vmem:[#allocation3 + $0xe] sm:$0x3] %vm502, %v506
    %v509 = vld [vmem:[#allocation4 + $0x2] sm:$0x3]
    %v510 = vsel %vm292, %v500, 0
    %512 = vmatprep.subr.mxu0 0.0
    %513 = vmatpush1.msra.mxu0 0.0
    %514 = vmatprep.subr.mxu0 0.0
    %515 = vmatpush1.msra.mxu0 0.0
    %516 = vmatprep.subr.mxu0 0.0
    %517 = vmatpush1.msra.mxu0 0.0
    %518 = vmatprep.subr.mxu0 0.0
    %519 = vmatpush1.msra.mxu0 0.0
    %520 = vmatprep.subr.mxu0 0.0
    %521 = vmatpush1.msra.mxu0 0.0
    %522 = vmatprep.subr.mxu0 0.0
    %523 = vmatpush1.msra.mxu0 0.0
    %524 = vmatprep.subr.mxu0 0.0
    %525 = vmatpush1.msra.mxu0 0.0
    %526 = vmatprep.subr.mxu0 0.0
    %527 = vmatpush1.msra.mxu0 0.0
    %528 = vmatprep.subr.mxu0 0.0
    %529 = vmatpush1.msra.mxu0 0.0
    %530 = vmatprep.subr.mxu0 0.0
    %531 = vmatpush1.msra.mxu0 0.0
    %532 = vmatprep.subr.mxu0 0.0
    %533 = vmatpush1.msra.mxu0 0.0
    %534 = vmatprep.subr.mxu0 0.0
    %535 = vmatpush1.msra.mxu0 0.0
    %536 = vmatprep.subr.mxu0 0.0
    %537 = vmatpush1.msra.mxu0 %v279
    %538 = vmatprep.subr.mxu0 0.0
    %539 = vmatpush1.msra.mxu0 %v278
    %540 = vmatprep.subr.mxu0 0.0
    %541 = vmatpush1.msra.mxu0 %v277
    %542 = vmatprep.subr.mxu0 0.0
    %543 = vmatpush1.msra.mxu0 %v276
    %544 = vmatprep.subr.mxu0 0.0
    %545 = vmatpush2.msra.mxu0 0.0
    %546 = vmatprep.subr.mxu0 0.0
    %547 = vmatpush2.msra.mxu0 0.0
    %548 = vmatprep.subr.mxu0 0.0
    %549 = vmatpush2.msra.mxu0 0.0
    %550 = vmatprep.subr.mxu0 0.0
    %551 = vmatpush2.msra.mxu0 0.0
    %552 = vmatprep.subr.mxu0 0.0
    %553 = vmatpush2.msra.mxu0 0.0
    %554 = vmatprep.subr.mxu0 0.0
    %555 = vmatpush2.msra.mxu0 0.0
    %556 = vmatprep.subr.mxu0 0.0
    %557 = vmatpush2.msra.mxu0 0.0
    %558 = vmatprep.subr.mxu0 0.0
    %559 = vmatpush2.msra.mxu0 0.0
    %560 = vmatprep.subr.mxu0 0.0
    %561 = vmatpush2.msra.mxu0 0.0
    %562 = vmatprep.subr.mxu0 0.0
    %563 = vmatpush2.msra.mxu0 0.0
    %564 = vmatprep.subr.mxu0 0.0
    %565 = vmatpush2.msra.mxu0 0.0
    %566 = vmatprep.subr.mxu0 0.0
    %567 = vmatpush2.msra.mxu0 0.0
    %568 = vmatprep.subr.mxu0 0.0
    %569 = vmatpush2.msra.mxu0 0.0
    %570 = vmatprep.subr.mxu0 0.0
    %571 = vmatpush2.msra.mxu0 0.0
    %572 = vmatprep.subr.mxu0 0.0
    %573 = vmatpush2.msra.mxu0 0.0
    %574 = vmatprep.subr.mxu0 0.0
    %575 = vmatpush2.msra.mxu0 0.0
    %576 = vmatprep.mubr.f32.mxu0 0.0
    %577 = vmatmul.mubr.f32.gmra.mxu0 %v510
    %v578 = vpop.f32.mrf.mxu0
    %v579 = vadd.f32 0.0, %v578
    %v580 = vpop.f32.mrf.mxu0
    %581 = vdwg.mxu0
    %v582 = vadd.f32 %v509, %v579
    %v583 = vld [vmem:[#allocation5 + $0xc] sm:$0x3]
    %v584 = vsel %vm292, %v506, 0
    %586 = vmatprep.subr.mxu0 0.0
    %587 = vmatpush1.msra.mxu0 0.0
    %588 = vmatprep.subr.mxu0 0.0
    %589 = vmatpush1.msra.mxu0 0.0
    %590 = vmatprep.subr.mxu0 0.0
    %591 = vmatpush1.msra.mxu0 0.0
    %592 = vmatprep.subr.mxu0 0.0
    %593 = vmatpush1.msra.mxu0 0.0
    %594 = vmatprep.subr.mxu0 0.0
    %595 = vmatpush1.msra.mxu0 0.0
    %596 = vmatprep.subr.mxu0 0.0
    %597 = vmatpush1.msra.mxu0 0.0
    %598 = vmatprep.subr.mxu0 0.0
    %599 = vmatpush1.msra.mxu0 0.0
    %600 = vmatprep.subr.mxu0 0.0
    %601 = vmatpush1.msra.mxu0 0.0
    %602 = vmatprep.subr.mxu0 0.0
    %603 = vmatpush1.msra.mxu0 0.0
    %604 = vmatprep.subr.mxu0 0.0
    %605 = vmatpush1.msra.mxu0 0.0
    %606 = vmatprep.subr.mxu0 0.0
    %607 = vmatpush1.msra.mxu0 0.0
    %608 = vmatprep.subr.mxu0 0.0
    %609 = vmatpush1.msra.mxu0 0.0
    %610 = vmatprep.subr.mxu0 0.0
    %611 = vmatpush1.msra.mxu0 %v284
    %612 = vmatprep.subr.mxu0 0.0
    %613 = vmatpush1.msra.mxu0 %v283
    %614 = vmatprep.subr.mxu0 0.0
    %615 = vmatpush1.msra.mxu0 %v282
    %616 = vmatprep.subr.mxu0 0.0
    %617 = vmatpush1.msra.mxu0 %v281
    %618 = vmatprep.subr.mxu0 0.0
    %619 = vmatpush2.msra.mxu0 0.0
    %620 = vmatprep.subr.mxu0 0.0
    %621 = vmatpush2.msra.mxu0 0.0
    %622 = vmatprep.subr.mxu0 0.0
    %623 = vmatpush2.msra.mxu0 0.0
    %624 = vmatprep.subr.mxu0 0.0
    %625 = vmatpush2.msra.mxu0 0.0
    %626 = vmatprep.subr.mxu0 0.0
    %627 = vmatpush2.msra.mxu0 0.0
    %628 = vmatprep.subr.mxu0 0.0
    %629 = vmatpush2.msra.mxu0 0.0
    %630 = vmatprep.subr.mxu0 0.0
    %631 = vmatpush2.msra.mxu0 0.0
    %632 = vmatprep.subr.mxu0 0.0
    %633 = vmatpush2.msra.mxu0 0.0
    %634 = vmatprep.subr.mxu0 0.0
    %635 = vmatpush2.msra.mxu0 0.0
    %636 = vmatprep.subr.mxu0 0.0
    %637 = vmatpush2.msra.mxu0 0.0
    %638 = vmatprep.subr.mxu0 0.0
    %639 = vmatpush2.msra.mxu0 0.0
    %640 = vmatprep.subr.mxu0 0.0
    %641 = vmatpush2.msra.mxu0 0.0
    %642 = vmatprep.subr.mxu0 0.0
    %643 = vmatpush2.msra.mxu0 0.0
    %644 = vmatprep.subr.mxu0 0.0
    %645 = vmatpush2.msra.mxu0 0.0
    %646 = vmatprep.subr.mxu0 0.0
    %647 = vmatpush2.msra.mxu0 0.0
    %648 = vmatprep.subr.mxu0 0.0
    %649 = vmatpush2.msra.mxu0 0.0
    %650 = vmatprep.mubr.f32.mxu0 0.0
    %651 = vmatmul.mubr.f32.gmra.mxu0 %v584
    %v652 = vpop.f32.mrf.mxu0
    %v653 = vadd.f32 0.0, %v652
    %v654 = vpop.f32.mrf.mxu0
    %655 = vdwg.mxu0
    %v656 = vadd.f32 %v583, %v653
    %v657 = vxor.u32 %v582, 2147483648
    %v658 = vmul.f32 %v657, 1.442695
    %v659 = vpow.pop %v658
    %v660 = vadd.f32 %v659, 1.0
    %v661 = vrcp.pop %v660
    %v662 = vmul.f32 1.0, %v661
    %v663 = vtanh.pop %v582
    %v664 = vmul.f32 %v662, %v463
    %666 = vrot.lane.b32.xlu0 %v663, 64
    %v667 = vpop.permute.xlu0 %666
    %v669 = vmul.f32 %v662, %v667
    %671 = vrot.lane.b32.xlu0 %v669, 32
    %v672 = vpop.permute.xlu0 %671
    %v674 = vadd.f32 %v664, %v672
    %v675 = vtanh.pop %v674
    %677 = vrot.lane.b32.xlu0 %v675, 64
    %v678 = vpop.permute.xlu0 %677
    %v680 = vmul.f32 %v662, %v678
    %v681 = vxor.u32 %v656, 2147483648
    %v682 = vmul.f32 %v681, 1.442695
    %v683 = vpow.pop %v682
    %v684 = vadd.f32 %v683, 1.0
    %v685 = vrcp.pop %v684
    %v686 = vmul.f32 1.0, %v685
    %v687 = vtanh.pop %v656
    %v688 = vmul.f32 %v686, %v491
    %690 = vrot.lane.b32.xlu0 %v687, 64
    %v691 = vpop.permute.xlu0 %690
    %v693 = vmul.f32 %v686, %v691
    %695 = vrot.lane.b32.xlu0 %v693, 32
    %v696 = vpop.permute.xlu0 %695
    %v698 = vadd.f32 %v688, %v696
    %v699 = vtanh.pop %v698
    %701 = vrot.lane.b32.xlu0 %v699, 64
    %v702 = vpop.permute.xlu0 %701
    %v704 = vmul.f32 %v686, %v702
    %706 = vrot.lane.b32.xlu0 %v680, 32
    %v707 = vpop.permute.xlu0 %706
    %709 = vst.msk [vmem:[#allocation2 + $0x2] sm:$0x3] %vm502, %v707
    %711 = vrot.lane.b32.xlu0 %v704, 32
    %v712 = vpop.permute.xlu0 %711
    %714 = vst.msk [vmem:[#allocation3 + $0xc] sm:$0x3] %vm502, %v712
    %v715 = vld [vmem:[#allocation4 + $0x4] sm:$0x3]
    %v716 = vsel %vm292, %v707, 0
    %718 = vmatprep.subr.mxu0 0.0
    %719 = vmatpush1.msra.mxu0 0.0
    %720 = vmatprep.subr.mxu0 0.0
    %721 = vmatpush1.msra.mxu0 0.0
    %722 = vmatprep.subr.mxu0 0.0
    %723 = vmatpush1.msra.mxu0 0.0
    %724 = vmatprep.subr.mxu0 0.0
    %725 = vmatpush1.msra.mxu0 0.0
    %726 = vmatprep.subr.mxu0 0.0
    %727 = vmatpush1.msra.mxu0 0.0
    %728 = vmatprep.subr.mxu0 0.0
    %729 = vmatpush1.msra.mxu0 0.0
    %730 = vmatprep.subr.mxu0 0.0
    %731 = vmatpush1.msra.mxu0 0.0
    %732 = vmatprep.subr.mxu0 0.0
    %733 = vmatpush1.msra.mxu0 0.0
    %734 = vmatprep.subr.mxu0 0.0
    %735 = vmatpush1.msra.mxu0 0.0
    %736 = vmatprep.subr.mxu0 0.0
    %737 = vmatpush1.msra.mxu0 0.0
    %738 = vmatprep.subr.mxu0 0.0
    %739 = vmatpush1.msra.mxu0 0.0
    %740 = vmatprep.subr.mxu0 0.0
    %741 = vmatpush1.msra.mxu0 0.0
    %742 = vmatprep.subr.mxu0 0.0
    %743 = vmatpush1.msra.mxu0 %v279
    %744 = vmatprep.subr.mxu0 0.0
    %745 = vmatpush1.msra.mxu0 %v278
    %746 = vmatprep.subr.mxu0 0.0
    %747 = vmatpush1.msra.mxu0 %v277
    %748 = vmatprep.subr.mxu0 0.0
    %749 = vmatpush1.msra.mxu0 %v276
    %750 = vmatprep.subr.mxu0 0.0
    %751 = vmatpush2.msra.mxu0 0.0
    %752 = vmatprep.subr.mxu0 0.0
    %753 = vmatpush2.msra.mxu0 0.0
    %754 = vmatprep.subr.mxu0 0.0
    %755 = vmatpush2.msra.mxu0 0.0
    %756 = vmatprep.subr.mxu0 0.0
    %757 = vmatpush2.msra.mxu0 0.0
    %758 = vmatprep.subr.mxu0 0.0
    %759 = vmatpush2.msra.mxu0 0.0
    %760 = vmatprep.subr.mxu0 0.0
    %761 = vmatpush2.msra.mxu0 0.0
    %762 = vmatprep.subr.mxu0 0.0
    %763 = vmatpush2.msra.mxu0 0.0
    %764 = vmatprep.subr.mxu0 0.0
    %765 = vmatpush2.msra.mxu0 0.0
    %766 = vmatprep.subr.mxu0 0.0
    %767 = vmatpush2.msra.mxu0 0.0
    %768 = vmatprep.subr.mxu0 0.0
    %769 = vmatpush2.msra.mxu0 0.0
    %770 = vmatprep.subr.mxu0 0.0
    %771 = vmatpush2.msra.mxu0 0.0
    %772 = vmatprep.subr.mxu0 0.0
    %773 = vmatpush2.msra.mxu0 0.0
    %774 = vmatprep.subr.mxu0 0.0
    %775 = vmatpush2.msra.mxu0 0.0
    %776 = vmatprep.subr.mxu0 0.0
    %777 = vmatpush2.msra.mxu0 0.0
    %778 = vmatprep.subr.mxu0 0.0
    %779 = vmatpush2.msra.mxu0 0.0
    %780 = vmatprep.subr.mxu0 0.0
    %781 = vmatpush2.msra.mxu0 0.0
    %782 = vmatprep.mubr.f32.mxu0 0.0
    %783 = vmatmul.mubr.f32.gmra.mxu0 %v716
    %v784 = vpop.f32.mrf.mxu0
    %v785 = vadd.f32 0.0, %v784
    %v786 = vpop.f32.mrf.mxu0
    %787 = vdwg.mxu0
    %v788 = vadd.f32 %v715, %v785
    %v789 = vld [vmem:[#allocation5 + $0xa] sm:$0x3]
    %v790 = vsel %vm292, %v712, 0
    %792 = vmatprep.subr.mxu0 0.0
    %793 = vmatpush1.msra.mxu0 0.0
    %794 = vmatprep.subr.mxu0 0.0
    %795 = vmatpush1.msra.mxu0 0.0
    %796 = vmatprep.subr.mxu0 0.0
    %797 = vmatpush1.msra.mxu0 0.0
    %798 = vmatprep.subr.mxu0 0.0
    %799 = vmatpush1.msra.mxu0 0.0
    %800 = vmatprep.subr.mxu0 0.0
    %801 = vmatpush1.msra.mxu0 0.0
    %802 = vmatprep.subr.mxu0 0.0
    %803 = vmatpush1.msra.mxu0 0.0
    %804 = vmatprep.subr.mxu0 0.0
    %805 = vmatpush1.msra.mxu0 0.0
    %806 = vmatprep.subr.mxu0 0.0
    %807 = vmatpush1.msra.mxu0 0.0
    %808 = vmatprep.subr.mxu0 0.0
    %809 = vmatpush1.msra.mxu0 0.0
    %810 = vmatprep.subr.mxu0 0.0
    %811 = vmatpush1.msra.mxu0 0.0
    %812 = vmatprep.subr.mxu0 0.0
    %813 = vmatpush1.msra.mxu0 0.0
    %814 = vmatprep.subr.mxu0 0.0
    %815 = vmatpush1.msra.mxu0 0.0
    %816 = vmatprep.subr.mxu0 0.0
    %817 = vmatpush1.msra.mxu0 %v284
    %818 = vmatprep.subr.mxu0 0.0
    %819 = vmatpush1.msra.mxu0 %v283
    %820 = vmatprep.subr.mxu0 0.0
    %821 = vmatpush1.msra.mxu0 %v282
    %822 = vmatprep.subr.mxu0 0.0
    %823 = vmatpush1.msra.mxu0 %v281
    %824 = vmatprep.subr.mxu0 0.0
    %825 = vmatpush2.msra.mxu0 0.0
    %826 = vmatprep.subr.mxu0 0.0
    %827 = vmatpush2.msra.mxu0 0.0
    %828 = vmatprep.subr.mxu0 0.0
    %829 = vmatpush2.msra.mxu0 0.0
    %830 = vmatprep.subr.mxu0 0.0
    %831 = vmatpush2.msra.mxu0 0.0
    %832 = vmatprep.subr.mxu0 0.0
    %833 = vmatpush2.msra.mxu0 0.0
    %834 = vmatprep.subr.mxu0 0.0
    %835 = vmatpush2.msra.mxu0 0.0
    %836 = vmatprep.subr.mxu0 0.0
    %837 = vmatpush2.msra.mxu0 0.0
    %838 = vmatprep.subr.mxu0 0.0
    %839 = vmatpush2.msra.mxu0 0.0
    %840 = vmatprep.subr.mxu0 0.0
    %841 = vmatpush2.msra.mxu0 0.0
    %842 = vmatprep.subr.mxu0 0.0
    %843 = vmatpush2.msra.mxu0 0.0
    %844 = vmatprep.subr.mxu0 0.0
    %845 = vmatpush2.msra.mxu0 0.0
    %846 = vmatprep.subr.mxu0 0.0
    %847 = vmatpush2.msra.mxu0 0.0
    %848 = vmatprep.subr.mxu0 0.0
    %849 = vmatpush2.msra.mxu0 0.0
    %850 = vmatprep.subr.mxu0 0.0
    %851 = vmatpush2.msra.mxu0 0.0
    %852 = vmatprep.subr.mxu0 0.0
    %853 = vmatpush2.msra.mxu0 0.0
    %854 = vmatprep.subr.mxu0 0.0
    %855 = vmatpush2.msra.mxu0 0.0
    %856 = vmatprep.mubr.f32.mxu0 0.0
    %857 = vmatmul.mubr.f32.gmra.mxu0 %v790
    %v858 = vpop.f32.mrf.mxu0
    %v859 = vadd.f32 0.0, %v858
    %v860 = vpop.f32.mrf.mxu0
    %861 = vdwg.mxu0
    %v862 = vadd.f32 %v789, %v859
    %v863 = vxor.u32 %v788, 2147483648
    %v864 = vmul.f32 %v863, 1.442695
    %v865 = vpow.pop %v864
    %v866 = vadd.f32 %v865, 1.0
    %v867 = vrcp.pop %v866
    %v868 = vmul.f32 1.0, %v867
    %v869 = vtanh.pop %v788
    %v870 = vmul.f32 %v868, %v674
    %872 = vrot.lane.b32.xlu0 %v869, 64
    %v873 = vpop.permute.xlu0 %872
    %v875 = vmul.f32 %v868, %v873
    %877 = vrot.lane.b32.xlu0 %v875, 32
    %v878 = vpop.permute.xlu0 %877
    %v880 = vadd.f32 %v870, %v878
    %v881 = vtanh.pop %v880
    %883 = vrot.lane.b32.xlu0 %v881, 64
    %v884 = vpop.permute.xlu0 %883
    %v886 = vmul.f32 %v868, %v884
    %v887 = vxor.u32 %v862, 2147483648
    %v888 = vmul.f32 %v887, 1.442695
    %v889 = vpow.pop %v888
    %v890 = vadd.f32 %v889, 1.0
    %v891 = vrcp.pop %v890
    %v892 = vmul.f32 1.0, %v891
    %v893 = vtanh.pop %v862
    %v894 = vmul.f32 %v892, %v698
    %896 = vrot.lane.b32.xlu0 %v893, 64
    %v897 = vpop.permute.xlu0 %896
    %v899 = vmul.f32 %v892, %v897
    %901 = vrot.lane.b32.xlu0 %v899, 32
    %v902 = vpop.permute.xlu0 %901
    %v904 = vadd.f32 %v894, %v902
    %v905 = vtanh.pop %v904
    %907 = vrot.lane.b32.xlu0 %v905, 64
    %v908 = vpop.permute.xlu0 %907
    %v910 = vmul.f32 %v892, %v908
    %912 = vrot.lane.b32.xlu0 %v886, 32
    %v913 = vpop.permute.xlu0 %912
    %915 = vst.msk [vmem:[#allocation2 + $0x4] sm:$0x3] %vm502, %v913
    %917 = vrot.lane.b32.xlu0 %v910, 32
    %v918 = vpop.permute.xlu0 %917
    %920 = vst.msk [vmem:[#allocation3 + $0xa] sm:$0x3] %vm502, %v918
    %v921 = vld [vmem:[#allocation4 + $0x6] sm:$0x3]
    %v922 = vsel %vm292, %v913, 0
    %924 = vmatprep.subr.mxu0 0.0
    %925 = vmatpush1.msra.mxu0 0.0
    %926 = vmatprep.subr.mxu0 0.0
    %927 = vmatpush1.msra.mxu0 0.0
    %928 = vmatprep.subr.mxu0 0.0
    %929 = vmatpush1.msra.mxu0 0.0
    %930 = vmatprep.subr.mxu0 0.0
    %931 = vmatpush1.msra.mxu0 0.0
    %932 = vmatprep.subr.mxu0 0.0
    %933 = vmatpush1.msra.mxu0 0.0
    %934 = vmatprep.subr.mxu0 0.0
    %935 = vmatpush1.msra.mxu0 0.0
    %936 = vmatprep.subr.mxu0 0.0
    %937 = vmatpush1.msra.mxu0 0.0
    %938 = vmatprep.subr.mxu0 0.0
    %939 = vmatpush1.msra.mxu0 0.0
    %940 = vmatprep.subr.mxu0 0.0
    %941 = vmatpush1.msra.mxu0 0.0
    %942 = vmatprep.subr.mxu0 0.0
    %943 = vmatpush1.msra.mxu0 0.0
    %944 = vmatprep.subr.mxu0 0.0
    %945 = vmatpush1.msra.mxu0 0.0
    %946 = vmatprep.subr.mxu0 0.0
    %947 = vmatpush1.msra.mxu0 0.0
    %948 = vmatprep.subr.mxu0 0.0
    %949 = vmatpush1.msra.mxu0 %v279
    %950 = vmatprep.subr.mxu0 0.0
    %951 = vmatpush1.msra.mxu0 %v278
    %952 = vmatprep.subr.mxu0 0.0
    %953 = vmatpush1.msra.mxu0 %v277
    %954 = vmatprep.subr.mxu0 0.0
    %955 = vmatpush1.msra.mxu0 %v276
    %956 = vmatprep.subr.mxu0 0.0
    %957 = vmatpush2.msra.mxu0 0.0
    %958 = vmatprep.subr.mxu0 0.0
    %959 = vmatpush2.msra.mxu0 0.0
    %960 = vmatprep.subr.mxu0 0.0
    %961 = vmatpush2.msra.mxu0 0.0
    %962 = vmatprep.subr.mxu0 0.0
    %963 = vmatpush2.msra.mxu0 0.0
    %964 = vmatprep.subr.mxu0 0.0
    %965 = vmatpush2.msra.mxu0 0.0
    %966 = vmatprep.subr.mxu0 0.0
    %967 = vmatpush2.msra.mxu0 0.0
    %968 = vmatprep.subr.mxu0 0.0
    %969 = vmatpush2.msra.mxu0 0.0
    %970 = vmatprep.subr.mxu0 0.0
    %971 = vmatpush2.msra.mxu0 0.0
    %972 = vmatprep.subr.mxu0 0.0
    %973 = vmatpush2.msra.mxu0 0.0
    %974 = vmatprep.subr.mxu0 0.0
    %975 = vmatpush2.msra.mxu0 0.0
    %976 = vmatprep.subr.mxu0 0.0
    %977 = vmatpush2.msra.mxu0 0.0
    %978 = vmatprep.subr.mxu0 0.0
    %979 = vmatpush2.msra.mxu0 0.0
    %980 = vmatprep.subr.mxu0 0.0
    %981 = vmatpush2.msra.mxu0 0.0
    %982 = vmatprep.subr.mxu0 0.0
    %983 = vmatpush2.msra.mxu0 0.0
    %984 = vmatprep.subr.mxu0 0.0
    %985 = vmatpush2.msra.mxu0 0.0
    %986 = vmatprep.subr.mxu0 0.0
    %987 = vmatpush2.msra.mxu0 0.0
    %988 = vmatprep.mubr.f32.mxu0 0.0
    %989 = vmatmul.mubr.f32.gmra.mxu0 %v922
    %v990 = vpop.f32.mrf.mxu0
    %v991 = vadd.f32 0.0, %v990
    %v992 = vpop.f32.mrf.mxu0
    %993 = vdwg.mxu0
    %v994 = vadd.f32 %v921, %v991
    %v995 = vld [vmem:[#allocation5 + $0x8] sm:$0x3]
    %v996 = vsel %vm292, %v918, 0
    %998 = vmatprep.subr.mxu0 0.0
    %999 = vmatpush1.msra.mxu0 0.0
    %1000 = vmatprep.subr.mxu0 0.0
    %1001 = vmatpush1.msra.mxu0 0.0
    %1002 = vmatprep.subr.mxu0 0.0
    %1003 = vmatpush1.msra.mxu0 0.0
    %1004 = vmatprep.subr.mxu0 0.0
    %1005 = vmatpush1.msra.mxu0 0.0
    %1006 = vmatprep.subr.mxu0 0.0
    %1007 = vmatpush1.msra.mxu0 0.0
    %1008 = vmatprep.subr.mxu0 0.0
    %1009 = vmatpush1.msra.mxu0 0.0
    %1010 = vmatprep.subr.mxu0 0.0
    %1011 = vmatpush1.msra.mxu0 0.0
    %1012 = vmatprep.subr.mxu0 0.0
    %1013 = vmatpush1.msra.mxu0 0.0
    %1014 = vmatprep.subr.mxu0 0.0
    %1015 = vmatpush1.msra.mxu0 0.0
    %1016 = vmatprep.subr.mxu0 0.0
    %1017 = vmatpush1.msra.mxu0 0.0
    %1018 = vmatprep.subr.mxu0 0.0
    %1019 = vmatpush1.msra.mxu0 0.0
    %1020 = vmatprep.subr.mxu0 0.0
    %1021 = vmatpush1.msra.mxu0 0.0
    %1022 = vmatprep.subr.mxu0 0.0
    %1023 = vmatpush1.msra.mxu0 %v284
    %1024 = vmatprep.subr.mxu0 0.0
    %1025 = vmatpush1.msra.mxu0 %v283
    %1026 = vmatprep.subr.mxu0 0.0
    %1027 = vmatpush1.msra.mxu0 %v282
    %1028 = vmatprep.subr.mxu0 0.0
    %1029 = vmatpush1.msra.mxu0 %v281
    %1030 = vmatprep.subr.mxu0 0.0
    %1031 = vmatpush2.msra.mxu0 0.0
    %1032 = vmatprep.subr.mxu0 0.0
    %1033 = vmatpush2.msra.mxu0 0.0
    %1034 = vmatprep.subr.mxu0 0.0
    %1035 = vmatpush2.msra.mxu0 0.0
    %1036 = vmatprep.subr.mxu0 0.0
    %1037 = vmatpush2.msra.mxu0 0.0
    %1038 = vmatprep.subr.mxu0 0.0
    %1039 = vmatpush2.msra.mxu0 0.0
    %1040 = vmatprep.subr.mxu0 0.0
    %1041 = vmatpush2.msra.mxu0 0.0
    %1042 = vmatprep.subr.mxu0 0.0
    %1043 = vmatpush2.msra.mxu0 0.0
    %1044 = vmatprep.subr.mxu0 0.0
    %1045 = vmatpush2.msra.mxu0 0.0
    %1046 = vmatprep.subr.mxu0 0.0
    %1047 = vmatpush2.msra.mxu0 0.0
    %1048 = vmatprep.subr.mxu0 0.0
    %1049 = vmatpush2.msra.mxu0 0.0
    %1050 = vmatprep.subr.mxu0 0.0
    %1051 = vmatpush2.msra.mxu0 0.0
    %1052 = vmatprep.subr.mxu0 0.0
    %1053 = vmatpush2.msra.mxu0 0.0
    %1054 = vmatprep.subr.mxu0 0.0
    %1055 = vmatpush2.msra.mxu0 0.0
    %1056 = vmatprep.subr.mxu0 0.0
    %1057 = vmatpush2.msra.mxu0 0.0
    %1058 = vmatprep.subr.mxu0 0.0
    %1059 = vmatpush2.msra.mxu0 0.0
    %1060 = vmatprep.subr.mxu0 0.0
    %1061 = vmatpush2.msra.mxu0 0.0
    %1062 = vmatprep.mubr.f32.mxu0 0.0
    %1063 = vmatmul.mubr.f32.gmra.mxu0 %v996
    %v1064 = vpop.f32.mrf.mxu0
    %v1065 = vadd.f32 0.0, %v1064
    %v1066 = vpop.f32.mrf.mxu0
    %1067 = vdwg.mxu0
    %v1068 = vadd.f32 %v995, %v1065
    %v1069 = vxor.u32 %v994, 2147483648
    %v1070 = vmul.f32 %v1069, 1.442695
    %v1071 = vpow.pop %v1070
    %v1072 = vadd.f32 %v1071, 1.0
    %v1073 = vrcp.pop %v1072
    %v1074 = vmul.f32 1.0, %v1073
    %v1075 = vtanh.pop %v994
    %v1076 = vmul.f32 %v1074, %v880
    %1078 = vrot.lane.b32.xlu0 %v1075, 64
    %v1079 = vpop.permute.xlu0 %1078
    %v1081 = vmul.f32 %v1074, %v1079
    %1083 = vrot.lane.b32.xlu0 %v1081, 32
    %v1084 = vpop.permute.xlu0 %1083
    %v1086 = vadd.f32 %v1076, %v1084
    %v1087 = vtanh.pop %v1086
    %1089 = vrot.lane.b32.xlu0 %v1087, 64
    %v1090 = vpop.permute.xlu0 %1089
    %v1092 = vmul.f32 %v1074, %v1090
    %v1093 = vxor.u32 %v1068, 2147483648
    %v1094 = vmul.f32 %v1093, 1.442695
    %v1095 = vpow.pop %v1094
    %v1096 = vadd.f32 %v1095, 1.0
    %v1097 = vrcp.pop %v1096
    %v1098 = vmul.f32 1.0, %v1097
    %v1099 = vtanh.pop %v1068
    %v1100 = vmul.f32 %v1098, %v904
    %1102 = vrot.lane.b32.xlu0 %v1099, 64
    %v1103 = vpop.permute.xlu0 %1102
    %v1105 = vmul.f32 %v1098, %v1103
    %1107 = vrot.lane.b32.xlu0 %v1105, 32
    %v1108 = vpop.permute.xlu0 %1107
    %v1110 = vadd.f32 %v1100, %v1108
    %v1111 = vtanh.pop %v1110
    %1113 = vrot.lane.b32.xlu0 %v1111, 64
    %v1114 = vpop.permute.xlu0 %1113
    %v1116 = vmul.f32 %v1098, %v1114
    %1118 = vrot.lane.b32.xlu0 %v1092, 32
    %v1119 = vpop.permute.xlu0 %1118
    %1121 = vst.msk [vmem:[#allocation2 + $0x6] sm:$0x3] %vm502, %v1119
    %1123 = vrot.lane.b32.xlu0 %v1116, 32
    %v1124 = vpop.permute.xlu0 %1123
    %1126 = vst.msk [vmem:[#allocation3 + $0x8] sm:$0x3] %vm502, %v1124
    %v1127 = vld [vmem:[#allocation4 + $0x8] sm:$0x3]
    %v1128 = vsel %vm292, %v1119, 0
    %1130 = vmatprep.subr.mxu0 0.0
    %1131 = vmatpush1.msra.mxu0 0.0
    %1132 = vmatprep.subr.mxu0 0.0
    %1133 = vmatpush1.msra.mxu0 0.0
    %1134 = vmatprep.subr.mxu0 0.0
    %1135 = vmatpush1.msra.mxu0 0.0
    %1136 = vmatprep.subr.mxu0 0.0
    %1137 = vmatpush1.msra.mxu0 0.0
    %1138 = vmatprep.subr.mxu0 0.0
    %1139 = vmatpush1.msra.mxu0 0.0
    %1140 = vmatprep.subr.mxu0 0.0
    %1141 = vmatpush1.msra.mxu0 0.0
    %1142 = vmatprep.subr.mxu0 0.0
    %1143 = vmatpush1.msra.mxu0 0.0
    %1144 = vmatprep.subr.mxu0 0.0
    %1145 = vmatpush1.msra.mxu0 0.0
    %1146 = vmatprep.subr.mxu0 0.0
    %1147 = vmatpush1.msra.mxu0 0.0
    %1148 = vmatprep.subr.mxu0 0.0
    %1149 = vmatpush1.msra.mxu0 0.0
    %1150 = vmatprep.subr.mxu0 0.0
    %1151 = vmatpush1.msra.mxu0 0.0
    %1152 = vmatprep.subr.mxu0 0.0
    %1153 = vmatpush1.msra.mxu0 0.0
    %1154 = vmatprep.subr.mxu0 0.0
    %1155 = vmatpush1.msra.mxu0 %v279
    %1156 = vmatprep.subr.mxu0 0.0
    %1157 = vmatpush1.msra.mxu0 %v278
    %1158 = vmatprep.subr.mxu0 0.0
    %1159 = vmatpush1.msra.mxu0 %v277
    %1160 = vmatprep.subr.mxu0 0.0
    %1161 = vmatpush1.msra.mxu0 %v276
    %1162 = vmatprep.subr.mxu0 0.0
    %1163 = vmatpush2.msra.mxu0 0.0
    %1164 = vmatprep.subr.mxu0 0.0
    %1165 = vmatpush2.msra.mxu0 0.0
    %1166 = vmatprep.subr.mxu0 0.0
    %1167 = vmatpush2.msra.mxu0 0.0
    %1168 = vmatprep.subr.mxu0 0.0
    %1169 = vmatpush2.msra.mxu0 0.0
    %1170 = vmatprep.subr.mxu0 0.0
    %1171 = vmatpush2.msra.mxu0 0.0
    %1172 = vmatprep.subr.mxu0 0.0
    %1173 = vmatpush2.msra.mxu0 0.0
    %1174 = vmatprep.subr.mxu0 0.0
    %1175 = vmatpush2.msra.mxu0 0.0
    %1176 = vmatprep.subr.mxu0 0.0
    %1177 = vmatpush2.msra.mxu0 0.0
    %1178 = vmatprep.subr.mxu0 0.0
    %1179 = vmatpush2.msra.mxu0 0.0
    %1180 = vmatprep.subr.mxu0 0.0
    %1181 = vmatpush2.msra.mxu0 0.0
    %1182 = vmatprep.subr.mxu0 0.0
    %1183 = vmatpush2.msra.mxu0 0.0
    %1184 = vmatprep.subr.mxu0 0.0
    %1185 = vmatpush2.msra.mxu0 0.0
    %1186 = vmatprep.subr.mxu0 0.0
    %1187 = vmatpush2.msra.mxu0 0.0
    %1188 = vmatprep.subr.mxu0 0.0
    %1189 = vmatpush2.msra.mxu0 0.0
    %1190 = vmatprep.subr.mxu0 0.0
    %1191 = vmatpush2.msra.mxu0 0.0
    %1192 = vmatprep.subr.mxu0 0.0
    %1193 = vmatpush2.msra.mxu0 0.0
    %1194 = vmatprep.mubr.f32.mxu0 0.0
    %1195 = vmatmul.mubr.f32.gmra.mxu0 %v1128
    %v1196 = vpop.f32.mrf.mxu0
    %v1197 = vadd.f32 0.0, %v1196
    %v1198 = vpop.f32.mrf.mxu0
    %1199 = vdwg.mxu0
    %v1200 = vadd.f32 %v1127, %v1197
    %v1201 = vld [vmem:[#allocation5 + $0x6] sm:$0x3]
    %v1202 = vsel %vm292, %v1124, 0
    %1204 = vmatprep.subr.mxu0 0.0
    %1205 = vmatpush1.msra.mxu0 0.0
    %1206 = vmatprep.subr.mxu0 0.0
    %1207 = vmatpush1.msra.mxu0 0.0
    %1208 = vmatprep.subr.mxu0 0.0
    %1209 = vmatpush1.msra.mxu0 0.0
    %1210 = vmatprep.subr.mxu0 0.0
    %1211 = vmatpush1.msra.mxu0 0.0
    %1212 = vmatprep.subr.mxu0 0.0
    %1213 = vmatpush1.msra.mxu0 0.0
    %1214 = vmatprep.subr.mxu0 0.0
    %1215 = vmatpush1.msra.mxu0 0.0
    %1216 = vmatprep.subr.mxu0 0.0
    %1217 = vmatpush1.msra.mxu0 0.0
    %1218 = vmatprep.subr.mxu0 0.0
    %1219 = vmatpush1.msra.mxu0 0.0
    %1220 = vmatprep.subr.mxu0 0.0
    %1221 = vmatpush1.msra.mxu0 0.0
    %1222 = vmatprep.subr.mxu0 0.0
    %1223 = vmatpush1.msra.mxu0 0.0
    %1224 = vmatprep.subr.mxu0 0.0
    %1225 = vmatpush1.msra.mxu0 0.0
    %1226 = vmatprep.subr.mxu0 0.0
    %1227 = vmatpush1.msra.mxu0 0.0
    %1228 = vmatprep.subr.mxu0 0.0
    %1229 = vmatpush1.msra.mxu0 %v284
    %1230 = vmatprep.subr.mxu0 0.0
    %1231 = vmatpush1.msra.mxu0 %v283
    %1232 = vmatprep.subr.mxu0 0.0
    %1233 = vmatpush1.msra.mxu0 %v282
    %1234 = vmatprep.subr.mxu0 0.0
    %1235 = vmatpush1.msra.mxu0 %v281
    %1236 = vmatprep.subr.mxu0 0.0
    %1237 = vmatpush2.msra.mxu0 0.0
    %1238 = vmatprep.subr.mxu0 0.0
    %1239 = vmatpush2.msra.mxu0 0.0
    %1240 = vmatprep.subr.mxu0 0.0
    %1241 = vmatpush2.msra.mxu0 0.0
    %1242 = vmatprep.subr.mxu0 0.0
    %1243 = vmatpush2.msra.mxu0 0.0
    %1244 = vmatprep.subr.mxu0 0.0
    %1245 = vmatpush2.msra.mxu0 0.0
    %1246 = vmatprep.subr.mxu0 0.0
    %1247 = vmatpush2.msra.mxu0 0.0
    %1248 = vmatprep.subr.mxu0 0.0
    %1249 = vmatpush2.msra.mxu0 0.0
    %1250 = vmatprep.subr.mxu0 0.0
    %1251 = vmatpush2.msra.mxu0 0.0
    %1252 = vmatprep.subr.mxu0 0.0
    %1253 = vmatpush2.msra.mxu0 0.0
    %1254 = vmatprep.subr.mxu0 0.0
    %1255 = vmatpush2.msra.mxu0 0.0
    %1256 = vmatprep.subr.mxu0 0.0
    %1257 = vmatpush2.msra.mxu0 0.0
    %1258 = vmatprep.subr.mxu0 0.0
    %1259 = vmatpush2.msra.mxu0 0.0
    %1260 = vmatprep.subr.mxu0 0.0
    %1261 = vmatpush2.msra.mxu0 0.0
    %1262 = vmatprep.subr.mxu0 0.0
    %1263 = vmatpush2.msra.mxu0 0.0
    %1264 = vmatprep.subr.mxu0 0.0
    %1265 = vmatpush2.msra.mxu0 0.0
    %1266 = vmatprep.subr.mxu0 0.0
    %1267 = vmatpush2.msra.mxu0 0.0
    %1268 = vmatprep.mubr.f32.mxu0 0.0
    %1269 = vmatmul.mubr.f32.gmra.mxu0 %v1202
    %v1270 = vpop.f32.mrf.mxu0
    %v1271 = vadd.f32 0.0, %v1270
    %v1272 = vpop.f32.mrf.mxu0
    %1273 = vdwg.mxu0
    %v1274 = vadd.f32 %v1201, %v1271
    %v1275 = vxor.u32 %v1200, 2147483648
    %v1276 = vmul.f32 %v1275, 1.442695
    %v1277 = vpow.pop %v1276
    %v1278 = vadd.f32 %v1277, 1.0
    %v1279 = vrcp.pop %v1278
    %v1280 = vmul.f32 1.0, %v1279
    %v1281 = vtanh.pop %v1200
    %v1282 = vmul.f32 %v1280, %v1086
    %1284 = vrot.lane.b32.xlu0 %v1281, 64
    %v1285 = vpop.permute.xlu0 %1284
    %v1287 = vmul.f32 %v1280, %v1285
    %1289 = vrot.lane.b32.xlu0 %v1287, 32
    %v1290 = vpop.permute.xlu0 %1289
    %v1292 = vadd.f32 %v1282, %v1290
    %v1293 = vtanh.pop %v1292
    %1295 = vrot.lane.b32.xlu0 %v1293, 64
    %v1296 = vpop.permute.xlu0 %1295
    %v1298 = vmul.f32 %v1280, %v1296
    %v1299 = vxor.u32 %v1274, 2147483648
    %v1300 = vmul.f32 %v1299, 1.442695
    %v1301 = vpow.pop %v1300
    %v1302 = vadd.f32 %v1301, 1.0
    %v1303 = vrcp.pop %v1302
    %v1304 = vmul.f32 1.0, %v1303
    %v1305 = vtanh.pop %v1274
    %v1306 = vmul.f32 %v1304, %v1110
    %1308 = vrot.lane.b32.xlu0 %v1305, 64
    %v1309 = vpop.permute.xlu0 %1308
    %v1311 = vmul.f32 %v1304, %v1309
    %1313 = vrot.lane.b32.xlu0 %v1311, 32
    %v1314 = vpop.permute.xlu0 %1313
    %v1316 = vadd.f32 %v1306, %v1314
    %v1317 = vtanh.pop %v1316
    %1319 = vrot.lane.b32.xlu0 %v1317, 64
    %v1320 = vpop.permute.xlu0 %1319
    %v1322 = vmul.f32 %v1304, %v1320
    %1324 = vrot.lane.b32.xlu0 %v1298, 32
    %v1325 = vpop.permute.xlu0 %1324
    %1327 = vst.msk [vmem:[#allocation2 + $0x8] sm:$0x3] %vm502, %v1325
    %1329 = vrot.lane.b32.xlu0 %v1322, 32
    %v1330 = vpop.permute.xlu0 %1329
    %1332 = vst.msk [vmem:[#allocation3 + $0x6] sm:$0x3] %vm502, %v1330
    %v1333 = vld [vmem:[#allocation4 + $0xa] sm:$0x3]
    %v1334 = vsel %vm292, %v1325, 0
    %1336 = vmatprep.subr.mxu0 0.0
    %1337 = vmatpush1.msra.mxu0 0.0
    %1338 = vmatprep.subr.mxu0 0.0
    %1339 = vmatpush1.msra.mxu0 0.0
    %1340 = vmatprep.subr.mxu0 0.0
    %1341 = vmatpush1.msra.mxu0 0.0
    %1342 = vmatprep.subr.mxu0 0.0
    %1343 = vmatpush1.msra.mxu0 0.0
    %1344 = vmatprep.subr.mxu0 0.0
    %1345 = vmatpush1.msra.mxu0 0.0
    %1346 = vmatprep.subr.mxu0 0.0
    %1347 = vmatpush1.msra.mxu0 0.0
    %1348 = vmatprep.subr.mxu0 0.0
    %1349 = vmatpush1.msra.mxu0 0.0
    %1350 = vmatprep.subr.mxu0 0.0
    %1351 = vmatpush1.msra.mxu0 0.0
    %1352 = vmatprep.subr.mxu0 0.0
    %1353 = vmatpush1.msra.mxu0 0.0
    %1354 = vmatprep.subr.mxu0 0.0
    %1355 = vmatpush1.msra.mxu0 0.0
    %1356 = vmatprep.subr.mxu0 0.0
    %1357 = vmatpush1.msra.mxu0 0.0
    %1358 = vmatprep.subr.mxu0 0.0
    %1359 = vmatpush1.msra.mxu0 0.0
    %1360 = vmatprep.subr.mxu0 0.0
    %1361 = vmatpush1.msra.mxu0 %v279
    %1362 = vmatprep.subr.mxu0 0.0
    %1363 = vmatpush1.msra.mxu0 %v278
    %1364 = vmatprep.subr.mxu0 0.0
    %1365 = vmatpush1.msra.mxu0 %v277
    %1366 = vmatprep.subr.mxu0 0.0
    %1367 = vmatpush1.msra.mxu0 %v276
    %1368 = vmatprep.subr.mxu0 0.0
    %1369 = vmatpush2.msra.mxu0 0.0
    %1370 = vmatprep.subr.mxu0 0.0
    %1371 = vmatpush2.msra.mxu0 0.0
    %1372 = vmatprep.subr.mxu0 0.0
    %1373 = vmatpush2.msra.mxu0 0.0
    %1374 = vmatprep.subr.mxu0 0.0
    %1375 = vmatpush2.msra.mxu0 0.0
    %1376 = vmatprep.subr.mxu0 0.0
    %1377 = vmatpush2.msra.mxu0 0.0
    %1378 = vmatprep.subr.mxu0 0.0
    %1379 = vmatpush2.msra.mxu0 0.0
    %1380 = vmatprep.subr.mxu0 0.0
    %1381 = vmatpush2.msra.mxu0 0.0
    %1382 = vmatprep.subr.mxu0 0.0
    %1383 = vmatpush2.msra.mxu0 0.0
    %1384 = vmatprep.subr.mxu0 0.0
    %1385 = vmatpush2.msra.mxu0 0.0
    %1386 = vmatprep.subr.mxu0 0.0
    %1387 = vmatpush2.msra.mxu0 0.0
    %1388 = vmatprep.subr.mxu0 0.0
    %1389 = vmatpush2.msra.mxu0 0.0
    %1390 = vmatprep.subr.mxu0 0.0
    %1391 = vmatpush2.msra.mxu0 0.0
    %1392 = vmatprep.subr.mxu0 0.0
    %1393 = vmatpush2.msra.mxu0 0.0
    %1394 = vmatprep.subr.mxu0 0.0
    %1395 = vmatpush2.msra.mxu0 0.0
    %1396 = vmatprep.subr.mxu0 0.0
    %1397 = vmatpush2.msra.mxu0 0.0
    %1398 = vmatprep.subr.mxu0 0.0
    %1399 = vmatpush2.msra.mxu0 0.0
    %1400 = vmatprep.mubr.f32.mxu0 0.0
    %1401 = vmatmul.mubr.f32.gmra.mxu0 %v1334
    %v1402 = vpop.f32.mrf.mxu0
    %v1403 = vadd.f32 0.0, %v1402
    %v1404 = vpop.f32.mrf.mxu0
    %1405 = vdwg.mxu0
    %v1406 = vadd.f32 %v1333, %v1403
    %v1407 = vld [vmem:[#allocation5 + $0x4] sm:$0x3]
    %v1408 = vsel %vm292, %v1330, 0
    %1410 = vmatprep.subr.mxu0 0.0
    %1411 = vmatpush1.msra.mxu0 0.0
    %1412 = vmatprep.subr.mxu0 0.0
    %1413 = vmatpush1.msra.mxu0 0.0
    %1414 = vmatprep.subr.mxu0 0.0
    %1415 = vmatpush1.msra.mxu0 0.0
    %1416 = vmatprep.subr.mxu0 0.0
    %1417 = vmatpush1.msra.mxu0 0.0
    %1418 = vmatprep.subr.mxu0 0.0
    %1419 = vmatpush1.msra.mxu0 0.0
    %1420 = vmatprep.subr.mxu0 0.0
    %1421 = vmatpush1.msra.mxu0 0.0
    %1422 = vmatprep.subr.mxu0 0.0
    %1423 = vmatpush1.msra.mxu0 0.0
    %1424 = vmatprep.subr.mxu0 0.0
    %1425 = vmatpush1.msra.mxu0 0.0
    %1426 = vmatprep.subr.mxu0 0.0
    %1427 = vmatpush1.msra.mxu0 0.0
    %1428 = vmatprep.subr.mxu0 0.0
    %1429 = vmatpush1.msra.mxu0 0.0
    %1430 = vmatprep.subr.mxu0 0.0
    %1431 = vmatpush1.msra.mxu0 0.0
    %1432 = vmatprep.subr.mxu0 0.0
    %1433 = vmatpush1.msra.mxu0 0.0
    %1434 = vmatprep.subr.mxu0 0.0
    %1435 = vmatpush1.msra.mxu0 %v284
    %1436 = vmatprep.subr.mxu0 0.0
    %1437 = vmatpush1.msra.mxu0 %v283
    %1438 = vmatprep.subr.mxu0 0.0
    %1439 = vmatpush1.msra.mxu0 %v282
    %1440 = vmatprep.subr.mxu0 0.0
    %1441 = vmatpush1.msra.mxu0 %v281
    %1442 = vmatprep.subr.mxu0 0.0
    %1443 = vmatpush2.msra.mxu0 0.0
    %1444 = vmatprep.subr.mxu0 0.0
    %1445 = vmatpush2.msra.mxu0 0.0
    %1446 = vmatprep.subr.mxu0 0.0
    %1447 = vmatpush2.msra.mxu0 0.0
    %1448 = vmatprep.subr.mxu0 0.0
    %1449 = vmatpush2.msra.mxu0 0.0
    %1450 = vmatprep.subr.mxu0 0.0
    %1451 = vmatpush2.msra.mxu0 0.0
    %1452 = vmatprep.subr.mxu0 0.0
    %1453 = vmatpush2.msra.mxu0 0.0
    %1454 = vmatprep.subr.mxu0 0.0
    %1455 = vmatpush2.msra.mxu0 0.0
    %1456 = vmatprep.subr.mxu0 0.0
    %1457 = vmatpush2.msra.mxu0 0.0
    %1458 = vmatprep.subr.mxu0 0.0
    %1459 = vmatpush2.msra.mxu0 0.0
    %1460 = vmatprep.subr.mxu0 0.0
    %1461 = vmatpush2.msra.mxu0 0.0
    %1462 = vmatprep.subr.mxu0 0.0
    %1463 = vmatpush2.msra.mxu0 0.0
    %1464 = vmatprep.subr.mxu0 0.0
    %1465 = vmatpush2.msra.mxu0 0.0
    %1466 = vmatprep.subr.mxu0 0.0
    %1467 = vmatpush2.msra.mxu0 0.0
    %1468 = vmatprep.subr.mxu0 0.0
    %1469 = vmatpush2.msra.mxu0 0.0
    %1470 = vmatprep.subr.mxu0 0.0
    %1471 = vmatpush2.msra.mxu0 0.0
    %1472 = vmatprep.subr.mxu0 0.0
    %1473 = vmatpush2.msra.mxu0 0.0
    %1474 = vmatprep.mubr.f32.mxu0 0.0
    %1475 = vmatmul.mubr.f32.gmra.mxu0 %v1408
    %v1476 = vpop.f32.mrf.mxu0
    %v1477 = vadd.f32 0.0, %v1476
    %v1478 = vpop.f32.mrf.mxu0
    %1479 = vdwg.mxu0
    %v1480 = vadd.f32 %v1407, %v1477
    %v1481 = vxor.u32 %v1406, 2147483648
    %v1482 = vmul.f32 %v1481, 1.442695
    %v1483 = vpow.pop %v1482
    %v1484 = vadd.f32 %v1483, 1.0
    %v1485 = vrcp.pop %v1484
    %v1486 = vmul.f32 1.0, %v1485
    %v1487 = vtanh.pop %v1406
    %v1488 = vmul.f32 %v1486, %v1292
    %1490 = vrot.lane.b32.xlu0 %v1487, 64
    %v1491 = vpop.permute.xlu0 %1490
    %v1493 = vmul.f32 %v1486, %v1491
    %1495 = vrot.lane.b32.xlu0 %v1493, 32
    %v1496 = vpop.permute.xlu0 %1495
    %v1498 = vadd.f32 %v1488, %v1496
    %v1499 = vtanh.pop %v1498
    %1501 = vrot.lane.b32.xlu0 %v1499, 64
    %v1502 = vpop.permute.xlu0 %1501
    %v1504 = vmul.f32 %v1486, %v1502
    %v1505 = vxor.u32 %v1480, 2147483648
    %v1506 = vmul.f32 %v1505, 1.442695
    %v1507 = vpow.pop %v1506
    %v1508 = vadd.f32 %v1507, 1.0
    %v1509 = vrcp.pop %v1508
    %v1510 = vmul.f32 1.0, %v1509
    %v1511 = vtanh.pop %v1480
    %v1512 = vmul.f32 %v1510, %v1316
    %1514 = vrot.lane.b32.xlu0 %v1511, 64
    %v1515 = vpop.permute.xlu0 %1514
    %v1517 = vmul.f32 %v1510, %v1515
    %1519 = vrot.lane.b32.xlu0 %v1517, 32
    %v1520 = vpop.permute.xlu0 %1519
    %v1522 = vadd.f32 %v1512, %v1520
    %v1523 = vtanh.pop %v1522
    %1525 = vrot.lane.b32.xlu0 %v1523, 64
    %v1526 = vpop.permute.xlu0 %1525
    %v1528 = vmul.f32 %v1510, %v1526
    %1530 = vrot.lane.b32.xlu0 %v1504, 32
    %v1531 = vpop.permute.xlu0 %1530
    %1533 = vst.msk [vmem:[#allocation2 + $0xa] sm:$0x3] %vm502, %v1531
    %1535 = vrot.lane.b32.xlu0 %v1528, 32
    %v1536 = vpop.permute.xlu0 %1535
    %1538 = vst.msk [vmem:[#allocation3 + $0x4] sm:$0x3] %vm502, %v1536
    %v1539 = vld [vmem:[#allocation4 + $0xc] sm:$0x3]
    %v1540 = vsel %vm292, %v1531, 0
    %1542 = vmatprep.subr.mxu0 0.0
    %1543 = vmatpush1.msra.mxu0 0.0
    %1544 = vmatprep.subr.mxu0 0.0
    %1545 = vmatpush1.msra.mxu0 0.0
    %1546 = vmatprep.subr.mxu0 0.0
    %1547 = vmatpush1.msra.mxu0 0.0
    %1548 = vmatprep.subr.mxu0 0.0
    %1549 = vmatpush1.msra.mxu0 0.0
    %1550 = vmatprep.subr.mxu0 0.0
    %1551 = vmatpush1.msra.mxu0 0.0
    %1552 = vmatprep.subr.mxu0 0.0
    %1553 = vmatpush1.msra.mxu0 0.0
    %1554 = vmatprep.subr.mxu0 0.0
    %1555 = vmatpush1.msra.mxu0 0.0
    %1556 = vmatprep.subr.mxu0 0.0
    %1557 = vmatpush1.msra.mxu0 0.0
    %1558 = vmatprep.subr.mxu0 0.0
    %1559 = vmatpush1.msra.mxu0 0.0
    %1560 = vmatprep.subr.mxu0 0.0
    %1561 = vmatpush1.msra.mxu0 0.0
    %1562 = vmatprep.subr.mxu0 0.0
    %1563 = vmatpush1.msra.mxu0 0.0
    %1564 = vmatprep.subr.mxu0 0.0
    %1565 = vmatpush1.msra.mxu0 0.0
    %1566 = vmatprep.subr.mxu0 0.0
    %1567 = vmatpush1.msra.mxu0 %v279
    %1568 = vmatprep.subr.mxu0 0.0
    %1569 = vmatpush1.msra.mxu0 %v278
    %1570 = vmatprep.subr.mxu0 0.0
    %1571 = vmatpush1.msra.mxu0 %v277
    %1572 = vmatprep.subr.mxu0 0.0
    %1573 = vmatpush1.msra.mxu0 %v276
    %1574 = vmatprep.subr.mxu0 0.0
    %1575 = vmatpush2.msra.mxu0 0.0
    %1576 = vmatprep.subr.mxu0 0.0
    %1577 = vmatpush2.msra.mxu0 0.0
    %1578 = vmatprep.subr.mxu0 0.0
    %1579 = vmatpush2.msra.mxu0 0.0
    %1580 = vmatprep.subr.mxu0 0.0
    %1581 = vmatpush2.msra.mxu0 0.0
    %1582 = vmatprep.subr.mxu0 0.0
    %1583 = vmatpush2.msra.mxu0 0.0
    %1584 = vmatprep.subr.mxu0 0.0
    %1585 = vmatpush2.msra.mxu0 0.0
    %1586 = vmatprep.subr.mxu0 0.0
    %1587 = vmatpush2.msra.mxu0 0.0
    %1588 = vmatprep.subr.mxu0 0.0
    %1589 = vmatpush2.msra.mxu0 0.0
    %1590 = vmatprep.subr.mxu0 0.0
    %1591 = vmatpush2.msra.mxu0 0.0
    %1592 = vmatprep.subr.mxu0 0.0
    %1593 = vmatpush2.msra.mxu0 0.0
    %1594 = vmatprep.subr.mxu0 0.0
    %1595 = vmatpush2.msra.mxu0 0.0
    %1596 = vmatprep.subr.mxu0 0.0
    %1597 = vmatpush2.msra.mxu0 0.0
    %1598 = vmatprep.subr.mxu0 0.0
    %1599 = vmatpush2.msra.mxu0 0.0
    %1600 = vmatprep.subr.mxu0 0.0
    %1601 = vmatpush2.msra.mxu0 0.0
    %1602 = vmatprep.subr.mxu0 0.0
    %1603 = vmatpush2.msra.mxu0 0.0
    %1604 = vmatprep.subr.mxu0 0.0
    %1605 = vmatpush2.msra.mxu0 0.0
    %1606 = vmatprep.mubr.f32.mxu0 0.0
    %1607 = vmatmul.mubr.f32.gmra.mxu0 %v1540
    %v1608 = vpop.f32.mrf.mxu0
    %v1609 = vadd.f32 0.0, %v1608
    %v1610 = vpop.f32.mrf.mxu0
    %1611 = vdwg.mxu0
    %v1612 = vadd.f32 %v1539, %v1609
    %v1613 = vld [vmem:[#allocation5 + $0x2] sm:$0x3]
    %v1614 = vsel %vm292, %v1536, 0
    %1616 = vmatprep.subr.mxu0 0.0
    %1617 = vmatpush1.msra.mxu0 0.0
    %1618 = vmatprep.subr.mxu0 0.0
    %1619 = vmatpush1.msra.mxu0 0.0
    %1620 = vmatprep.subr.mxu0 0.0
    %1621 = vmatpush1.msra.mxu0 0.0
    %1622 = vmatprep.subr.mxu0 0.0
    %1623 = vmatpush1.msra.mxu0 0.0
    %1624 = vmatprep.subr.mxu0 0.0
    %1625 = vmatpush1.msra.mxu0 0.0
    %1626 = vmatprep.subr.mxu0 0.0
    %1627 = vmatpush1.msra.mxu0 0.0
    %1628 = vmatprep.subr.mxu0 0.0
    %1629 = vmatpush1.msra.mxu0 0.0
    %1630 = vmatprep.subr.mxu0 0.0
    %1631 = vmatpush1.msra.mxu0 0.0
    %1632 = vmatprep.subr.mxu0 0.0
    %1633 = vmatpush1.msra.mxu0 0.0
    %1634 = vmatprep.subr.mxu0 0.0
    %1635 = vmatpush1.msra.mxu0 0.0
    %1636 = vmatprep.subr.mxu0 0.0
    %1637 = vmatpush1.msra.mxu0 0.0
    %1638 = vmatprep.subr.mxu0 0.0
    %1639 = vmatpush1.msra.mxu0 0.0
    %1640 = vmatprep.subr.mxu0 0.0
    %1641 = vmatpush1.msra.mxu0 %v284
    %1642 = vmatprep.subr.mxu0 0.0
    %1643 = vmatpush1.msra.mxu0 %v283
    %1644 = vmatprep.subr.mxu0 0.0
    %1645 = vmatpush1.msra.mxu0 %v282
    %1646 = vmatprep.subr.mxu0 0.0
    %1647 = vmatpush1.msra.mxu0 %v281
    %1648 = vmatprep.subr.mxu0 0.0
    %1649 = vmatpush2.msra.mxu0 0.0
    %1650 = vmatprep.subr.mxu0 0.0
    %1651 = vmatpush2.msra.mxu0 0.0
    %1652 = vmatprep.subr.mxu0 0.0
    %1653 = vmatpush2.msra.mxu0 0.0
    %1654 = vmatprep.subr.mxu0 0.0
    %1655 = vmatpush2.msra.mxu0 0.0
    %1656 = vmatprep.subr.mxu0 0.0
    %1657 = vmatpush2.msra.mxu0 0.0
    %1658 = vmatprep.subr.mxu0 0.0
    %1659 = vmatpush2.msra.mxu0 0.0
    %1660 = vmatprep.subr.mxu0 0.0
    %1661 = vmatpush2.msra.mxu0 0.0
    %1662 = vmatprep.subr.mxu0 0.0
    %1663 = vmatpush2.msra.mxu0 0.0
    %1664 = vmatprep.subr.mxu0 0.0
    %1665 = vmatpush2.msra.mxu0 0.0
    %1666 = vmatprep.subr.mxu0 0.0
    %1667 = vmatpush2.msra.mxu0 0.0
    %1668 = vmatprep.subr.mxu0 0.0
    %1669 = vmatpush2.msra.mxu0 0.0
    %1670 = vmatprep.subr.mxu0 0.0
    %1671 = vmatpush2.msra.mxu0 0.0
    %1672 = vmatprep.subr.mxu0 0.0
    %1673 = vmatpush2.msra.mxu0 0.0
    %1674 = vmatprep.subr.mxu0 0.0
    %1675 = vmatpush2.msra.mxu0 0.0
    %1676 = vmatprep.subr.mxu0 0.0
    %1677 = vmatpush2.msra.mxu0 0.0
    %1678 = vmatprep.subr.mxu0 0.0
    %1679 = vmatpush2.msra.mxu0 0.0
    %1680 = vmatprep.mubr.f32.mxu0 0.0
    %1681 = vmatmul.mubr.f32.gmra.mxu0 %v1614
    %v1682 = vpop.f32.mrf.mxu0
    %v1683 = vadd.f32 0.0, %v1682
    %v1684 = vpop.f32.mrf.mxu0
    %1685 = vdwg.mxu0
    %v1686 = vadd.f32 %v1613, %v1683
    %v1687 = vxor.u32 %v1612, 2147483648
    %v1688 = vmul.f32 %v1687, 1.442695
    %v1689 = vpow.pop %v1688
    %v1690 = vadd.f32 %v1689, 1.0
    %v1691 = vrcp.pop %v1690
    %v1692 = vmul.f32 1.0, %v1691
    %v1693 = vtanh.pop %v1612
    %v1694 = vmul.f32 %v1692, %v1498
    %1696 = vrot.lane.b32.xlu0 %v1693, 64
    %v1697 = vpop.permute.xlu0 %1696
    %v1699 = vmul.f32 %v1692, %v1697
    %1701 = vrot.lane.b32.xlu0 %v1699, 32
    %v1702 = vpop.permute.xlu0 %1701
    %v1704 = vadd.f32 %v1694, %v1702
    %v1705 = vtanh.pop %v1704
    %1707 = vrot.lane.b32.xlu0 %v1705, 64
    %v1708 = vpop.permute.xlu0 %1707
    %v1710 = vmul.f32 %v1692, %v1708
    %v1711 = vxor.u32 %v1686, 2147483648
    %v1712 = vmul.f32 %v1711, 1.442695
    %v1713 = vpow.pop %v1712
    %v1714 = vadd.f32 %v1713, 1.0
    %v1715 = vrcp.pop %v1714
    %v1716 = vmul.f32 1.0, %v1715
    %v1717 = vtanh.pop %v1686
    %v1718 = vmul.f32 %v1716, %v1522
    %1720 = vrot.lane.b32.xlu0 %v1717, 64
    %v1721 = vpop.permute.xlu0 %1720
    %v1723 = vmul.f32 %v1716, %v1721
    %1725 = vrot.lane.b32.xlu0 %v1723, 32
    %v1726 = vpop.permute.xlu0 %1725
    %v1728 = vadd.f32 %v1718, %v1726
    %v1729 = vtanh.pop %v1728
    %1731 = vrot.lane.b32.xlu0 %v1729, 64
    %v1732 = vpop.permute.xlu0 %1731
    %v1734 = vmul.f32 %v1716, %v1732
    %1736 = vrot.lane.b32.xlu0 %v1710, 32
    %v1737 = vpop.permute.xlu0 %1736
    %1739 = vst.msk [vmem:[#allocation2 + $0xc] sm:$0x3] %vm502, %v1737
    %1741 = vrot.lane.b32.xlu0 %v1734, 32
    %v1742 = vpop.permute.xlu0 %1741
    %1744 = vst.msk [vmem:[#allocation3 + $0x2] sm:$0x3] %vm502, %v1742
    %v1745 = vld [vmem:[#allocation4 + $0xe] sm:$0x3]
    %v1746 = vsel %vm292, %v1737, 0
    %1748 = vmatprep.subr.mxu0 0.0
    %1749 = vmatpush1.msra.mxu0 0.0
    %1750 = vmatprep.subr.mxu0 0.0
    %1751 = vmatpush1.msra.mxu0 0.0
    %1752 = vmatprep.subr.mxu0 0.0
    %1753 = vmatpush1.msra.mxu0 0.0
    %1754 = vmatprep.subr.mxu0 0.0
    %1755 = vmatpush1.msra.mxu0 0.0
    %1756 = vmatprep.subr.mxu0 0.0
    %1757 = vmatpush1.msra.mxu0 0.0
    %1758 = vmatprep.subr.mxu0 0.0
    %1759 = vmatpush1.msra.mxu0 0.0
    %1760 = vmatprep.subr.mxu0 0.0
    %1761 = vmatpush1.msra.mxu0 0.0
    %1762 = vmatprep.subr.mxu0 0.0
    %1763 = vmatpush1.msra.mxu0 0.0
    %1764 = vmatprep.subr.mxu0 0.0
    %1765 = vmatpush1.msra.mxu0 0.0
    %1766 = vmatprep.subr.mxu0 0.0
    %1767 = vmatpush1.msra.mxu0 0.0
    %1768 = vmatprep.subr.mxu0 0.0
    %1769 = vmatpush1.msra.mxu0 0.0
    %1770 = vmatprep.subr.mxu0 0.0
    %1771 = vmatpush1.msra.mxu0 0.0
    %1772 = vmatprep.subr.mxu0 0.0
    %1773 = vmatpush1.msra.mxu0 %v279
    %1774 = vmatprep.subr.mxu0 0.0
    %1775 = vmatpush1.msra.mxu0 %v278
    %1776 = vmatprep.subr.mxu0 0.0
    %1777 = vmatpush1.msra.mxu0 %v277
    %1778 = vmatprep.subr.mxu0 0.0
    %1779 = vmatpush1.msra.mxu0 %v276
    %1780 = vmatprep.subr.mxu0 0.0
    %1781 = vmatpush2.msra.mxu0 0.0
    %1782 = vmatprep.subr.mxu0 0.0
    %1783 = vmatpush2.msra.mxu0 0.0
    %1784 = vmatprep.subr.mxu0 0.0
    %1785 = vmatpush2.msra.mxu0 0.0
    %1786 = vmatprep.subr.mxu0 0.0
    %1787 = vmatpush2.msra.mxu0 0.0
    %1788 = vmatprep.subr.mxu0 0.0
    %1789 = vmatpush2.msra.mxu0 0.0
    %1790 = vmatprep.subr.mxu0 0.0
    %1791 = vmatpush2.msra.mxu0 0.0
    %1792 = vmatprep.subr.mxu0 0.0
    %1793 = vmatpush2.msra.mxu0 0.0
    %1794 = vmatprep.subr.mxu0 0.0
    %1795 = vmatpush2.msra.mxu0 0.0
    %1796 = vmatprep.subr.mxu0 0.0
    %1797 = vmatpush2.msra.mxu0 0.0
    %1798 = vmatprep.subr.mxu0 0.0
    %1799 = vmatpush2.msra.mxu0 0.0
    %1800 = vmatprep.subr.mxu0 0.0
    %1801 = vmatpush2.msra.mxu0 0.0
    %1802 = vmatprep.subr.mxu0 0.0
    %1803 = vmatpush2.msra.mxu0 0.0
    %1804 = vmatprep.subr.mxu0 0.0
    %1805 = vmatpush2.msra.mxu0 0.0
    %1806 = vmatprep.subr.mxu0 0.0
    %1807 = vmatpush2.msra.mxu0 0.0
    %1808 = vmatprep.subr.mxu0 0.0
    %1809 = vmatpush2.msra.mxu0 0.0
    %1810 = vmatprep.subr.mxu0 0.0
    %1811 = vmatpush2.msra.mxu0 0.0
    %1812 = vmatprep.mubr.f32.mxu0 0.0
    %1813 = vmatmul.mubr.f32.gmra.mxu0 %v1746
    %v1814 = vpop.f32.mrf.mxu0
    %v1815 = vadd.f32 0.0, %v1814
    %v1816 = vpop.f32.mrf.mxu0
    %1817 = vdwg.mxu0
    %v1818 = vadd.f32 %v1745, %v1815
    %v1819 = vld [vmem:[#allocation5] sm:$0x3]
    %v1820 = vsel %vm292, %v1742, 0
    %1822 = vmatprep.subr.mxu0 0.0
    %1823 = vmatpush1.msra.mxu0 0.0
    %1824 = vmatprep.subr.mxu0 0.0
    %1825 = vmatpush1.msra.mxu0 0.0
    %1826 = vmatprep.subr.mxu0 0.0
    %1827 = vmatpush1.msra.mxu0 0.0
    %1828 = vmatprep.subr.mxu0 0.0
    %1829 = vmatpush1.msra.mxu0 0.0
    %1830 = vmatprep.subr.mxu0 0.0
    %1831 = vmatpush1.msra.mxu0 0.0
    %1832 = vmatprep.subr.mxu0 0.0
    %1833 = vmatpush1.msra.mxu0 0.0
    %1834 = vmatprep.subr.mxu0 0.0
    %1835 = vmatpush1.msra.mxu0 0.0
    %1836 = vmatprep.subr.mxu0 0.0
    %1837 = vmatpush1.msra.mxu0 0.0
    %1838 = vmatprep.subr.mxu0 0.0
    %1839 = vmatpush1.msra.mxu0 0.0
    %1840 = vmatprep.subr.mxu0 0.0
    %1841 = vmatpush1.msra.mxu0 0.0
    %1842 = vmatprep.subr.mxu0 0.0
    %1843 = vmatpush1.msra.mxu0 0.0
    %1844 = vmatprep.subr.mxu0 0.0
    %1845 = vmatpush1.msra.mxu0 0.0
    %1846 = vmatprep.subr.mxu0 0.0
    %1847 = vmatpush1.msra.mxu0 %v284
    %1848 = vmatprep.subr.mxu0 0.0
    %1849 = vmatpush1.msra.mxu0 %v283
    %1850 = vmatprep.subr.mxu0 0.0
    %1851 = vmatpush1.msra.mxu0 %v282
    %1852 = vmatprep.subr.mxu0 0.0
    %1853 = vmatpush1.msra.mxu0 %v281
    %1854 = vmatprep.subr.mxu0 0.0
    %1855 = vmatpush2.msra.mxu0 0.0
    %1856 = vmatprep.subr.mxu0 0.0
    %1857 = vmatpush2.msra.mxu0 0.0
    %1858 = vmatprep.subr.mxu0 0.0
    %1859 = vmatpush2.msra.mxu0 0.0
    %1860 = vmatprep.subr.mxu0 0.0
    %1861 = vmatpush2.msra.mxu0 0.0
    %1862 = vmatprep.subr.mxu0 0.0
    %1863 = vmatpush2.msra.mxu0 0.0
    %1864 = vmatprep.subr.mxu0 0.0
    %1865 = vmatpush2.msra.mxu0 0.0
    %1866 = vmatprep.subr.mxu0 0.0
    %1867 = vmatpush2.msra.mxu0 0.0
    %1868 = vmatprep.subr.mxu0 0.0
    %1869 = vmatpush2.msra.mxu0 0.0
    %1870 = vmatprep.subr.mxu0 0.0
    %1871 = vmatpush2.msra.mxu0 0.0
    %1872 = vmatprep.subr.mxu0 0.0
    %1873 = vmatpush2.msra.mxu0 0.0
    %1874 = vmatprep.subr.mxu0 0.0
    %1875 = vmatpush2.msra.mxu0 0.0
    %1876 = vmatprep.subr.mxu0 0.0
    %1877 = vmatpush2.msra.mxu0 0.0
    %1878 = vmatprep.subr.mxu0 0.0
    %1879 = vmatpush2.msra.mxu0 0.0
    %1880 = vmatprep.subr.mxu0 0.0
    %1881 = vmatpush2.msra.mxu0 0.0
    %1882 = vmatprep.subr.mxu0 0.0
    %1883 = vmatpush2.msra.mxu0 0.0
    %1884 = vmatprep.subr.mxu0 0.0
    %1885 = vmatpush2.msra.mxu0 0.0
    %1886 = vmatprep.mubr.f32.mxu0 0.0
    %1887 = vmatmul.mubr.f32.gmra.mxu0 %v1820
    %v1888 = vpop.f32.mrf.mxu0
    %v1889 = vadd.f32 0.0, %v1888
    %v1890 = vpop.f32.mrf.mxu0
    %1891 = vdwg.mxu0
    %v1892 = vadd.f32 %v1819, %v1889
    %v1893 = vxor.u32 %v1818, 2147483648
    %v1894 = vmul.f32 %v1893, 1.442695
    %v1895 = vpow.pop %v1894
    %v1896 = vadd.f32 %v1895, 1.0
    %v1897 = vrcp.pop %v1896
    %v1898 = vmul.f32 1.0, %v1897
    %v1899 = vtanh.pop %v1818
    %v1900 = vmul.f32 %v1898, %v1704
    %1902 = vrot.lane.b32.xlu0 %v1899, 64
    %v1903 = vpop.permute.xlu0 %1902
    %v1905 = vmul.f32 %v1898, %v1903
    %1907 = vrot.lane.b32.xlu0 %v1905, 32
    %v1908 = vpop.permute.xlu0 %1907
    %v1910 = vadd.f32 %v1900, %v1908
    %v1911 = vtanh.pop %v1910
    %1913 = vrot.lane.b32.xlu0 %v1911, 64
    %v1914 = vpop.permute.xlu0 %1913
    %v1916 = vmul.f32 %v1898, %v1914
    %v1917 = vxor.u32 %v1892, 2147483648
    %v1918 = vmul.f32 %v1917, 1.442695
    %v1919 = vpow.pop %v1918
    %v1920 = vadd.f32 %v1919, 1.0
    %v1921 = vrcp.pop %v1920
    %v1922 = vmul.f32 1.0, %v1921
    %v1923 = vtanh.pop %v1892
    %v1924 = vmul.f32 %v1922, %v1728
    %1926 = vrot.lane.b32.xlu0 %v1923, 64
    %v1927 = vpop.permute.xlu0 %1926
    %v1929 = vmul.f32 %v1922, %v1927
    %1931 = vrot.lane.b32.xlu0 %v1929, 32
    %v1932 = vpop.permute.xlu0 %1931
    %v1934 = vadd.f32 %v1924, %v1932
    %v1935 = vtanh.pop %v1934
    %1937 = vrot.lane.b32.xlu0 %v1935, 64
    %v1938 = vpop.permute.xlu0 %1937
    %v1940 = vmul.f32 %v1922, %v1938
    %1942 = vrot.lane.b32.xlu0 %v1916, 32
    %v1943 = vpop.permute.xlu0 %1942
    %1945 = vst.msk [vmem:[#allocation2 + $0xe] sm:$0x3] %vm502, %v1943
    %1947 = vrot.lane.b32.xlu0 %v1940, 32
    %v1948 = vpop.permute.xlu0 %1947
    %1950 = vst.msk [vmem:[#allocation3] sm:$0x3] %vm502, %v1948
    %v1951 = vld [vmem:[#allocation2] sm:$0xff]
    %v1952 = vld [vmem:[#allocation2 + $0x8] sm:$0xff]
    %v1953 = vld [vmem:[#allocation3] sm:$0xff]
    %v1954 = vld [vmem:[#allocation3 + $0x8] sm:$0xff]
    %v1955 = vld [vmem:[#allocation9] sm:$0xff]
    %v1956 = vld [vmem:[#allocation9 + $0x8] sm:$0xff]
    %v1957 = vld [vmem:[#allocation9 + $0x10] sm:$0xff]
    %v1958 = vld [vmem:[#allocation9 + $0x18] sm:$0xff]
    %v1959 = vld [vmem:[#allocation9 + $0x20] sm:$0xff]
    %v1960 = vld [vmem:[#allocation9 + $0x28] sm:$0xff]
    %v1961 = vld [vmem:[#allocation9 + $0x30] sm:$0xff]
    %v1962 = vld [vmem:[#allocation9 + $0x38] sm:$0xff]
    %s1963 = scalar_lea.vmem [#allocation9], 64
    %v1964 = vld [vmem:[%s1963] sm:$0xff]
    %v1965 = vld [vmem:[%s1963 + $0x8] sm:$0xff]
    %v1966 = vld [vmem:[%s1963 + $0x10] sm:$0xff]
    %v1967 = vld [vmem:[%s1963 + $0x18] sm:$0xff]
    %v1968 = vld [vmem:[%s1963 + $0x20] sm:$0xff]
    %v1969 = vld [vmem:[%s1963 + $0x28] sm:$0xff]
    %v1970 = vld [vmem:[%s1963 + $0x30] sm:$0xff]
    %v1971 = vld [vmem:[%s1963 + $0x38] sm:$0xff]
    %v1973 = vsel %vm292, %v1953, 0
    %v1976 = vsel %vm292, %v1954, 0
    %1978 = vmatprep.subr.mxu0 0.0
    %1979 = vmatpush1.msra.mxu0 0.0
    %1980 = vmatprep.subr.mxu0 0.0
    %1981 = vmatpush1.msra.mxu0 0.0
    %1982 = vmatprep.subr.mxu0 0.0
    %1983 = vmatpush1.msra.mxu0 0.0
    %1984 = vmatprep.subr.mxu0 0.0
    %1985 = vmatpush1.msra.mxu0 0.0
    %1986 = vmatprep.subr.mxu0 0.0
    %1987 = vmatpush1.msra.mxu0 0.0
    %1988 = vmatprep.subr.mxu0 0.0
    %1989 = vmatpush1.msra.mxu0 0.0
    %1990 = vmatprep.subr.mxu0 0.0
    %1991 = vmatpush1.msra.mxu0 0.0
    %1992 = vmatprep.subr.mxu0 0.0
    %1993 = vmatpush1.msra.mxu0 0.0
    %1994 = vmatprep.subr.mxu0 0.0
    %1995 = vmatpush1.msra.mxu0 0.0
    %1996 = vmatprep.subr.mxu0 0.0
    %1997 = vmatpush1.msra.mxu0 0.0
    %1998 = vmatprep.subr.mxu0 0.0
    %1999 = vmatpush1.msra.mxu0 0.0
    %2000 = vmatprep.subr.mxu0 0.0
    %2001 = vmatpush1.msra.mxu0 0.0
    %2002 = vmatprep.subr.mxu0 0.0
    %2003 = vmatpush1.msra.mxu0 %v1962
    %2004 = vmatprep.subr.mxu0 0.0
    %2005 = vmatpush1.msra.mxu0 %v1961
    %2006 = vmatprep.subr.mxu0 0.0
    %2007 = vmatpush1.msra.mxu0 %v1960
    %2008 = vmatprep.subr.mxu0 0.0
    %2009 = vmatpush1.msra.mxu0 %v1959
    %2010 = vmatprep.subr.mxu0 0.0
    %2011 = vmatpush2.msra.mxu0 0.0
    %2012 = vmatprep.subr.mxu0 0.0
    %2013 = vmatpush2.msra.mxu0 0.0
    %2014 = vmatprep.subr.mxu0 0.0
    %2015 = vmatpush2.msra.mxu0 0.0
    %2016 = vmatprep.subr.mxu0 0.0
    %2017 = vmatpush2.msra.mxu0 0.0
    %2018 = vmatprep.subr.mxu0 0.0
    %2019 = vmatpush2.msra.mxu0 0.0
    %2020 = vmatprep.subr.mxu0 0.0
    %2021 = vmatpush2.msra.mxu0 0.0
    %2022 = vmatprep.subr.mxu0 0.0
    %2023 = vmatpush2.msra.mxu0 0.0
    %2024 = vmatprep.subr.mxu0 0.0
    %2025 = vmatpush2.msra.mxu0 0.0
    %2026 = vmatprep.subr.mxu0 0.0
    %2027 = vmatpush2.msra.mxu0 0.0
    %2028 = vmatprep.subr.mxu0 0.0
    %2029 = vmatpush2.msra.mxu0 0.0
    %2030 = vmatprep.subr.mxu0 0.0
    %2031 = vmatpush2.msra.mxu0 0.0
    %2032 = vmatprep.subr.mxu0 0.0
    %2033 = vmatpush2.msra.mxu0 0.0
    %2034 = vmatprep.subr.mxu0 0.0
    %2035 = vmatpush2.msra.mxu0 0.0
    %2036 = vmatprep.subr.mxu0 0.0
    %2037 = vmatpush2.msra.mxu0 0.0
    %2038 = vmatprep.subr.mxu0 0.0
    %2039 = vmatpush2.msra.mxu0 0.0
    %2040 = vmatprep.subr.mxu0 0.0
    %2041 = vmatpush2.msra.mxu0 0.0
    %2042 = vmatprep.mubr.f32.mxu0 0.0
    %2043 = vmatmul.mubr.f32.gmra.mxu0 %v1973
    %v2044 = vpop.f32.mrf.mxu0
    %v2045 = vadd.f32 0.0, %v2044
    %v2046 = vpop.f32.mrf.mxu0
    %2047 = vmatprep.mubr.f32.mxu0 0.0
    %2048 = vmatmul.mubr.f32.gmra.mxu0 %v1976
    %v2049 = vpop.f32.mrf.mxu0
    %v2050 = vadd.f32 0.0, %v2049
    %v2051 = vpop.f32.mrf.mxu0
    %2052 = vdwg.mxu0
    %v2054 = vsel %vm292, %v1951, 0
    %v2057 = vsel %vm292, %v1952, 0
    %2059 = vmatprep.subr.mxu0 0.0
    %2060 = vmatpush1.msra.mxu0 0.0
    %2061 = vmatprep.subr.mxu0 0.0
    %2062 = vmatpush1.msra.mxu0 0.0
    %2063 = vmatprep.subr.mxu0 0.0
    %2064 = vmatpush1.msra.mxu0 0.0
    %2065 = vmatprep.subr.mxu0 0.0
    %2066 = vmatpush1.msra.mxu0 0.0
    %2067 = vmatprep.subr.mxu0 0.0
    %2068 = vmatpush1.msra.mxu0 0.0
    %2069 = vmatprep.subr.mxu0 0.0
    %2070 = vmatpush1.msra.mxu0 0.0
    %2071 = vmatprep.subr.mxu0 0.0
    %2072 = vmatpush1.msra.mxu0 0.0
    %2073 = vmatprep.subr.mxu0 0.0
    %2074 = vmatpush1.msra.mxu0 0.0
    %2075 = vmatprep.subr.mxu0 0.0
    %2076 = vmatpush1.msra.mxu0 0.0
    %2077 = vmatprep.subr.mxu0 0.0
    %2078 = vmatpush1.msra.mxu0 0.0
    %2079 = vmatprep.subr.mxu0 0.0
    %2080 = vmatpush1.msra.mxu0 0.0
    %2081 = vmatprep.subr.mxu0 0.0
    %2082 = vmatpush1.msra.mxu0 0.0
    %2083 = vmatprep.subr.mxu0 0.0
    %2084 = vmatpush1.msra.mxu0 %v1958
    %2085 = vmatprep.subr.mxu0 0.0
    %2086 = vmatpush1.msra.mxu0 %v1957
    %2087 = vmatprep.subr.mxu0 0.0
    %2088 = vmatpush1.msra.mxu0 %v1956
    %2089 = vmatprep.subr.mxu0 0.0
    %2090 = vmatpush1.msra.mxu0 %v1955
    %2091 = vmatprep.subr.mxu0 0.0
    %2092 = vmatpush2.msra.mxu0 0.0
    %2093 = vmatprep.subr.mxu0 0.0
    %2094 = vmatpush2.msra.mxu0 0.0
    %2095 = vmatprep.subr.mxu0 0.0
    %2096 = vmatpush2.msra.mxu0 0.0
    %2097 = vmatprep.subr.mxu0 0.0
    %2098 = vmatpush2.msra.mxu0 0.0
    %2099 = vmatprep.subr.mxu0 0.0
    %2100 = vmatpush2.msra.mxu0 0.0
    %2101 = vmatprep.subr.mxu0 0.0
    %2102 = vmatpush2.msra.mxu0 0.0
    %2103 = vmatprep.subr.mxu0 0.0
    %2104 = vmatpush2.msra.mxu0 0.0
    %2105 = vmatprep.subr.mxu0 0.0
    %2106 = vmatpush2.msra.mxu0 0.0
    %2107 = vmatprep.subr.mxu0 0.0
    %2108 = vmatpush2.msra.mxu0 0.0
    %2109 = vmatprep.subr.mxu0 0.0
    %2110 = vmatpush2.msra.mxu0 0.0
    %2111 = vmatprep.subr.mxu0 0.0
    %2112 = vmatpush2.msra.mxu0 0.0
    %2113 = vmatprep.subr.mxu0 0.0
    %2114 = vmatpush2.msra.mxu0 0.0
    %2115 = vmatprep.subr.mxu0 0.0
    %2116 = vmatpush2.msra.mxu0 0.0
    %2117 = vmatprep.subr.mxu0 0.0
    %2118 = vmatpush2.msra.mxu0 0.0
    %2119 = vmatprep.subr.mxu0 0.0
    %2120 = vmatpush2.msra.mxu0 0.0
    %2121 = vmatprep.subr.mxu0 0.0
    %2122 = vmatpush2.msra.mxu0 0.0
    %2123 = vmatprep.mubr.f32.mxu0 0.0
    %2124 = vmatmul.mubr.f32.gmra.mxu0 %v2054
    %v2125 = vpop.f32.mrf.mxu0
    %v2126 = vadd.f32 %v2045, %v2125
    %v2127 = vpop.f32.mrf.mxu0
    %2128 = vmatprep.mubr.f32.mxu0 0.0
    %2129 = vmatmul.mubr.f32.gmra.mxu0 %v2057
    %v2130 = vpop.f32.mrf.mxu0
    %v2131 = vadd.f32 %v2050, %v2130
    %v2132 = vpop.f32.mrf.mxu0
    %2133 = vdwg.mxu0
    %v2134 = vld [vmem:[%s6] sm:$0x1]
    %v2136 = vlaneseq
    %v2137 = vshrl.u32 %v2136, 7
    %v2138 = vsub.s32 0, %v2137
    %v2139 = vrot.slane %v2134, %v2138
    %v2141 = vadd.f32 %v2126, %v2139
    %v2142 = vadd.f32 %v2131, %v2139
    %2143 = vst [vmem:[#allocation4] sm:$0xff] %v2141
    %2144 = vst [vmem:[#allocation4 + $0x8] sm:$0xff] %v2142
    %2145 = vmatprep.subr.mxu0 0.0
    %2146 = vmatpush1.msra.mxu0 0.0
    %2147 = vmatprep.subr.mxu0 0.0
    %2148 = vmatpush1.msra.mxu0 0.0
    %2149 = vmatprep.subr.mxu0 0.0
    %2150 = vmatpush1.msra.mxu0 0.0
    %2151 = vmatprep.subr.mxu0 0.0
    %2152 = vmatpush1.msra.mxu0 0.0
    %2153 = vmatprep.subr.mxu0 0.0
    %2154 = vmatpush1.msra.mxu0 0.0
    %2155 = vmatprep.subr.mxu0 0.0
    %2156 = vmatpush1.msra.mxu0 0.0
    %2157 = vmatprep.subr.mxu0 0.0
    %2158 = vmatpush1.msra.mxu0 0.0
    %2159 = vmatprep.subr.mxu0 0.0
    %2160 = vmatpush1.msra.mxu0 0.0
    %2161 = vmatprep.subr.mxu0 0.0
    %2162 = vmatpush1.msra.mxu0 0.0
    %2163 = vmatprep.subr.mxu0 0.0
    %2164 = vmatpush1.msra.mxu0 0.0
    %2165 = vmatprep.subr.mxu0 0.0
    %2166 = vmatpush1.msra.mxu0 0.0
    %2167 = vmatprep.subr.mxu0 0.0
    %2168 = vmatpush1.msra.mxu0 0.0
    %2169 = vmatprep.subr.mxu0 0.0
    %2170 = vmatpush1.msra.mxu0 %v1971
    %2171 = vmatprep.subr.mxu0 0.0
    %2172 = vmatpush1.msra.mxu0 %v1970
    %2173 = vmatprep.subr.mxu0 0.0
    %2174 = vmatpush1.msra.mxu0 %v1969
    %2175 = vmatprep.subr.mxu0 0.0
    %2176 = vmatpush1.msra.mxu0 %v1968
    %2177 = vmatprep.subr.mxu0 0.0
    %2178 = vmatpush2.msra.mxu0 0.0
    %2179 = vmatprep.subr.mxu0 0.0
    %2180 = vmatpush2.msra.mxu0 0.0
    %2181 = vmatprep.subr.mxu0 0.0
    %2182 = vmatpush2.msra.mxu0 0.0
    %2183 = vmatprep.subr.mxu0 0.0
    %2184 = vmatpush2.msra.mxu0 0.0
    %2185 = vmatprep.subr.mxu0 0.0
    %2186 = vmatpush2.msra.mxu0 0.0
    %2187 = vmatprep.subr.mxu0 0.0
    %2188 = vmatpush2.msra.mxu0 0.0
    %2189 = vmatprep.subr.mxu0 0.0
    %2190 = vmatpush2.msra.mxu0 0.0
    %2191 = vmatprep.subr.mxu0 0.0
    %2192 = vmatpush2.msra.mxu0 0.0
    %2193 = vmatprep.subr.mxu0 0.0
    %2194 = vmatpush2.msra.mxu0 0.0
    %2195 = vmatprep.subr.mxu0 0.0
    %2196 = vmatpush2.msra.mxu0 0.0
    %2197 = vmatprep.subr.mxu0 0.0
    %2198 = vmatpush2.msra.mxu0 0.0
    %2199 = vmatprep.subr.mxu0 0.0
    %2200 = vmatpush2.msra.mxu0 0.0
    %2201 = vmatprep.subr.mxu0 0.0
    %2202 = vmatpush2.msra.mxu0 0.0
    %2203 = vmatprep.subr.mxu0 0.0
    %2204 = vmatpush2.msra.mxu0 0.0
    %2205 = vmatprep.subr.mxu0 0.0
    %2206 = vmatpush2.msra.mxu0 0.0
    %2207 = vmatprep.subr.mxu0 0.0
    %2208 = vmatpush2.msra.mxu0 0.0
    %2209 = vmatprep.mubr.f32.mxu0 0.0
    %2210 = vmatmul.mubr.f32.gmra.mxu0 %v1973
    %v2211 = vpop.f32.mrf.mxu0
    %v2212 = vadd.f32 0.0, %v2211
    %v2213 = vpop.f32.mrf.mxu0
    %2214 = vmatprep.mubr.f32.mxu0 0.0
    %2215 = vmatmul.mubr.f32.gmra.mxu0 %v1976
    %v2216 = vpop.f32.mrf.mxu0
    %v2217 = vadd.f32 0.0, %v2216
    %v2218 = vpop.f32.mrf.mxu0
    %2219 = vdwg.mxu0
    %2220 = vmatprep.subr.mxu0 0.0
    %2221 = vmatpush1.msra.mxu0 0.0
    %2222 = vmatprep.subr.mxu0 0.0
    %2223 = vmatpush1.msra.mxu0 0.0
    %2224 = vmatprep.subr.mxu0 0.0
    %2225 = vmatpush1.msra.mxu0 0.0
    %2226 = vmatprep.subr.mxu0 0.0
    %2227 = vmatpush1.msra.mxu0 0.0
    %2228 = vmatprep.subr.mxu0 0.0
    %2229 = vmatpush1.msra.mxu0 0.0
    %2230 = vmatprep.subr.mxu0 0.0
    %2231 = vmatpush1.msra.mxu0 0.0
    %2232 = vmatprep.subr.mxu0 0.0
    %2233 = vmatpush1.msra.mxu0 0.0
    %2234 = vmatprep.subr.mxu0 0.0
    %2235 = vmatpush1.msra.mxu0 0.0
    %2236 = vmatprep.subr.mxu0 0.0
    %2237 = vmatpush1.msra.mxu0 0.0
    %2238 = vmatprep.subr.mxu0 0.0
    %2239 = vmatpush1.msra.mxu0 0.0
    %2240 = vmatprep.subr.mxu0 0.0
    %2241 = vmatpush1.msra.mxu0 0.0
    %2242 = vmatprep.subr.mxu0 0.0
    %2243 = vmatpush1.msra.mxu0 0.0
    %2244 = vmatprep.subr.mxu0 0.0
    %2245 = vmatpush1.msra.mxu0 %v1967
    %2246 = vmatprep.subr.mxu0 0.0
    %2247 = vmatpush1.msra.mxu0 %v1966
    %2248 = vmatprep.subr.mxu0 0.0
    %2249 = vmatpush1.msra.mxu0 %v1965
    %2250 = vmatprep.subr.mxu0 0.0
    %2251 = vmatpush1.msra.mxu0 %v1964
    %2252 = vmatprep.subr.mxu0 0.0
    %2253 = vmatpush2.msra.mxu0 0.0
    %2254 = vmatprep.subr.mxu0 0.0
    %2255 = vmatpush2.msra.mxu0 0.0
    %2256 = vmatprep.subr.mxu0 0.0
    %2257 = vmatpush2.msra.mxu0 0.0
    %2258 = vmatprep.subr.mxu0 0.0
    %2259 = vmatpush2.msra.mxu0 0.0
    %2260 = vmatprep.subr.mxu0 0.0
    %2261 = vmatpush2.msra.mxu0 0.0
    %2262 = vmatprep.subr.mxu0 0.0
    %2263 = vmatpush2.msra.mxu0 0.0
    %2264 = vmatprep.subr.mxu0 0.0
    %2265 = vmatpush2.msra.mxu0 0.0
    %2266 = vmatprep.subr.mxu0 0.0
    %2267 = vmatpush2.msra.mxu0 0.0
    %2268 = vmatprep.subr.mxu0 0.0
    %2269 = vmatpush2.msra.mxu0 0.0
    %2270 = vmatprep.subr.mxu0 0.0
    %2271 = vmatpush2.msra.mxu0 0.0
    %2272 = vmatprep.subr.mxu0 0.0
    %2273 = vmatpush2.msra.mxu0 0.0
    %2274 = vmatprep.subr.mxu0 0.0
    %2275 = vmatpush2.msra.mxu0 0.0
    %2276 = vmatprep.subr.mxu0 0.0
    %2277 = vmatpush2.msra.mxu0 0.0
    %2278 = vmatprep.subr.mxu0 0.0
    %2279 = vmatpush2.msra.mxu0 0.0
    %2280 = vmatprep.subr.mxu0 0.0
    %2281 = vmatpush2.msra.mxu0 0.0
    %2282 = vmatprep.subr.mxu0 0.0
    %2283 = vmatpush2.msra.mxu0 0.0
    %2284 = vmatprep.mubr.f32.mxu0 0.0
    %2285 = vmatmul.mubr.f32.gmra.mxu0 %v2054
    %v2286 = vpop.f32.mrf.mxu0
    %v2287 = vadd.f32 %v2212, %v2286
    %v2288 = vpop.f32.mrf.mxu0
    %2289 = vmatprep.mubr.f32.mxu0 0.0
    %2290 = vmatmul.mubr.f32.gmra.mxu0 %v2057
    %v2291 = vpop.f32.mrf.mxu0
    %v2292 = vadd.f32 %v2217, %v2291
    %v2293 = vpop.f32.mrf.mxu0
    %2294 = vdwg.mxu0
    %s2295 = scalar_lea.vmem %s6, 1
    %v2296 = vld [vmem:[%s2295] sm:$0x1]
    %v2298 = vlaneseq
    %v2299 = vshrl.u32 %v2298, 7
    %v2300 = vsub.s32 0, %v2299
    %v2301 = vrot.slane %v2296, %v2300
    %v2303 = vadd.f32 %v2287, %v2301
    %v2304 = vadd.f32 %v2292, %v2301
    %2305 = vst [vmem:[#allocation5] sm:$0xff] %v2303
    %2306 = vst [vmem:[#allocation5 + $0x8] sm:$0xff] %v2304
    %v2307 = vld [vmem:[#allocation11] sm:$0xff]
    %v2308 = vld [vmem:[#allocation11 + $0x8] sm:$0xff]
    %v2309 = vld [vmem:[#allocation11 + $0x10] sm:$0xff]
    %v2310 = vld [vmem:[#allocation11 + $0x18] sm:$0xff]
    %s2311 = scalar_lea.vmem [#allocation11], 32
    %v2312 = vld [vmem:[%s2311] sm:$0xff]
    %v2313 = vld [vmem:[%s2311 + $0x8] sm:$0xff]
    %v2314 = vld [vmem:[%s2311 + $0x10] sm:$0xff]
    %v2315 = vld [vmem:[%s2311 + $0x18] sm:$0xff]
    %s2316 = scalar_lea.vmem %s7, 4
    %v2317 = vld [vmem:[%s2316] sm:$0x3]
    %s2318 = scalar_lea.vmem %s8, 4
    %v2319 = vld [vmem:[%s2318] sm:$0x3]
    %s2320 = scalar_lea.vmem %s7, 6
    %v2321 = vld [vmem:[%s2320] sm:$0x3]
    %s2322 = scalar_lea.vmem %s8, 6
    %v2323 = vld [vmem:[%s2322] sm:$0x3]
    %v2324 = vld [vmem:[#allocation4] sm:$0x3]
    %v2326 = vsel %vm292, %v2317, 0
    %2328 = vmatprep.subr.mxu0 0.0
    %2329 = vmatpush1.msra.mxu0 0.0
    %2330 = vmatprep.subr.mxu0 0.0
    %2331 = vmatpush1.msra.mxu0 0.0
    %2332 = vmatprep.subr.mxu0 0.0
    %2333 = vmatpush1.msra.mxu0 0.0
    %2334 = vmatprep.subr.mxu0 0.0
    %2335 = vmatpush1.msra.mxu0 0.0
    %2336 = vmatprep.subr.mxu0 0.0
    %2337 = vmatpush1.msra.mxu0 0.0
    %2338 = vmatprep.subr.mxu0 0.0
    %2339 = vmatpush1.msra.mxu0 0.0
    %2340 = vmatprep.subr.mxu0 0.0
    %2341 = vmatpush1.msra.mxu0 0.0
    %2342 = vmatprep.subr.mxu0 0.0
    %2343 = vmatpush1.msra.mxu0 0.0
    %2344 = vmatprep.subr.mxu0 0.0
    %2345 = vmatpush1.msra.mxu0 0.0
    %2346 = vmatprep.subr.mxu0 0.0
    %2347 = vmatpush1.msra.mxu0 0.0
    %2348 = vmatprep.subr.mxu0 0.0
    %2349 = vmatpush1.msra.mxu0 0.0
    %2350 = vmatprep.subr.mxu0 0.0
    %2351 = vmatpush1.msra.mxu0 0.0
    %2352 = vmatprep.subr.mxu0 0.0
    %2353 = vmatpush1.msra.mxu0 %v2310
    %2354 = vmatprep.subr.mxu0 0.0
    %2355 = vmatpush1.msra.mxu0 %v2309
    %2356 = vmatprep.subr.mxu0 0.0
    %2357 = vmatpush1.msra.mxu0 %v2308
    %2358 = vmatprep.subr.mxu0 0.0
    %2359 = vmatpush1.msra.mxu0 %v2307
    %2360 = vmatprep.subr.mxu0 0.0
    %2361 = vmatpush2.msra.mxu0 0.0
    %2362 = vmatprep.subr.mxu0 0.0
    %2363 = vmatpush2.msra.mxu0 0.0
    %2364 = vmatprep.subr.mxu0 0.0
    %2365 = vmatpush2.msra.mxu0 0.0
    %2366 = vmatprep.subr.mxu0 0.0
    %2367 = vmatpush2.msra.mxu0 0.0
    %2368 = vmatprep.subr.mxu0 0.0
    %2369 = vmatpush2.msra.mxu0 0.0
    %2370 = vmatprep.subr.mxu0 0.0
    %2371 = vmatpush2.msra.mxu0 0.0
    %2372 = vmatprep.subr.mxu0 0.0
    %2373 = vmatpush2.msra.mxu0 0.0
    %2374 = vmatprep.subr.mxu0 0.0
    %2375 = vmatpush2.msra.mxu0 0.0
    %2376 = vmatprep.subr.mxu0 0.0
    %2377 = vmatpush2.msra.mxu0 0.0
    %2378 = vmatprep.subr.mxu0 0.0
    %2379 = vmatpush2.msra.mxu0 0.0
    %2380 = vmatprep.subr.mxu0 0.0
    %2381 = vmatpush2.msra.mxu0 0.0
    %2382 = vmatprep.subr.mxu0 0.0
    %2383 = vmatpush2.msra.mxu0 0.0
    %2384 = vmatprep.subr.mxu0 0.0
    %2385 = vmatpush2.msra.mxu0 0.0
    %2386 = vmatprep.subr.mxu0 0.0
    %2387 = vmatpush2.msra.mxu0 0.0
    %2388 = vmatprep.subr.mxu0 0.0
    %2389 = vmatpush2.msra.mxu0 0.0
    %2390 = vmatprep.subr.mxu0 0.0
    %2391 = vmatpush2.msra.mxu0 0.0
    %2392 = vmatprep.mubr.f32.mxu0 0.0
    %2393 = vmatmul.mubr.f32.gmra.mxu0 %v2326
    %v2394 = vpop.f32.mrf.mxu0
    %v2395 = vadd.f32 0.0, %v2394
    %v2396 = vpop.f32.mrf.mxu0
    %2397 = vdwg.mxu0
    %v2398 = vadd.f32 %v2324, %v2395
    %v2399 = vld [vmem:[#allocation5 + $0xe] sm:$0x3]
    %v2401 = vsel %vm292, %v2321, 0
    %2403 = vmatprep.subr.mxu0 0.0
    %2404 = vmatpush1.msra.mxu0 0.0
    %2405 = vmatprep.subr.mxu0 0.0
    %2406 = vmatpush1.msra.mxu0 0.0
    %2407 = vmatprep.subr.mxu0 0.0
    %2408 = vmatpush1.msra.mxu0 0.0
    %2409 = vmatprep.subr.mxu0 0.0
    %2410 = vmatpush1.msra.mxu0 0.0
    %2411 = vmatprep.subr.mxu0 0.0
    %2412 = vmatpush1.msra.mxu0 0.0
    %2413 = vmatprep.subr.mxu0 0.0
    %2414 = vmatpush1.msra.mxu0 0.0
    %2415 = vmatprep.subr.mxu0 0.0
    %2416 = vmatpush1.msra.mxu0 0.0
    %2417 = vmatprep.subr.mxu0 0.0
    %2418 = vmatpush1.msra.mxu0 0.0
    %2419 = vmatprep.subr.mxu0 0.0
    %2420 = vmatpush1.msra.mxu0 0.0
    %2421 = vmatprep.subr.mxu0 0.0
    %2422 = vmatpush1.msra.mxu0 0.0
    %2423 = vmatprep.subr.mxu0 0.0
    %2424 = vmatpush1.msra.mxu0 0.0
    %2425 = vmatprep.subr.mxu0 0.0
    %2426 = vmatpush1.msra.mxu0 0.0
    %2427 = vmatprep.subr.mxu0 0.0
    %2428 = vmatpush1.msra.mxu0 %v2315
    %2429 = vmatprep.subr.mxu0 0.0
    %2430 = vmatpush1.msra.mxu0 %v2314
    %2431 = vmatprep.subr.mxu0 0.0
    %2432 = vmatpush1.msra.mxu0 %v2313
    %2433 = vmatprep.subr.mxu0 0.0
    %2434 = vmatpush1.msra.mxu0 %v2312
    %2435 = vmatprep.subr.mxu0 0.0
    %2436 = vmatpush2.msra.mxu0 0.0
    %2437 = vmatprep.subr.mxu0 0.0
    %2438 = vmatpush2.msra.mxu0 0.0
    %2439 = vmatprep.subr.mxu0 0.0
    %2440 = vmatpush2.msra.mxu0 0.0
    %2441 = vmatprep.subr.mxu0 0.0
    %2442 = vmatpush2.msra.mxu0 0.0
    %2443 = vmatprep.subr.mxu0 0.0
    %2444 = vmatpush2.msra.mxu0 0.0
    %2445 = vmatprep.subr.mxu0 0.0
    %2446 = vmatpush2.msra.mxu0 0.0
    %2447 = vmatprep.subr.mxu0 0.0
    %2448 = vmatpush2.msra.mxu0 0.0
    %2449 = vmatprep.subr.mxu0 0.0
    %2450 = vmatpush2.msra.mxu0 0.0
    %2451 = vmatprep.subr.mxu0 0.0
    %2452 = vmatpush2.msra.mxu0 0.0
    %2453 = vmatprep.subr.mxu0 0.0
    %2454 = vmatpush2.msra.mxu0 0.0
    %2455 = vmatprep.subr.mxu0 0.0
    %2456 = vmatpush2.msra.mxu0 0.0
    %2457 = vmatprep.subr.mxu0 0.0
    %2458 = vmatpush2.msra.mxu0 0.0
    %2459 = vmatprep.subr.mxu0 0.0
    %2460 = vmatpush2.msra.mxu0 0.0
    %2461 = vmatprep.subr.mxu0 0.0
    %2462 = vmatpush2.msra.mxu0 0.0
    %2463 = vmatprep.subr.mxu0 0.0
    %2464 = vmatpush2.msra.mxu0 0.0
    %2465 = vmatprep.subr.mxu0 0.0
    %2466 = vmatpush2.msra.mxu0 0.0
    %2467 = vmatprep.mubr.f32.mxu0 0.0
    %2468 = vmatmul.mubr.f32.gmra.mxu0 %v2401
    %v2469 = vpop.f32.mrf.mxu0
    %v2470 = vadd.f32 0.0, %v2469
    %v2471 = vpop.f32.mrf.mxu0
    %2472 = vdwg.mxu0
    %v2473 = vadd.f32 %v2399, %v2470
    %v2474 = vxor.u32 %v2398, 2147483648
    %v2475 = vmul.f32 %v2474, 1.442695
    %v2476 = vpow.pop %v2475
    %v2477 = vadd.f32 %v2476, 1.0
    %v2478 = vrcp.pop %v2477
    %v2479 = vmul.f32 1.0, %v2478
    %v2480 = vtanh.pop %v2398
    %2482 = vrot.lane.b32.xlu0 %v2319, 32
    %v2483 = vpop.permute.xlu0 %2482
    %v2485 = vmul.f32 %v2479, %v2483
    %2487 = vrot.lane.b32.xlu0 %v2480, 64
    %v2488 = vpop.permute.xlu0 %2487
    %v2490 = vmul.f32 %v2479, %v2488
    %2492 = vrot.lane.b32.xlu0 %v2490, 32
    %v2493 = vpop.permute.xlu0 %2492
    %v2495 = vadd.f32 %v2485, %v2493
    %v2496 = vtanh.pop %v2495
    %2498 = vrot.lane.b32.xlu0 %v2496, 64
    %v2499 = vpop.permute.xlu0 %2498
    %v2501 = vmul.f32 %v2479, %v2499
    %v2502 = vxor.u32 %v2473, 2147483648
    %v2503 = vmul.f32 %v2502, 1.442695
    %v2504 = vpow.pop %v2503
    %v2505 = vadd.f32 %v2504, 1.0
    %v2506 = vrcp.pop %v2505
    %v2507 = vmul.f32 1.0, %v2506
    %v2508 = vtanh.pop %v2473
    %2510 = vrot.lane.b32.xlu0 %v2323, 32
    %v2511 = vpop.permute.xlu0 %2510
    %v2513 = vmul.f32 %v2507, %v2511
    %2515 = vrot.lane.b32.xlu0 %v2508, 64
    %v2516 = vpop.permute.xlu0 %2515
    %v2518 = vmul.f32 %v2507, %v2516
    %2520 = vrot.lane.b32.xlu0 %v2518, 32
    %v2521 = vpop.permute.xlu0 %2520
    %v2523 = vadd.f32 %v2513, %v2521
    %v2524 = vtanh.pop %v2523
    %2526 = vrot.lane.b32.xlu0 %v2524, 64
    %v2527 = vpop.permute.xlu0 %2526
    %v2529 = vmul.f32 %v2507, %v2527
    %2531 = vrot.lane.b32.xlu0 %v2501, 32
    %v2532 = vpop.permute.xlu0 %2531
    %2534 = vst.msk [vmem:[#allocation2] sm:$0x3] %vm502, %v2532
    %2536 = vrot.lane.b32.xlu0 %v2529, 32
    %v2537 = vpop.permute.xlu0 %2536
    %2539 = vst.msk [vmem:[#allocation3 + $0xe] sm:$0x3] %vm502, %v2537
    %v2540 = vld [vmem:[#allocation4 + $0x2] sm:$0x3]
    %v2541 = vsel %vm292, %v2532, 0
    %2543 = vmatprep.subr.mxu0 0.0
    %2544 = vmatpush1.msra.mxu0 0.0
    %2545 = vmatprep.subr.mxu0 0.0
    %2546 = vmatpush1.msra.mxu0 0.0
    %2547 = vmatprep.subr.mxu0 0.0
    %2548 = vmatpush1.msra.mxu0 0.0
    %2549 = vmatprep.subr.mxu0 0.0
    %2550 = vmatpush1.msra.mxu0 0.0
    %2551 = vmatprep.subr.mxu0 0.0
    %2552 = vmatpush1.msra.mxu0 0.0
    %2553 = vmatprep.subr.mxu0 0.0
    %2554 = vmatpush1.msra.mxu0 0.0
    %2555 = vmatprep.subr.mxu0 0.0
    %2556 = vmatpush1.msra.mxu0 0.0
    %2557 = vmatprep.subr.mxu0 0.0
    %2558 = vmatpush1.msra.mxu0 0.0
    %2559 = vmatprep.subr.mxu0 0.0
    %2560 = vmatpush1.msra.mxu0 0.0
    %2561 = vmatprep.subr.mxu0 0.0
    %2562 = vmatpush1.msra.mxu0 0.0
    %2563 = vmatprep.subr.mxu0 0.0
    %2564 = vmatpush1.msra.mxu0 0.0
    %2565 = vmatprep.subr.mxu0 0.0
    %2566 = vmatpush1.msra.mxu0 0.0
    %2567 = vmatprep.subr.mxu0 0.0
    %2568 = vmatpush1.msra.mxu0 %v2310
    %2569 = vmatprep.subr.mxu0 0.0
    %2570 = vmatpush1.msra.mxu0 %v2309
    %2571 = vmatprep.subr.mxu0 0.0
    %2572 = vmatpush1.msra.mxu0 %v2308
    %2573 = vmatprep.subr.mxu0 0.0
    %2574 = vmatpush1.msra.mxu0 %v2307
    %2575 = vmatprep.subr.mxu0 0.0
    %2576 = vmatpush2.msra.mxu0 0.0
    %2577 = vmatprep.subr.mxu0 0.0
    %2578 = vmatpush2.msra.mxu0 0.0
    %2579 = vmatprep.subr.mxu0 0.0
    %2580 = vmatpush2.msra.mxu0 0.0
    %2581 = vmatprep.subr.mxu0 0.0
    %2582 = vmatpush2.msra.mxu0 0.0
    %2583 = vmatprep.subr.mxu0 0.0
    %2584 = vmatpush2.msra.mxu0 0.0
    %2585 = vmatprep.subr.mxu0 0.0
    %2586 = vmatpush2.msra.mxu0 0.0
    %2587 = vmatprep.subr.mxu0 0.0
    %2588 = vmatpush2.msra.mxu0 0.0
    %2589 = vmatprep.subr.mxu0 0.0
    %2590 = vmatpush2.msra.mxu0 0.0
    %2591 = vmatprep.subr.mxu0 0.0
    %2592 = vmatpush2.msra.mxu0 0.0
    %2593 = vmatprep.subr.mxu0 0.0
    %2594 = vmatpush2.msra.mxu0 0.0
    %2595 = vmatprep.subr.mxu0 0.0
    %2596 = vmatpush2.msra.mxu0 0.0
    %2597 = vmatprep.subr.mxu0 0.0
    %2598 = vmatpush2.msra.mxu0 0.0
    %2599 = vmatprep.subr.mxu0 0.0
    %2600 = vmatpush2.msra.mxu0 0.0
    %2601 = vmatprep.subr.mxu0 0.0
    %2602 = vmatpush2.msra.mxu0 0.0
    %2603 = vmatprep.subr.mxu0 0.0
    %2604 = vmatpush2.msra.mxu0 0.0
    %2605 = vmatprep.subr.mxu0 0.0
    %2606 = vmatpush2.msra.mxu0 0.0
    %2607 = vmatprep.mubr.f32.mxu0 0.0
    %2608 = vmatmul.mubr.f32.gmra.mxu0 %v2541
    %v2609 = vpop.f32.mrf.mxu0
    %v2610 = vadd.f32 0.0, %v2609
    %v2611 = vpop.f32.mrf.mxu0
    %2612 = vdwg.mxu0
    %v2613 = vadd.f32 %v2540, %v2610
    %v2614 = vld [vmem:[#allocation5 + $0xc] sm:$0x3]
    %v2615 = vsel %vm292, %v2537, 0
    %2617 = vmatprep.subr.mxu0 0.0
    %2618 = vmatpush1.msra.mxu0 0.0
    %2619 = vmatprep.subr.mxu0 0.0
    %2620 = vmatpush1.msra.mxu0 0.0
    %2621 = vmatprep.subr.mxu0 0.0
    %2622 = vmatpush1.msra.mxu0 0.0
    %2623 = vmatprep.subr.mxu0 0.0
    %2624 = vmatpush1.msra.mxu0 0.0
    %2625 = vmatprep.subr.mxu0 0.0
    %2626 = vmatpush1.msra.mxu0 0.0
    %2627 = vmatprep.subr.mxu0 0.0
    %2628 = vmatpush1.msra.mxu0 0.0
    %2629 = vmatprep.subr.mxu0 0.0
    %2630 = vmatpush1.msra.mxu0 0.0
    %2631 = vmatprep.subr.mxu0 0.0
    %2632 = vmatpush1.msra.mxu0 0.0
    %2633 = vmatprep.subr.mxu0 0.0
    %2634 = vmatpush1.msra.mxu0 0.0
    %2635 = vmatprep.subr.mxu0 0.0
    %2636 = vmatpush1.msra.mxu0 0.0
    %2637 = vmatprep.subr.mxu0 0.0
    %2638 = vmatpush1.msra.mxu0 0.0
    %2639 = vmatprep.subr.mxu0 0.0
    %2640 = vmatpush1.msra.mxu0 0.0
    %2641 = vmatprep.subr.mxu0 0.0
    %2642 = vmatpush1.msra.mxu0 %v2315
    %2643 = vmatprep.subr.mxu0 0.0
    %2644 = vmatpush1.msra.mxu0 %v2314
    %2645 = vmatprep.subr.mxu0 0.0
    %2646 = vmatpush1.msra.mxu0 %v2313
    %2647 = vmatprep.subr.mxu0 0.0
    %2648 = vmatpush1.msra.mxu0 %v2312
    %2649 = vmatprep.subr.mxu0 0.0
    %2650 = vmatpush2.msra.mxu0 0.0
    %2651 = vmatprep.subr.mxu0 0.0
    %2652 = vmatpush2.msra.mxu0 0.0
    %2653 = vmatprep.subr.mxu0 0.0
    %2654 = vmatpush2.msra.mxu0 0.0
    %2655 = vmatprep.subr.mxu0 0.0
    %2656 = vmatpush2.msra.mxu0 0.0
    %2657 = vmatprep.subr.mxu0 0.0
    %2658 = vmatpush2.msra.mxu0 0.0
    %2659 = vmatprep.subr.mxu0 0.0
    %2660 = vmatpush2.msra.mxu0 0.0
    %2661 = vmatprep.subr.mxu0 0.0
    %2662 = vmatpush2.msra.mxu0 0.0
    %2663 = vmatprep.subr.mxu0 0.0
    %2664 = vmatpush2.msra.mxu0 0.0
    %2665 = vmatprep.subr.mxu0 0.0
    %2666 = vmatpush2.msra.mxu0 0.0
    %2667 = vmatprep.subr.mxu0 0.0
    %2668 = vmatpush2.msra.mxu0 0.0
    %2669 = vmatprep.subr.mxu0 0.0
    %2670 = vmatpush2.msra.mxu0 0.0
    %2671 = vmatprep.subr.mxu0 0.0
    %2672 = vmatpush2.msra.mxu0 0.0
    %2673 = vmatprep.subr.mxu0 0.0
    %2674 = vmatpush2.msra.mxu0 0.0
    %2675 = vmatprep.subr.mxu0 0.0
    %2676 = vmatpush2.msra.mxu0 0.0
    %2677 = vmatprep.subr.mxu0 0.0
    %2678 = vmatpush2.msra.mxu0 0.0
    %2679 = vmatprep.subr.mxu0 0.0
    %2680 = vmatpush2.msra.mxu0 0.0
    %2681 = vmatprep.mubr.f32.mxu0 0.0
    %2682 = vmatmul.mubr.f32.gmra.mxu0 %v2615
    %v2683 = vpop.f32.mrf.mxu0
    %v2684 = vadd.f32 0.0, %v2683
    %v2685 = vpop.f32.mrf.mxu0
    %2686 = vdwg.mxu0
    %v2687 = vadd.f32 %v2614, %v2684
    %v2688 = vxor.u32 %v2613, 2147483648
    %v2689 = vmul.f32 %v2688, 1.442695
    %v2690 = vpow.pop %v2689
    %v2691 = vadd.f32 %v2690, 1.0
    %v2692 = vrcp.pop %v2691
    %v2693 = vmul.f32 1.0, %v2692
    %v2694 = vtanh.pop %v2613
    %v2695 = vmul.f32 %v2693, %v2495
    %2697 = vrot.lane.b32.xlu0 %v2694, 64
    %v2698 = vpop.permute.xlu0 %2697
    %v2700 = vmul.f32 %v2693, %v2698
    %2702 = vrot.lane.b32.xlu0 %v2700, 32
    %v2703 = vpop.permute.xlu0 %2702
    %v2705 = vadd.f32 %v2695, %v2703
    %v2706 = vtanh.pop %v2705
    %2708 = vrot.lane.b32.xlu0 %v2706, 64
    %v2709 = vpop.permute.xlu0 %2708
    %v2711 = vmul.f32 %v2693, %v2709
    %v2712 = vxor.u32 %v2687, 2147483648
    %v2713 = vmul.f32 %v2712, 1.442695
    %v2714 = vpow.pop %v2713
    %v2715 = vadd.f32 %v2714, 1.0
    %v2716 = vrcp.pop %v2715
    %v2717 = vmul.f32 1.0, %v2716
    %v2718 = vtanh.pop %v2687
    %v2719 = vmul.f32 %v2717, %v2523
    %2721 = vrot.lane.b32.xlu0 %v2718, 64
    %v2722 = vpop.permute.xlu0 %2721
    %v2724 = vmul.f32 %v2717, %v2722
    %2726 = vrot.lane.b32.xlu0 %v2724, 32
    %v2727 = vpop.permute.xlu0 %2726
    %v2729 = vadd.f32 %v2719, %v2727
    %v2730 = vtanh.pop %v2729
    %2732 = vrot.lane.b32.xlu0 %v2730, 64
    %v2733 = vpop.permute.xlu0 %2732
    %v2735 = vmul.f32 %v2717, %v2733
    %2737 = vrot.lane.b32.xlu0 %v2711, 32
    %v2738 = vpop.permute.xlu0 %2737
    %2740 = vst.msk [vmem:[#allocation2 + $0x2] sm:$0x3] %vm502, %v2738
    %2742 = vrot.lane.b32.xlu0 %v2735, 32
    %v2743 = vpop.permute.xlu0 %2742
    %2745 = vst.msk [vmem:[#allocation3 + $0xc] sm:$0x3] %vm502, %v2743
    %v2746 = vld [vmem:[#allocation4 + $0x4] sm:$0x3]
    %v2747 = vsel %vm292, %v2738, 0
    %2749 = vmatprep.subr.mxu0 0.0
    %2750 = vmatpush1.msra.mxu0 0.0
    %2751 = vmatprep.subr.mxu0 0.0
    %2752 = vmatpush1.msra.mxu0 0.0
    %2753 = vmatprep.subr.mxu0 0.0
    %2754 = vmatpush1.msra.mxu0 0.0
    %2755 = vmatprep.subr.mxu0 0.0
    %2756 = vmatpush1.msra.mxu0 0.0
    %2757 = vmatprep.subr.mxu0 0.0
    %2758 = vmatpush1.msra.mxu0 0.0
    %2759 = vmatprep.subr.mxu0 0.0
    %2760 = vmatpush1.msra.mxu0 0.0
    %2761 = vmatprep.subr.mxu0 0.0
    %2762 = vmatpush1.msra.mxu0 0.0
    %2763 = vmatprep.subr.mxu0 0.0
    %2764 = vmatpush1.msra.mxu0 0.0
    %2765 = vmatprep.subr.mxu0 0.0
    %2766 = vmatpush1.msra.mxu0 0.0
    %2767 = vmatprep.subr.mxu0 0.0
    %2768 = vmatpush1.msra.mxu0 0.0
    %2769 = vmatprep.subr.mxu0 0.0
    %2770 = vmatpush1.msra.mxu0 0.0
    %2771 = vmatprep.subr.mxu0 0.0
    %2772 = vmatpush1.msra.mxu0 0.0
    %2773 = vmatprep.subr.mxu0 0.0
    %2774 = vmatpush1.msra.mxu0 %v2310
    %2775 = vmatprep.subr.mxu0 0.0
    %2776 = vmatpush1.msra.mxu0 %v2309
    %2777 = vmatprep.subr.mxu0 0.0
    %2778 = vmatpush1.msra.mxu0 %v2308
    %2779 = vmatprep.subr.mxu0 0.0
    %2780 = vmatpush1.msra.mxu0 %v2307
    %2781 = vmatprep.subr.mxu0 0.0
    %2782 = vmatpush2.msra.mxu0 0.0
    %2783 = vmatprep.subr.mxu0 0.0
    %2784 = vmatpush2.msra.mxu0 0.0
    %2785 = vmatprep.subr.mxu0 0.0
    %2786 = vmatpush2.msra.mxu0 0.0
    %2787 = vmatprep.subr.mxu0 0.0
    %2788 = vmatpush2.msra.mxu0 0.0
    %2789 = vmatprep.subr.mxu0 0.0
    %2790 = vmatpush2.msra.mxu0 0.0
    %2791 = vmatprep.subr.mxu0 0.0
    %2792 = vmatpush2.msra.mxu0 0.0
    %2793 = vmatprep.subr.mxu0 0.0
    %2794 = vmatpush2.msra.mxu0 0.0
    %2795 = vmatprep.subr.mxu0 0.0
    %2796 = vmatpush2.msra.mxu0 0.0
    %2797 = vmatprep.subr.mxu0 0.0
    %2798 = vmatpush2.msra.mxu0 0.0
    %2799 = vmatprep.subr.mxu0 0.0
    %2800 = vmatpush2.msra.mxu0 0.0
    %2801 = vmatprep.subr.mxu0 0.0
    %2802 = vmatpush2.msra.mxu0 0.0
    %2803 = vmatprep.subr.mxu0 0.0
    %2804 = vmatpush2.msra.mxu0 0.0
    %2805 = vmatprep.subr.mxu0 0.0
    %2806 = vmatpush2.msra.mxu0 0.0
    %2807 = vmatprep.subr.mxu0 0.0
    %2808 = vmatpush2.msra.mxu0 0.0
    %2809 = vmatprep.subr.mxu0 0.0
    %2810 = vmatpush2.msra.mxu0 0.0
    %2811 = vmatprep.subr.mxu0 0.0
    %2812 = vmatpush2.msra.mxu0 0.0
    %2813 = vmatprep.mubr.f32.mxu0 0.0
    %2814 = vmatmul.mubr.f32.gmra.mxu0 %v2747
    %v2815 = vpop.f32.mrf.mxu0
    %v2816 = vadd.f32 0.0, %v2815
    %v2817 = vpop.f32.mrf.mxu0
    %2818 = vdwg.mxu0
    %v2819 = vadd.f32 %v2746, %v2816
    %v2820 = vld [vmem:[#allocation5 + $0xa] sm:$0x3]
    %v2821 = vsel %vm292, %v2743, 0
    %2823 = vmatprep.subr.mxu0 0.0
    %2824 = vmatpush1.msra.mxu0 0.0
    %2825 = vmatprep.subr.mxu0 0.0
    %2826 = vmatpush1.msra.mxu0 0.0
    %2827 = vmatprep.subr.mxu0 0.0
    %2828 = vmatpush1.msra.mxu0 0.0
    %2829 = vmatprep.subr.mxu0 0.0
    %2830 = vmatpush1.msra.mxu0 0.0
    %2831 = vmatprep.subr.mxu0 0.0
    %2832 = vmatpush1.msra.mxu0 0.0
    %2833 = vmatprep.subr.mxu0 0.0
    %2834 = vmatpush1.msra.mxu0 0.0
    %2835 = vmatprep.subr.mxu0 0.0
    %2836 = vmatpush1.msra.mxu0 0.0
    %2837 = vmatprep.subr.mxu0 0.0
    %2838 = vmatpush1.msra.mxu0 0.0
    %2839 = vmatprep.subr.mxu0 0.0
    %2840 = vmatpush1.msra.mxu0 0.0
    %2841 = vmatprep.subr.mxu0 0.0
    %2842 = vmatpush1.msra.mxu0 0.0
    %2843 = vmatprep.subr.mxu0 0.0
    %2844 = vmatpush1.msra.mxu0 0.0
    %2845 = vmatprep.subr.mxu0 0.0
    %2846 = vmatpush1.msra.mxu0 0.0
    %2847 = vmatprep.subr.mxu0 0.0
    %2848 = vmatpush1.msra.mxu0 %v2315
    %2849 = vmatprep.subr.mxu0 0.0
    %2850 = vmatpush1.msra.mxu0 %v2314
    %2851 = vmatprep.subr.mxu0 0.0
    %2852 = vmatpush1.msra.mxu0 %v2313
    %2853 = vmatprep.subr.mxu0 0.0
    %2854 = vmatpush1.msra.mxu0 %v2312
    %2855 = vmatprep.subr.mxu0 0.0
    %2856 = vmatpush2.msra.mxu0 0.0
    %2857 = vmatprep.subr.mxu0 0.0
    %2858 = vmatpush2.msra.mxu0 0.0
    %2859 = vmatprep.subr.mxu0 0.0
    %2860 = vmatpush2.msra.mxu0 0.0
    %2861 = vmatprep.subr.mxu0 0.0
    %2862 = vmatpush2.msra.mxu0 0.0
    %2863 = vmatprep.subr.mxu0 0.0
    %2864 = vmatpush2.msra.mxu0 0.0
    %2865 = vmatprep.subr.mxu0 0.0
    %2866 = vmatpush2.msra.mxu0 0.0
    %2867 = vmatprep.subr.mxu0 0.0
    %2868 = vmatpush2.msra.mxu0 0.0
    %2869 = vmatprep.subr.mxu0 0.0
    %2870 = vmatpush2.msra.mxu0 0.0
    %2871 = vmatprep.subr.mxu0 0.0
    %2872 = vmatpush2.msra.mxu0 0.0
    %2873 = vmatprep.subr.mxu0 0.0
    %2874 = vmatpush2.msra.mxu0 0.0
    %2875 = vmatprep.subr.mxu0 0.0
    %2876 = vmatpush2.msra.mxu0 0.0
    %2877 = vmatprep.subr.mxu0 0.0
    %2878 = vmatpush2.msra.mxu0 0.0
    %2879 = vmatprep.subr.mxu0 0.0
    %2880 = vmatpush2.msra.mxu0 0.0
    %2881 = vmatprep.subr.mxu0 0.0
    %2882 = vmatpush2.msra.mxu0 0.0
    %2883 = vmatprep.subr.mxu0 0.0
    %2884 = vmatpush2.msra.mxu0 0.0
    %2885 = vmatprep.subr.mxu0 0.0
    %2886 = vmatpush2.msra.mxu0 0.0
    %2887 = vmatprep.mubr.f32.mxu0 0.0
    %2888 = vmatmul.mubr.f32.gmra.mxu0 %v2821
    %v2889 = vpop.f32.mrf.mxu0
    %v2890 = vadd.f32 0.0, %v2889
    %v2891 = vpop.f32.mrf.mxu0
    %2892 = vdwg.mxu0
    %v2893 = vadd.f32 %v2820, %v2890
    %v2894 = vxor.u32 %v2819, 2147483648
    %v2895 = vmul.f32 %v2894, 1.442695
    %v2896 = vpow.pop %v2895
    %v2897 = vadd.f32 %v2896, 1.0
    %v2898 = vrcp.pop %v2897
    %v2899 = vmul.f32 1.0, %v2898
    %v2900 = vtanh.pop %v2819
    %v2901 = vmul.f32 %v2899, %v2705
    %2903 = vrot.lane.b32.xlu0 %v2900, 64
    %v2904 = vpop.permute.xlu0 %2903
    %v2906 = vmul.f32 %v2899, %v2904
    %2908 = vrot.lane.b32.xlu0 %v2906, 32
    %v2909 = vpop.permute.xlu0 %2908
    %v2911 = vadd.f32 %v2901, %v2909
    %v2912 = vtanh.pop %v2911
    %2914 = vrot.lane.b32.xlu0 %v2912, 64
    %v2915 = vpop.permute.xlu0 %2914
    %v2917 = vmul.f32 %v2899, %v2915
    %v2918 = vxor.u32 %v2893, 2147483648
    %v2919 = vmul.f32 %v2918, 1.442695
    %v2920 = vpow.pop %v2919
    %v2921 = vadd.f32 %v2920, 1.0
    %v2922 = vrcp.pop %v2921
    %v2923 = vmul.f32 1.0, %v2922
    %v2924 = vtanh.pop %v2893
    %v2925 = vmul.f32 %v2923, %v2729
    %2927 = vrot.lane.b32.xlu0 %v2924, 64
    %v2928 = vpop.permute.xlu0 %2927
    %v2930 = vmul.f32 %v2923, %v2928
    %2932 = vrot.lane.b32.xlu0 %v2930, 32
    %v2933 = vpop.permute.xlu0 %2932
    %v2935 = vadd.f32 %v2925, %v2933
    %v2936 = vtanh.pop %v2935
    %2938 = vrot.lane.b32.xlu0 %v2936, 64
    %v2939 = vpop.permute.xlu0 %2938
    %v2941 = vmul.f32 %v2923, %v2939
    %2943 = vrot.lane.b32.xlu0 %v2917, 32
    %v2944 = vpop.permute.xlu0 %2943
    %2946 = vst.msk [vmem:[#allocation2 + $0x4] sm:$0x3] %vm502, %v2944
    %2948 = vrot.lane.b32.xlu0 %v2941, 32
    %v2949 = vpop.permute.xlu0 %2948
    %2951 = vst.msk [vmem:[#allocation3 + $0xa] sm:$0x3] %vm502, %v2949
    %v2952 = vld [vmem:[#allocation4 + $0x6] sm:$0x3]
    %v2953 = vsel %vm292, %v2944, 0
    %2955 = vmatprep.subr.mxu0 0.0
    %2956 = vmatpush1.msra.mxu0 0.0
    %2957 = vmatprep.subr.mxu0 0.0
    %2958 = vmatpush1.msra.mxu0 0.0
    %2959 = vmatprep.subr.mxu0 0.0
    %2960 = vmatpush1.msra.mxu0 0.0
    %2961 = vmatprep.subr.mxu0 0.0
    %2962 = vmatpush1.msra.mxu0 0.0
    %2963 = vmatprep.subr.mxu0 0.0
    %2964 = vmatpush1.msra.mxu0 0.0
    %2965 = vmatprep.subr.mxu0 0.0
    %2966 = vmatpush1.msra.mxu0 0.0
    %2967 = vmatprep.subr.mxu0 0.0
    %2968 = vmatpush1.msra.mxu0 0.0
    %2969 = vmatprep.subr.mxu0 0.0
    %2970 = vmatpush1.msra.mxu0 0.0
    %2971 = vmatprep.subr.mxu0 0.0
    %2972 = vmatpush1.msra.mxu0 0.0
    %2973 = vmatprep.subr.mxu0 0.0
    %2974 = vmatpush1.msra.mxu0 0.0
    %2975 = vmatprep.subr.mxu0 0.0
    %2976 = vmatpush1.msra.mxu0 0.0
    %2977 = vmatprep.subr.mxu0 0.0
    %2978 = vmatpush1.msra.mxu0 0.0
    %2979 = vmatprep.subr.mxu0 0.0
    %2980 = vmatpush1.msra.mxu0 %v2310
    %2981 = vmatprep.subr.mxu0 0.0
    %2982 = vmatpush1.msra.mxu0 %v2309
    %2983 = vmatprep.subr.mxu0 0.0
    %2984 = vmatpush1.msra.mxu0 %v2308
    %2985 = vmatprep.subr.mxu0 0.0
    %2986 = vmatpush1.msra.mxu0 %v2307
    %2987 = vmatprep.subr.mxu0 0.0
    %2988 = vmatpush2.msra.mxu0 0.0
    %2989 = vmatprep.subr.mxu0 0.0
    %2990 = vmatpush2.msra.mxu0 0.0
    %2991 = vmatprep.subr.mxu0 0.0
    %2992 = vmatpush2.msra.mxu0 0.0
    %2993 = vmatprep.subr.mxu0 0.0
    %2994 = vmatpush2.msra.mxu0 0.0
    %2995 = vmatprep.subr.mxu0 0.0
    %2996 = vmatpush2.msra.mxu0 0.0
    %2997 = vmatprep.subr.mxu0 0.0
    %2998 = vmatpush2.msra.mxu0 0.0
    %2999 = vmatprep.subr.mxu0 0.0
    %3000 = vmatpush2.msra.mxu0 0.0
    %3001 = vmatprep.subr.mxu0 0.0
    %3002 = vmatpush2.msra.mxu0 0.0
    %3003 = vmatprep.subr.mxu0 0.0
    %3004 = vmatpush2.msra.mxu0 0.0
    %3005 = vmatprep.subr.mxu0 0.0
    %3006 = vmatpush2.msra.mxu0 0.0
    %3007 = vmatprep.subr.mxu0 0.0
    %3008 = vmatpush2.msra.mxu0 0.0
    %3009 = vmatprep.subr.mxu0 0.0
    %3010 = vmatpush2.msra.mxu0 0.0
    %3011 = vmatprep.subr.mxu0 0.0
    %3012 = vmatpush2.msra.mxu0 0.0
    %3013 = vmatprep.subr.mxu0 0.0
    %3014 = vmatpush2.msra.mxu0 0.0
    %3015 = vmatprep.subr.mxu0 0.0
    %3016 = vmatpush2.msra.mxu0 0.0
    %3017 = vmatprep.subr.mxu0 0.0
    %3018 = vmatpush2.msra.mxu0 0.0
    %3019 = vmatprep.mubr.f32.mxu0 0.0
    %3020 = vmatmul.mubr.f32.gmra.mxu0 %v2953
    %v3021 = vpop.f32.mrf.mxu0
    %v3022 = vadd.f32 0.0, %v3021
    %v3023 = vpop.f32.mrf.mxu0
    %3024 = vdwg.mxu0
    %v3025 = vadd.f32 %v2952, %v3022
    %v3026 = vld [vmem:[#allocation5 + $0x8] sm:$0x3]
    %v3027 = vsel %vm292, %v2949, 0
    %3029 = vmatprep.subr.mxu0 0.0
    %3030 = vmatpush1.msra.mxu0 0.0
    %3031 = vmatprep.subr.mxu0 0.0
    %3032 = vmatpush1.msra.mxu0 0.0
    %3033 = vmatprep.subr.mxu0 0.0
    %3034 = vmatpush1.msra.mxu0 0.0
    %3035 = vmatprep.subr.mxu0 0.0
    %3036 = vmatpush1.msra.mxu0 0.0
    %3037 = vmatprep.subr.mxu0 0.0
    %3038 = vmatpush1.msra.mxu0 0.0
    %3039 = vmatprep.subr.mxu0 0.0
    %3040 = vmatpush1.msra.mxu0 0.0
    %3041 = vmatprep.subr.mxu0 0.0
    %3042 = vmatpush1.msra.mxu0 0.0
    %3043 = vmatprep.subr.mxu0 0.0
    %3044 = vmatpush1.msra.mxu0 0.0
    %3045 = vmatprep.subr.mxu0 0.0
    %3046 = vmatpush1.msra.mxu0 0.0
    %3047 = vmatprep.subr.mxu0 0.0
    %3048 = vmatpush1.msra.mxu0 0.0
    %3049 = vmatprep.subr.mxu0 0.0
    %3050 = vmatpush1.msra.mxu0 0.0
    %3051 = vmatprep.subr.mxu0 0.0
    %3052 = vmatpush1.msra.mxu0 0.0
    %3053 = vmatprep.subr.mxu0 0.0
    %3054 = vmatpush1.msra.mxu0 %v2315
    %3055 = vmatprep.subr.mxu0 0.0
    %3056 = vmatpush1.msra.mxu0 %v2314
    %3057 = vmatprep.subr.mxu0 0.0
    %3058 = vmatpush1.msra.mxu0 %v2313
    %3059 = vmatprep.subr.mxu0 0.0
    %3060 = vmatpush1.msra.mxu0 %v2312
    %3061 = vmatprep.subr.mxu0 0.0
    %3062 = vmatpush2.msra.mxu0 0.0
    %3063 = vmatprep.subr.mxu0 0.0
    %3064 = vmatpush2.msra.mxu0 0.0
    %3065 = vmatprep.subr.mxu0 0.0
    %3066 = vmatpush2.msra.mxu0 0.0
    %3067 = vmatprep.subr.mxu0 0.0
    %3068 = vmatpush2.msra.mxu0 0.0
    %3069 = vmatprep.subr.mxu0 0.0
    %3070 = vmatpush2.msra.mxu0 0.0
    %3071 = vmatprep.subr.mxu0 0.0
    %3072 = vmatpush2.msra.mxu0 0.0
    %3073 = vmatprep.subr.mxu0 0.0
    %3074 = vmatpush2.msra.mxu0 0.0
    %3075 = vmatprep.subr.mxu0 0.0
    %3076 = vmatpush2.msra.mxu0 0.0
    %3077 = vmatprep.subr.mxu0 0.0
    %3078 = vmatpush2.msra.mxu0 0.0
    %3079 = vmatprep.subr.mxu0 0.0
    %3080 = vmatpush2.msra.mxu0 0.0
    %3081 = vmatprep.subr.mxu0 0.0
    %3082 = vmatpush2.msra.mxu0 0.0
    %3083 = vmatprep.subr.mxu0 0.0
    %3084 = vmatpush2.msra.mxu0 0.0
    %3085 = vmatprep.subr.mxu0 0.0
    %3086 = vmatpush2.msra.mxu0 0.0
    %3087 = vmatprep.subr.mxu0 0.0
    %3088 = vmatpush2.msra.mxu0 0.0
    %3089 = vmatprep.subr.mxu0 0.0
    %3090 = vmatpush2.msra.mxu0 0.0
    %3091 = vmatprep.subr.mxu0 0.0
    %3092 = vmatpush2.msra.mxu0 0.0
    %3093 = vmatprep.mubr.f32.mxu0 0.0
    %3094 = vmatmul.mubr.f32.gmra.mxu0 %v3027
    %v3095 = vpop.f32.mrf.mxu0
    %v3096 = vadd.f32 0.0, %v3095
    %v3097 = vpop.f32.mrf.mxu0
    %3098 = vdwg.mxu0
    %v3099 = vadd.f32 %v3026, %v3096
    %v3100 = vxor.u32 %v3025, 2147483648
    %v3101 = vmul.f32 %v3100, 1.442695
    %v3102 = vpow.pop %v3101
    %v3103 = vadd.f32 %v3102, 1.0
    %v3104 = vrcp.pop %v3103
    %v3105 = vmul.f32 1.0, %v3104
    %v3106 = vtanh.pop %v3025
    %v3107 = vmul.f32 %v3105, %v2911
    %3109 = vrot.lane.b32.xlu0 %v3106, 64
    %v3110 = vpop.permute.xlu0 %3109
    %v3112 = vmul.f32 %v3105, %v3110
    %3114 = vrot.lane.b32.xlu0 %v3112, 32
    %v3115 = vpop.permute.xlu0 %3114
    %v3117 = vadd.f32 %v3107, %v3115
    %v3118 = vtanh.pop %v3117
    %3120 = vrot.lane.b32.xlu0 %v3118, 64
    %v3121 = vpop.permute.xlu0 %3120
    %v3123 = vmul.f32 %v3105, %v3121
    %v3124 = vxor.u32 %v3099, 2147483648
    %v3125 = vmul.f32 %v3124, 1.442695
    %v3126 = vpow.pop %v3125
    %v3127 = vadd.f32 %v3126, 1.0
    %v3128 = vrcp.pop %v3127
    %v3129 = vmul.f32 1.0, %v3128
    %v3130 = vtanh.pop %v3099
    %v3131 = vmul.f32 %v3129, %v2935
    %3133 = vrot.lane.b32.xlu0 %v3130, 64
    %v3134 = vpop.permute.xlu0 %3133
    %v3136 = vmul.f32 %v3129, %v3134
    %3138 = vrot.lane.b32.xlu0 %v3136, 32
    %v3139 = vpop.permute.xlu0 %3138
    %v3141 = vadd.f32 %v3131, %v3139
    %v3142 = vtanh.pop %v3141
    %3144 = vrot.lane.b32.xlu0 %v3142, 64
    %v3145 = vpop.permute.xlu0 %3144
    %v3147 = vmul.f32 %v3129, %v3145
    %3149 = vrot.lane.b32.xlu0 %v3123, 32
    %v3150 = vpop.permute.xlu0 %3149
    %3152 = vst.msk [vmem:[#allocation2 + $0x6] sm:$0x3] %vm502, %v3150
    %3154 = vrot.lane.b32.xlu0 %v3147, 32
    %v3155 = vpop.permute.xlu0 %3154
    %3157 = vst.msk [vmem:[#allocation3 + $0x8] sm:$0x3] %vm502, %v3155
    %v3158 = vld [vmem:[#allocation4 + $0x8] sm:$0x3]
    %v3159 = vsel %vm292, %v3150, 0
    %3161 = vmatprep.subr.mxu0 0.0
    %3162 = vmatpush1.msra.mxu0 0.0
    %3163 = vmatprep.subr.mxu0 0.0
    %3164 = vmatpush1.msra.mxu0 0.0
    %3165 = vmatprep.subr.mxu0 0.0
    %3166 = vmatpush1.msra.mxu0 0.0
    %3167 = vmatprep.subr.mxu0 0.0
    %3168 = vmatpush1.msra.mxu0 0.0
    %3169 = vmatprep.subr.mxu0 0.0
    %3170 = vmatpush1.msra.mxu0 0.0
    %3171 = vmatprep.subr.mxu0 0.0
    %3172 = vmatpush1.msra.mxu0 0.0
    %3173 = vmatprep.subr.mxu0 0.0
    %3174 = vmatpush1.msra.mxu0 0.0
    %3175 = vmatprep.subr.mxu0 0.0
    %3176 = vmatpush1.msra.mxu0 0.0
    %3177 = vmatprep.subr.mxu0 0.0
    %3178 = vmatpush1.msra.mxu0 0.0
    %3179 = vmatprep.subr.mxu0 0.0
    %3180 = vmatpush1.msra.mxu0 0.0
    %3181 = vmatprep.subr.mxu0 0.0
    %3182 = vmatpush1.msra.mxu0 0.0
    %3183 = vmatprep.subr.mxu0 0.0
    %3184 = vmatpush1.msra.mxu0 0.0
    %3185 = vmatprep.subr.mxu0 0.0
    %3186 = vmatpush1.msra.mxu0 %v2310
    %3187 = vmatprep.subr.mxu0 0.0
    %3188 = vmatpush1.msra.mxu0 %v2309
    %3189 = vmatprep.subr.mxu0 0.0
    %3190 = vmatpush1.msra.mxu0 %v2308
    %3191 = vmatprep.subr.mxu0 0.0
    %3192 = vmatpush1.msra.mxu0 %v2307
    %3193 = vmatprep.subr.mxu0 0.0
    %3194 = vmatpush2.msra.mxu0 0.0
    %3195 = vmatprep.subr.mxu0 0.0
    %3196 = vmatpush2.msra.mxu0 0.0
    %3197 = vmatprep.subr.mxu0 0.0
    %3198 = vmatpush2.msra.mxu0 0.0
    %3199 = vmatprep.subr.mxu0 0.0
    %3200 = vmatpush2.msra.mxu0 0.0
    %3201 = vmatprep.subr.mxu0 0.0
    %3202 = vmatpush2.msra.mxu0 0.0
    %3203 = vmatprep.subr.mxu0 0.0
    %3204 = vmatpush2.msra.mxu0 0.0
    %3205 = vmatprep.subr.mxu0 0.0
    %3206 = vmatpush2.msra.mxu0 0.0
    %3207 = vmatprep.subr.mxu0 0.0
    %3208 = vmatpush2.msra.mxu0 0.0
    %3209 = vmatprep.subr.mxu0 0.0
    %3210 = vmatpush2.msra.mxu0 0.0
    %3211 = vmatprep.subr.mxu0 0.0
    %3212 = vmatpush2.msra.mxu0 0.0
    %3213 = vmatprep.subr.mxu0 0.0
    %3214 = vmatpush2.msra.mxu0 0.0
    %3215 = vmatprep.subr.mxu0 0.0
    %3216 = vmatpush2.msra.mxu0 0.0
    %3217 = vmatprep.subr.mxu0 0.0
    %3218 = vmatpush2.msra.mxu0 0.0
    %3219 = vmatprep.subr.mxu0 0.0
    %3220 = vmatpush2.msra.mxu0 0.0
    %3221 = vmatprep.subr.mxu0 0.0
    %3222 = vmatpush2.msra.mxu0 0.0
    %3223 = vmatprep.subr.mxu0 0.0
    %3224 = vmatpush2.msra.mxu0 0.0
    %3225 = vmatprep.mubr.f32.mxu0 0.0
    %3226 = vmatmul.mubr.f32.gmra.mxu0 %v3159
    %v3227 = vpop.f32.mrf.mxu0
    %v3228 = vadd.f32 0.0, %v3227
    %v3229 = vpop.f32.mrf.mxu0
    %3230 = vdwg.mxu0
    %v3231 = vadd.f32 %v3158, %v3228
    %v3232 = vld [vmem:[#allocation5 + $0x6] sm:$0x3]
    %v3233 = vsel %vm292, %v3155, 0
    %3235 = vmatprep.subr.mxu0 0.0
    %3236 = vmatpush1.msra.mxu0 0.0
    %3237 = vmatprep.subr.mxu0 0.0
    %3238 = vmatpush1.msra.mxu0 0.0
    %3239 = vmatprep.subr.mxu0 0.0
    %3240 = vmatpush1.msra.mxu0 0.0
    %3241 = vmatprep.subr.mxu0 0.0
    %3242 = vmatpush1.msra.mxu0 0.0
    %3243 = vmatprep.subr.mxu0 0.0
    %3244 = vmatpush1.msra.mxu0 0.0
    %3245 = vmatprep.subr.mxu0 0.0
    %3246 = vmatpush1.msra.mxu0 0.0
    %3247 = vmatprep.subr.mxu0 0.0
    %3248 = vmatpush1.msra.mxu0 0.0
    %3249 = vmatprep.subr.mxu0 0.0
    %3250 = vmatpush1.msra.mxu0 0.0
    %3251 = vmatprep.subr.mxu0 0.0
    %3252 = vmatpush1.msra.mxu0 0.0
    %3253 = vmatprep.subr.mxu0 0.0
    %3254 = vmatpush1.msra.mxu0 0.0
    %3255 = vmatprep.subr.mxu0 0.0
    %3256 = vmatpush1.msra.mxu0 0.0
    %3257 = vmatprep.subr.mxu0 0.0
    %3258 = vmatpush1.msra.mxu0 0.0
    %3259 = vmatprep.subr.mxu0 0.0
    %3260 = vmatpush1.msra.mxu0 %v2315
    %3261 = vmatprep.subr.mxu0 0.0
    %3262 = vmatpush1.msra.mxu0 %v2314
    %3263 = vmatprep.subr.mxu0 0.0
    %3264 = vmatpush1.msra.mxu0 %v2313
    %3265 = vmatprep.subr.mxu0 0.0
    %3266 = vmatpush1.msra.mxu0 %v2312
    %3267 = vmatprep.subr.mxu0 0.0
    %3268 = vmatpush2.msra.mxu0 0.0
    %3269 = vmatprep.subr.mxu0 0.0
    %3270 = vmatpush2.msra.mxu0 0.0
    %3271 = vmatprep.subr.mxu0 0.0
    %3272 = vmatpush2.msra.mxu0 0.0
    %3273 = vmatprep.subr.mxu0 0.0
    %3274 = vmatpush2.msra.mxu0 0.0
    %3275 = vmatprep.subr.mxu0 0.0
    %3276 = vmatpush2.msra.mxu0 0.0
    %3277 = vmatprep.subr.mxu0 0.0
    %3278 = vmatpush2.msra.mxu0 0.0
    %3279 = vmatprep.subr.mxu0 0.0
    %3280 = vmatpush2.msra.mxu0 0.0
    %3281 = vmatprep.subr.mxu0 0.0
    %3282 = vmatpush2.msra.mxu0 0.0
    %3283 = vmatprep.subr.mxu0 0.0
    %3284 = vmatpush2.msra.mxu0 0.0
    %3285 = vmatprep.subr.mxu0 0.0
    %3286 = vmatpush2.msra.mxu0 0.0
    %3287 = vmatprep.subr.mxu0 0.0
    %3288 = vmatpush2.msra.mxu0 0.0
    %3289 = vmatprep.subr.mxu0 0.0
    %3290 = vmatpush2.msra.mxu0 0.0
    %3291 = vmatprep.subr.mxu0 0.0
    %3292 = vmatpush2.msra.mxu0 0.0
    %3293 = vmatprep.subr.mxu0 0.0
    %3294 = vmatpush2.msra.mxu0 0.0
    %3295 = vmatprep.subr.mxu0 0.0
    %3296 = vmatpush2.msra.mxu0 0.0
    %3297 = vmatprep.subr.mxu0 0.0
    %3298 = vmatpush2.msra.mxu0 0.0
    %3299 = vmatprep.mubr.f32.mxu0 0.0
    %3300 = vmatmul.mubr.f32.gmra.mxu0 %v3233
    %v3301 = vpop.f32.mrf.mxu0
    %v3302 = vadd.f32 0.0, %v3301
    %v3303 = vpop.f32.mrf.mxu0
    %3304 = vdwg.mxu0
    %v3305 = vadd.f32 %v3232, %v3302
    %v3306 = vxor.u32 %v3231, 2147483648
    %v3307 = vmul.f32 %v3306, 1.442695
    %v3308 = vpow.pop %v3307
    %v3309 = vadd.f32 %v3308, 1.0
    %v3310 = vrcp.pop %v3309
    %v3311 = vmul.f32 1.0, %v3310
    %v3312 = vtanh.pop %v3231
    %v3313 = vmul.f32 %v3311, %v3117
    %3315 = vrot.lane.b32.xlu0 %v3312, 64
    %v3316 = vpop.permute.xlu0 %3315
    %v3318 = vmul.f32 %v3311, %v3316
    %3320 = vrot.lane.b32.xlu0 %v3318, 32
    %v3321 = vpop.permute.xlu0 %3320
    %v3323 = vadd.f32 %v3313, %v3321
    %v3324 = vtanh.pop %v3323
    %3326 = vrot.lane.b32.xlu0 %v3324, 64
    %v3327 = vpop.permute.xlu0 %3326
    %v3329 = vmul.f32 %v3311, %v3327
    %v3330 = vxor.u32 %v3305, 2147483648
    %v3331 = vmul.f32 %v3330, 1.442695
    %v3332 = vpow.pop %v3331
    %v3333 = vadd.f32 %v3332, 1.0
    %v3334 = vrcp.pop %v3333
    %v3335 = vmul.f32 1.0, %v3334
    %v3336 = vtanh.pop %v3305
    %v3337 = vmul.f32 %v3335, %v3141
    %3339 = vrot.lane.b32.xlu0 %v3336, 64
    %v3340 = vpop.permute.xlu0 %3339
    %v3342 = vmul.f32 %v3335, %v3340
    %3344 = vrot.lane.b32.xlu0 %v3342, 32
    %v3345 = vpop.permute.xlu0 %3344
    %v3347 = vadd.f32 %v3337, %v3345
    %v3348 = vtanh.pop %v3347
    %3350 = vrot.lane.b32.xlu0 %v3348, 64
    %v3351 = vpop.permute.xlu0 %3350
    %v3353 = vmul.f32 %v3335, %v3351
    %3355 = vrot.lane.b32.xlu0 %v3329, 32
    %v3356 = vpop.permute.xlu0 %3355
    %3358 = vst.msk [vmem:[#allocation2 + $0x8] sm:$0x3] %vm502, %v3356
    %3360 = vrot.lane.b32.xlu0 %v3353, 32
    %v3361 = vpop.permute.xlu0 %3360
    %3363 = vst.msk [vmem:[#allocation3 + $0x6] sm:$0x3] %vm502, %v3361
    %v3364 = vld [vmem:[#allocation4 + $0xa] sm:$0x3]
    %v3365 = vsel %vm292, %v3356, 0
    %3367 = vmatprep.subr.mxu0 0.0
    %3368 = vmatpush1.msra.mxu0 0.0
    %3369 = vmatprep.subr.mxu0 0.0
    %3370 = vmatpush1.msra.mxu0 0.0
    %3371 = vmatprep.subr.mxu0 0.0
    %3372 = vmatpush1.msra.mxu0 0.0
    %3373 = vmatprep.subr.mxu0 0.0
    %3374 = vmatpush1.msra.mxu0 0.0
    %3375 = vmatprep.subr.mxu0 0.0
    %3376 = vmatpush1.msra.mxu0 0.0
    %3377 = vmatprep.subr.mxu0 0.0
    %3378 = vmatpush1.msra.mxu0 0.0
    %3379 = vmatprep.subr.mxu0 0.0
    %3380 = vmatpush1.msra.mxu0 0.0
    %3381 = vmatprep.subr.mxu0 0.0
    %3382 = vmatpush1.msra.mxu0 0.0
    %3383 = vmatprep.subr.mxu0 0.0
    %3384 = vmatpush1.msra.mxu0 0.0
    %3385 = vmatprep.subr.mxu0 0.0
    %3386 = vmatpush1.msra.mxu0 0.0
    %3387 = vmatprep.subr.mxu0 0.0
    %3388 = vmatpush1.msra.mxu0 0.0
    %3389 = vmatprep.subr.mxu0 0.0
    %3390 = vmatpush1.msra.mxu0 0.0
    %3391 = vmatprep.subr.mxu0 0.0
    %3392 = vmatpush1.msra.mxu0 %v2310
    %3393 = vmatprep.subr.mxu0 0.0
    %3394 = vmatpush1.msra.mxu0 %v2309
    %3395 = vmatprep.subr.mxu0 0.0
    %3396 = vmatpush1.msra.mxu0 %v2308
    %3397 = vmatprep.subr.mxu0 0.0
    %3398 = vmatpush1.msra.mxu0 %v2307
    %3399 = vmatprep.subr.mxu0 0.0
    %3400 = vmatpush2.msra.mxu0 0.0
    %3401 = vmatprep.subr.mxu0 0.0
    %3402 = vmatpush2.msra.mxu0 0.0
    %3403 = vmatprep.subr.mxu0 0.0
    %3404 = vmatpush2.msra.mxu0 0.0
    %3405 = vmatprep.subr.mxu0 0.0
    %3406 = vmatpush2.msra.mxu0 0.0
    %3407 = vmatprep.subr.mxu0 0.0
    %3408 = vmatpush2.msra.mxu0 0.0
    %3409 = vmatprep.subr.mxu0 0.0
    %3410 = vmatpush2.msra.mxu0 0.0
    %3411 = vmatprep.subr.mxu0 0.0
    %3412 = vmatpush2.msra.mxu0 0.0
    %3413 = vmatprep.subr.mxu0 0.0
    %3414 = vmatpush2.msra.mxu0 0.0
    %3415 = vmatprep.subr.mxu0 0.0
    %3416 = vmatpush2.msra.mxu0 0.0
    %3417 = vmatprep.subr.mxu0 0.0
    %3418 = vmatpush2.msra.mxu0 0.0
    %3419 = vmatprep.subr.mxu0 0.0
    %3420 = vmatpush2.msra.mxu0 0.0
    %3421 = vmatprep.subr.mxu0 0.0
    %3422 = vmatpush2.msra.mxu0 0.0
    %3423 = vmatprep.subr.mxu0 0.0
    %3424 = vmatpush2.msra.mxu0 0.0
    %3425 = vmatprep.subr.mxu0 0.0
    %3426 = vmatpush2.msra.mxu0 0.0
    %3427 = vmatprep.subr.mxu0 0.0
    %3428 = vmatpush2.msra.mxu0 0.0
    %3429 = vmatprep.subr.mxu0 0.0
    %3430 = vmatpush2.msra.mxu0 0.0
    %3431 = vmatprep.mubr.f32.mxu0 0.0
    %3432 = vmatmul.mubr.f32.gmra.mxu0 %v3365
    %v3433 = vpop.f32.mrf.mxu0
    %v3434 = vadd.f32 0.0, %v3433
    %v3435 = vpop.f32.mrf.mxu0
    %3436 = vdwg.mxu0
    %v3437 = vadd.f32 %v3364, %v3434
    %v3438 = vld [vmem:[#allocation5 + $0x4] sm:$0x3]
    %v3439 = vsel %vm292, %v3361, 0
    %3441 = vmatprep.subr.mxu0 0.0
    %3442 = vmatpush1.msra.mxu0 0.0
    %3443 = vmatprep.subr.mxu0 0.0
    %3444 = vmatpush1.msra.mxu0 0.0
    %3445 = vmatprep.subr.mxu0 0.0
    %3446 = vmatpush1.msra.mxu0 0.0
    %3447 = vmatprep.subr.mxu0 0.0
    %3448 = vmatpush1.msra.mxu0 0.0
    %3449 = vmatprep.subr.mxu0 0.0
    %3450 = vmatpush1.msra.mxu0 0.0
    %3451 = vmatprep.subr.mxu0 0.0
    %3452 = vmatpush1.msra.mxu0 0.0
    %3453 = vmatprep.subr.mxu0 0.0
    %3454 = vmatpush1.msra.mxu0 0.0
    %3455 = vmatprep.subr.mxu0 0.0
    %3456 = vmatpush1.msra.mxu0 0.0
    %3457 = vmatprep.subr.mxu0 0.0
    %3458 = vmatpush1.msra.mxu0 0.0
    %3459 = vmatprep.subr.mxu0 0.0
    %3460 = vmatpush1.msra.mxu0 0.0
    %3461 = vmatprep.subr.mxu0 0.0
    %3462 = vmatpush1.msra.mxu0 0.0
    %3463 = vmatprep.subr.mxu0 0.0
    %3464 = vmatpush1.msra.mxu0 0.0
    %3465 = vmatprep.subr.mxu0 0.0
    %3466 = vmatpush1.msra.mxu0 %v2315
    %3467 = vmatprep.subr.mxu0 0.0
    %3468 = vmatpush1.msra.mxu0 %v2314
    %3469 = vmatprep.subr.mxu0 0.0
    %3470 = vmatpush1.msra.mxu0 %v2313
    %3471 = vmatprep.subr.mxu0 0.0
    %3472 = vmatpush1.msra.mxu0 %v2312
    %3473 = vmatprep.subr.mxu0 0.0
    %3474 = vmatpush2.msra.mxu0 0.0
    %3475 = vmatprep.subr.mxu0 0.0
    %3476 = vmatpush2.msra.mxu0 0.0
    %3477 = vmatprep.subr.mxu0 0.0
    %3478 = vmatpush2.msra.mxu0 0.0
    %3479 = vmatprep.subr.mxu0 0.0
    %3480 = vmatpush2.msra.mxu0 0.0
    %3481 = vmatprep.subr.mxu0 0.0
    %3482 = vmatpush2.msra.mxu0 0.0
    %3483 = vmatprep.subr.mxu0 0.0
    %3484 = vmatpush2.msra.mxu0 0.0
    %3485 = vmatprep.subr.mxu0 0.0
    %3486 = vmatpush2.msra.mxu0 0.0
    %3487 = vmatprep.subr.mxu0 0.0
    %3488 = vmatpush2.msra.mxu0 0.0
    %3489 = vmatprep.subr.mxu0 0.0
    %3490 = vmatpush2.msra.mxu0 0.0
    %3491 = vmatprep.subr.mxu0 0.0
    %3492 = vmatpush2.msra.mxu0 0.0
    %3493 = vmatprep.subr.mxu0 0.0
    %3494 = vmatpush2.msra.mxu0 0.0
    %3495 = vmatprep.subr.mxu0 0.0
    %3496 = vmatpush2.msra.mxu0 0.0
    %3497 = vmatprep.subr.mxu0 0.0
    %3498 = vmatpush2.msra.mxu0 0.0
    %3499 = vmatprep.subr.mxu0 0.0
    %3500 = vmatpush2.msra.mxu0 0.0
    %3501 = vmatprep.subr.mxu0 0.0
    %3502 = vmatpush2.msra.mxu0 0.0
    %3503 = vmatprep.subr.mxu0 0.0
    %3504 = vmatpush2.msra.mxu0 0.0
    %3505 = vmatprep.mubr.f32.mxu0 0.0
    %3506 = vmatmul.mubr.f32.gmra.mxu0 %v3439
    %v3507 = vpop.f32.mrf.mxu0
    %v3508 = vadd.f32 0.0, %v3507
    %v3509 = vpop.f32.mrf.mxu0
    %3510 = vdwg.mxu0
    %v3511 = vadd.f32 %v3438, %v3508
    %v3512 = vxor.u32 %v3437, 2147483648
    %v3513 = vmul.f32 %v3512, 1.442695
    %v3514 = vpow.pop %v3513
    %v3515 = vadd.f32 %v3514, 1.0
    %v3516 = vrcp.pop %v3515
    %v3517 = vmul.f32 1.0, %v3516
    %v3518 = vtanh.pop %v3437
    %v3519 = vmul.f32 %v3517, %v3323
    %3521 = vrot.lane.b32.xlu0 %v3518, 64
    %v3522 = vpop.permute.xlu0 %3521
    %v3524 = vmul.f32 %v3517, %v3522
    %3526 = vrot.lane.b32.xlu0 %v3524, 32
    %v3527 = vpop.permute.xlu0 %3526
    %v3529 = vadd.f32 %v3519, %v3527
    %v3530 = vtanh.pop %v3529
    %3532 = vrot.lane.b32.xlu0 %v3530, 64
    %v3533 = vpop.permute.xlu0 %3532
    %v3535 = vmul.f32 %v3517, %v3533
    %v3536 = vxor.u32 %v3511, 2147483648
    %v3537 = vmul.f32 %v3536, 1.442695
    %v3538 = vpow.pop %v3537
    %v3539 = vadd.f32 %v3538, 1.0
    %v3540 = vrcp.pop %v3539
    %v3541 = vmul.f32 1.0, %v3540
    %v3542 = vtanh.pop %v3511
    %v3543 = vmul.f32 %v3541, %v3347
    %3545 = vrot.lane.b32.xlu0 %v3542, 64
    %v3546 = vpop.permute.xlu0 %3545
    %v3548 = vmul.f32 %v3541, %v3546
    %3550 = vrot.lane.b32.xlu0 %v3548, 32
    %v3551 = vpop.permute.xlu0 %3550
    %v3553 = vadd.f32 %v3543, %v3551
    %v3554 = vtanh.pop %v3553
    %3556 = vrot.lane.b32.xlu0 %v3554, 64
    %v3557 = vpop.permute.xlu0 %3556
    %v3559 = vmul.f32 %v3541, %v3557
    %3561 = vrot.lane.b32.xlu0 %v3535, 32
    %v3562 = vpop.permute.xlu0 %3561
    %3564 = vst.msk [vmem:[#allocation2 + $0xa] sm:$0x3] %vm502, %v3562
    %3566 = vrot.lane.b32.xlu0 %v3559, 32
    %v3567 = vpop.permute.xlu0 %3566
    %3569 = vst.msk [vmem:[#allocation3 + $0x4] sm:$0x3] %vm502, %v3567
    %v3570 = vld [vmem:[#allocation4 + $0xc] sm:$0x3]
    %v3571 = vsel %vm292, %v3562, 0
    %3573 = vmatprep.subr.mxu0 0.0
    %3574 = vmatpush1.msra.mxu0 0.0
    %3575 = vmatprep.subr.mxu0 0.0
    %3576 = vmatpush1.msra.mxu0 0.0
    %3577 = vmatprep.subr.mxu0 0.0
    %3578 = vmatpush1.msra.mxu0 0.0
    %3579 = vmatprep.subr.mxu0 0.0
    %3580 = vmatpush1.msra.mxu0 0.0
    %3581 = vmatprep.subr.mxu0 0.0
    %3582 = vmatpush1.msra.mxu0 0.0
    %3583 = vmatprep.subr.mxu0 0.0
    %3584 = vmatpush1.msra.mxu0 0.0
    %3585 = vmatprep.subr.mxu0 0.0
    %3586 = vmatpush1.msra.mxu0 0.0
    %3587 = vmatprep.subr.mxu0 0.0
    %3588 = vmatpush1.msra.mxu0 0.0
    %3589 = vmatprep.subr.mxu0 0.0
    %3590 = vmatpush1.msra.mxu0 0.0
    %3591 = vmatprep.subr.mxu0 0.0
    %3592 = vmatpush1.msra.mxu0 0.0
    %3593 = vmatprep.subr.mxu0 0.0
    %3594 = vmatpush1.msra.mxu0 0.0
    %3595 = vmatprep.subr.mxu0 0.0
    %3596 = vmatpush1.msra.mxu0 0.0
    %3597 = vmatprep.subr.mxu0 0.0
    %3598 = vmatpush1.msra.mxu0 %v2310
    %3599 = vmatprep.subr.mxu0 0.0
    %3600 = vmatpush1.msra.mxu0 %v2309
    %3601 = vmatprep.subr.mxu0 0.0
    %3602 = vmatpush1.msra.mxu0 %v2308
    %3603 = vmatprep.subr.mxu0 0.0
    %3604 = vmatpush1.msra.mxu0 %v2307
    %3605 = vmatprep.subr.mxu0 0.0
    %3606 = vmatpush2.msra.mxu0 0.0
    %3607 = vmatprep.subr.mxu0 0.0
    %3608 = vmatpush2.msra.mxu0 0.0
    %3609 = vmatprep.subr.mxu0 0.0
    %3610 = vmatpush2.msra.mxu0 0.0
    %3611 = vmatprep.subr.mxu0 0.0
    %3612 = vmatpush2.msra.mxu0 0.0
    %3613 = vmatprep.subr.mxu0 0.0
    %3614 = vmatpush2.msra.mxu0 0.0
    %3615 = vmatprep.subr.mxu0 0.0
    %3616 = vmatpush2.msra.mxu0 0.0
    %3617 = vmatprep.subr.mxu0 0.0
    %3618 = vmatpush2.msra.mxu0 0.0
    %3619 = vmatprep.subr.mxu0 0.0
    %3620 = vmatpush2.msra.mxu0 0.0
    %3621 = vmatprep.subr.mxu0 0.0
    %3622 = vmatpush2.msra.mxu0 0.0
    %3623 = vmatprep.subr.mxu0 0.0
    %3624 = vmatpush2.msra.mxu0 0.0
    %3625 = vmatprep.subr.mxu0 0.0
    %3626 = vmatpush2.msra.mxu0 0.0
    %3627 = vmatprep.subr.mxu0 0.0
    %3628 = vmatpush2.msra.mxu0 0.0
    %3629 = vmatprep.subr.mxu0 0.0
    %3630 = vmatpush2.msra.mxu0 0.0
    %3631 = vmatprep.subr.mxu0 0.0
    %3632 = vmatpush2.msra.mxu0 0.0
    %3633 = vmatprep.subr.mxu0 0.0
    %3634 = vmatpush2.msra.mxu0 0.0
    %3635 = vmatprep.subr.mxu0 0.0
    %3636 = vmatpush2.msra.mxu0 0.0
    %3637 = vmatprep.mubr.f32.mxu0 0.0
    %3638 = vmatmul.mubr.f32.gmra.mxu0 %v3571
    %v3639 = vpop.f32.mrf.mxu0
    %v3640 = vadd.f32 0.0, %v3639
    %v3641 = vpop.f32.mrf.mxu0
    %3642 = vdwg.mxu0
    %v3643 = vadd.f32 %v3570, %v3640
    %v3644 = vld [vmem:[#allocation5 + $0x2] sm:$0x3]
    %v3645 = vsel %vm292, %v3567, 0
    %3647 = vmatprep.subr.mxu0 0.0
    %3648 = vmatpush1.msra.mxu0 0.0
    %3649 = vmatprep.subr.mxu0 0.0
    %3650 = vmatpush1.msra.mxu0 0.0
    %3651 = vmatprep.subr.mxu0 0.0
    %3652 = vmatpush1.msra.mxu0 0.0
    %3653 = vmatprep.subr.mxu0 0.0
    %3654 = vmatpush1.msra.mxu0 0.0
    %3655 = vmatprep.subr.mxu0 0.0
    %3656 = vmatpush1.msra.mxu0 0.0
    %3657 = vmatprep.subr.mxu0 0.0
    %3658 = vmatpush1.msra.mxu0 0.0
    %3659 = vmatprep.subr.mxu0 0.0
    %3660 = vmatpush1.msra.mxu0 0.0
    %3661 = vmatprep.subr.mxu0 0.0
    %3662 = vmatpush1.msra.mxu0 0.0
    %3663 = vmatprep.subr.mxu0 0.0
    %3664 = vmatpush1.msra.mxu0 0.0
    %3665 = vmatprep.subr.mxu0 0.0
    %3666 = vmatpush1.msra.mxu0 0.0
    %3667 = vmatprep.subr.mxu0 0.0
    %3668 = vmatpush1.msra.mxu0 0.0
    %3669 = vmatprep.subr.mxu0 0.0
    %3670 = vmatpush1.msra.mxu0 0.0
    %3671 = vmatprep.subr.mxu0 0.0
    %3672 = vmatpush1.msra.mxu0 %v2315
    %3673 = vmatprep.subr.mxu0 0.0
    %3674 = vmatpush1.msra.mxu0 %v2314
    %3675 = vmatprep.subr.mxu0 0.0
    %3676 = vmatpush1.msra.mxu0 %v2313
    %3677 = vmatprep.subr.mxu0 0.0
    %3678 = vmatpush1.msra.mxu0 %v2312
    %3679 = vmatprep.subr.mxu0 0.0
    %3680 = vmatpush2.msra.mxu0 0.0
    %3681 = vmatprep.subr.mxu0 0.0
    %3682 = vmatpush2.msra.mxu0 0.0
    %3683 = vmatprep.subr.mxu0 0.0
    %3684 = vmatpush2.msra.mxu0 0.0
    %3685 = vmatprep.subr.mxu0 0.0
    %3686 = vmatpush2.msra.mxu0 0.0
    %3687 = vmatprep.subr.mxu0 0.0
    %3688 = vmatpush2.msra.mxu0 0.0
    %3689 = vmatprep.subr.mxu0 0.0
    %3690 = vmatpush2.msra.mxu0 0.0
    %3691 = vmatprep.subr.mxu0 0.0
    %3692 = vmatpush2.msra.mxu0 0.0
    %3693 = vmatprep.subr.mxu0 0.0
    %3694 = vmatpush2.msra.mxu0 0.0
    %3695 = vmatprep.subr.mxu0 0.0
    %3696 = vmatpush2.msra.mxu0 0.0
    %3697 = vmatprep.subr.mxu0 0.0
    %3698 = vmatpush2.msra.mxu0 0.0
    %3699 = vmatprep.subr.mxu0 0.0
    %3700 = vmatpush2.msra.mxu0 0.0
    %3701 = vmatprep.subr.mxu0 0.0
    %3702 = vmatpush2.msra.mxu0 0.0
    %3703 = vmatprep.subr.mxu0 0.0
    %3704 = vmatpush2.msra.mxu0 0.0
    %3705 = vmatprep.subr.mxu0 0.0
    %3706 = vmatpush2.msra.mxu0 0.0
    %3707 = vmatprep.subr.mxu0 0.0
    %3708 = vmatpush2.msra.mxu0 0.0
    %3709 = vmatprep.subr.mxu0 0.0
    %3710 = vmatpush2.msra.mxu0 0.0
    %3711 = vmatprep.mubr.f32.mxu0 0.0
    %3712 = vmatmul.mubr.f32.gmra.mxu0 %v3645
    %v3713 = vpop.f32.mrf.mxu0
    %v3714 = vadd.f32 0.0, %v3713
    %v3715 = vpop.f32.mrf.mxu0
    %3716 = vdwg.mxu0
    %v3717 = vadd.f32 %v3644, %v3714
    %v3718 = vxor.u32 %v3643, 2147483648
    %v3719 = vmul.f32 %v3718, 1.442695
    %v3720 = vpow.pop %v3719
    %v3721 = vadd.f32 %v3720, 1.0
    %v3722 = vrcp.pop %v3721
    %v3723 = vmul.f32 1.0, %v3722
    %v3724 = vtanh.pop %v3643
    %v3725 = vmul.f32 %v3723, %v3529
    %3727 = vrot.lane.b32.xlu0 %v3724, 64
    %v3728 = vpop.permute.xlu0 %3727
    %v3730 = vmul.f32 %v3723, %v3728
    %3732 = vrot.lane.b32.xlu0 %v3730, 32
    %v3733 = vpop.permute.xlu0 %3732
    %v3735 = vadd.f32 %v3725, %v3733
    %v3736 = vtanh.pop %v3735
    %3738 = vrot.lane.b32.xlu0 %v3736, 64
    %v3739 = vpop.permute.xlu0 %3738
    %v3741 = vmul.f32 %v3723, %v3739
    %v3742 = vxor.u32 %v3717, 2147483648
    %v3743 = vmul.f32 %v3742, 1.442695
    %v3744 = vpow.pop %v3743
    %v3745 = vadd.f32 %v3744, 1.0
    %v3746 = vrcp.pop %v3745
    %v3747 = vmul.f32 1.0, %v3746
    %v3748 = vtanh.pop %v3717
    %v3749 = vmul.f32 %v3747, %v3553
    %3751 = vrot.lane.b32.xlu0 %v3748, 64
    %v3752 = vpop.permute.xlu0 %3751
    %v3754 = vmul.f32 %v3747, %v3752
    %3756 = vrot.lane.b32.xlu0 %v3754, 32
    %v3757 = vpop.permute.xlu0 %3756
    %v3759 = vadd.f32 %v3749, %v3757
    %v3760 = vtanh.pop %v3759
    %3762 = vrot.lane.b32.xlu0 %v3760, 64
    %v3763 = vpop.permute.xlu0 %3762
    %v3765 = vmul.f32 %v3747, %v3763
    %3767 = vrot.lane.b32.xlu0 %v3741, 32
    %v3768 = vpop.permute.xlu0 %3767
    %3770 = vst.msk [vmem:[#allocation2 + $0xc] sm:$0x3] %vm502, %v3768
    %3772 = vrot.lane.b32.xlu0 %v3765, 32
    %v3773 = vpop.permute.xlu0 %3772
    %3775 = vst.msk [vmem:[#allocation3 + $0x2] sm:$0x3] %vm502, %v3773
    %v3776 = vld [vmem:[#allocation4 + $0xe] sm:$0x3]
    %v3777 = vsel %vm292, %v3768, 0
    %3779 = vmatprep.subr.mxu0 0.0
    %3780 = vmatpush1.msra.mxu0 0.0
    %3781 = vmatprep.subr.mxu0 0.0
    %3782 = vmatpush1.msra.mxu0 0.0
    %3783 = vmatprep.subr.mxu0 0.0
    %3784 = vmatpush1.msra.mxu0 0.0
    %3785 = vmatprep.subr.mxu0 0.0
    %3786 = vmatpush1.msra.mxu0 0.0
    %3787 = vmatprep.subr.mxu0 0.0
    %3788 = vmatpush1.msra.mxu0 0.0
    %3789 = vmatprep.subr.mxu0 0.0
    %3790 = vmatpush1.msra.mxu0 0.0
    %3791 = vmatprep.subr.mxu0 0.0
    %3792 = vmatpush1.msra.mxu0 0.0
    %3793 = vmatprep.subr.mxu0 0.0
    %3794 = vmatpush1.msra.mxu0 0.0
    %3795 = vmatprep.subr.mxu0 0.0
    %3796 = vmatpush1.msra.mxu0 0.0
    %3797 = vmatprep.subr.mxu0 0.0
    %3798 = vmatpush1.msra.mxu0 0.0
    %3799 = vmatprep.subr.mxu0 0.0
    %3800 = vmatpush1.msra.mxu0 0.0
    %3801 = vmatprep.subr.mxu0 0.0
    %3802 = vmatpush1.msra.mxu0 0.0
    %3803 = vmatprep.subr.mxu0 0.0
    %3804 = vmatpush1.msra.mxu0 %v2310
    %3805 = vmatprep.subr.mxu0 0.0
    %3806 = vmatpush1.msra.mxu0 %v2309
    %3807 = vmatprep.subr.mxu0 0.0
    %3808 = vmatpush1.msra.mxu0 %v2308
    %3809 = vmatprep.subr.mxu0 0.0
    %3810 = vmatpush1.msra.mxu0 %v2307
    %3811 = vmatprep.subr.mxu0 0.0
    %3812 = vmatpush2.msra.mxu0 0.0
    %3813 = vmatprep.subr.mxu0 0.0
    %3814 = vmatpush2.msra.mxu0 0.0
    %3815 = vmatprep.subr.mxu0 0.0
    %3816 = vmatpush2.msra.mxu0 0.0
    %3817 = vmatprep.subr.mxu0 0.0
    %3818 = vmatpush2.msra.mxu0 0.0
    %3819 = vmatprep.subr.mxu0 0.0
    %3820 = vmatpush2.msra.mxu0 0.0
    %3821 = vmatprep.subr.mxu0 0.0
    %3822 = vmatpush2.msra.mxu0 0.0
    %3823 = vmatprep.subr.mxu0 0.0
    %3824 = vmatpush2.msra.mxu0 0.0
    %3825 = vmatprep.subr.mxu0 0.0
    %3826 = vmatpush2.msra.mxu0 0.0
    %3827 = vmatprep.subr.mxu0 0.0
    %3828 = vmatpush2.msra.mxu0 0.0
    %3829 = vmatprep.subr.mxu0 0.0
    %3830 = vmatpush2.msra.mxu0 0.0
    %3831 = vmatprep.subr.mxu0 0.0
    %3832 = vmatpush2.msra.mxu0 0.0
    %3833 = vmatprep.subr.mxu0 0.0
    %3834 = vmatpush2.msra.mxu0 0.0
    %3835 = vmatprep.subr.mxu0 0.0
    %3836 = vmatpush2.msra.mxu0 0.0
    %3837 = vmatprep.subr.mxu0 0.0
    %3838 = vmatpush2.msra.mxu0 0.0
    %3839 = vmatprep.subr.mxu0 0.0
    %3840 = vmatpush2.msra.mxu0 0.0
    %3841 = vmatprep.subr.mxu0 0.0
    %3842 = vmatpush2.msra.mxu0 0.0
    %3843 = vmatprep.mubr.f32.mxu0 0.0
    %3844 = vmatmul.mubr.f32.gmra.mxu0 %v3777
    %v3845 = vpop.f32.mrf.mxu0
    %v3846 = vadd.f32 0.0, %v3845
    %v3847 = vpop.f32.mrf.mxu0
    %3848 = vdwg.mxu0
    %v3849 = vadd.f32 %v3776, %v3846
    %v3850 = vld [vmem:[#allocation5] sm:$0x3]
    %v3851 = vsel %vm292, %v3773, 0
    %3853 = vmatprep.subr.mxu0 0.0
    %3854 = vmatpush1.msra.mxu0 0.0
    %3855 = vmatprep.subr.mxu0 0.0
    %3856 = vmatpush1.msra.mxu0 0.0
    %3857 = vmatprep.subr.mxu0 0.0
    %3858 = vmatpush1.msra.mxu0 0.0
    %3859 = vmatprep.subr.mxu0 0.0
    %3860 = vmatpush1.msra.mxu0 0.0
    %3861 = vmatprep.subr.mxu0 0.0
    %3862 = vmatpush1.msra.mxu0 0.0
    %3863 = vmatprep.subr.mxu0 0.0
    %3864 = vmatpush1.msra.mxu0 0.0
    %3865 = vmatprep.subr.mxu0 0.0
    %3866 = vmatpush1.msra.mxu0 0.0
    %3867 = vmatprep.subr.mxu0 0.0
    %3868 = vmatpush1.msra.mxu0 0.0
    %3869 = vmatprep.subr.mxu0 0.0
    %3870 = vmatpush1.msra.mxu0 0.0
    %3871 = vmatprep.subr.mxu0 0.0
    %3872 = vmatpush1.msra.mxu0 0.0
    %3873 = vmatprep.subr.mxu0 0.0
    %3874 = vmatpush1.msra.mxu0 0.0
    %3875 = vmatprep.subr.mxu0 0.0
    %3876 = vmatpush1.msra.mxu0 0.0
    %3877 = vmatprep.subr.mxu0 0.0
    %3878 = vmatpush1.msra.mxu0 %v2315
    %3879 = vmatprep.subr.mxu0 0.0
    %3880 = vmatpush1.msra.mxu0 %v2314
    %3881 = vmatprep.subr.mxu0 0.0
    %3882 = vmatpush1.msra.mxu0 %v2313
    %3883 = vmatprep.subr.mxu0 0.0
    %3884 = vmatpush1.msra.mxu0 %v2312
    %3885 = vmatprep.subr.mxu0 0.0
    %3886 = vmatpush2.msra.mxu0 0.0
    %3887 = vmatprep.subr.mxu0 0.0
    %3888 = vmatpush2.msra.mxu0 0.0
    %3889 = vmatprep.subr.mxu0 0.0
    %3890 = vmatpush2.msra.mxu0 0.0
    %3891 = vmatprep.subr.mxu0 0.0
    %3892 = vmatpush2.msra.mxu0 0.0
    %3893 = vmatprep.subr.mxu0 0.0
    %3894 = vmatpush2.msra.mxu0 0.0
    %3895 = vmatprep.subr.mxu0 0.0
    %3896 = vmatpush2.msra.mxu0 0.0
    %3897 = vmatprep.subr.mxu0 0.0
    %3898 = vmatpush2.msra.mxu0 0.0
    %3899 = vmatprep.subr.mxu0 0.0
    %3900 = vmatpush2.msra.mxu0 0.0
    %3901 = vmatprep.subr.mxu0 0.0
    %3902 = vmatpush2.msra.mxu0 0.0
    %3903 = vmatprep.subr.mxu0 0.0
    %3904 = vmatpush2.msra.mxu0 0.0
    %3905 = vmatprep.subr.mxu0 0.0
    %3906 = vmatpush2.msra.mxu0 0.0
    %3907 = vmatprep.subr.mxu0 0.0
    %3908 = vmatpush2.msra.mxu0 0.0
    %3909 = vmatprep.subr.mxu0 0.0
    %3910 = vmatpush2.msra.mxu0 0.0
    %3911 = vmatprep.subr.mxu0 0.0
    %3912 = vmatpush2.msra.mxu0 0.0
    %3913 = vmatprep.subr.mxu0 0.0
    %3914 = vmatpush2.msra.mxu0 0.0
    %3915 = vmatprep.subr.mxu0 0.0
    %3916 = vmatpush2.msra.mxu0 0.0
    %3917 = vmatprep.mubr.f32.mxu0 0.0
    %3918 = vmatmul.mubr.f32.gmra.mxu0 %v3851
    %v3919 = vpop.f32.mrf.mxu0
    %v3920 = vadd.f32 0.0, %v3919
    %v3921 = vpop.f32.mrf.mxu0
    %3922 = vdwg.mxu0
    %v3923 = vadd.f32 %v3850, %v3920
    %v3924 = vxor.u32 %v3849, 2147483648
    %v3925 = vmul.f32 %v3924, 1.442695
    %v3926 = vpow.pop %v3925
    %v3927 = vadd.f32 %v3926, 1.0
    %v3928 = vrcp.pop %v3927
    %v3929 = vmul.f32 1.0, %v3928
    %v3930 = vtanh.pop %v3849
    %v3931 = vmul.f32 %v3929, %v3735
    %3933 = vrot.lane.b32.xlu0 %v3930, 64
    %v3934 = vpop.permute.xlu0 %3933
    %v3936 = vmul.f32 %v3929, %v3934
    %3938 = vrot.lane.b32.xlu0 %v3936, 32
    %v3939 = vpop.permute.xlu0 %3938
    %v3941 = vadd.f32 %v3931, %v3939
    %v3942 = vtanh.pop %v3941
    %3944 = vrot.lane.b32.xlu0 %v3942, 64
    %v3945 = vpop.permute.xlu0 %3944
    %v3947 = vmul.f32 %v3929, %v3945
    %v3948 = vxor.u32 %v3923, 2147483648
    %v3949 = vmul.f32 %v3948, 1.442695
    %v3950 = vpow.pop %v3949
    %v3951 = vadd.f32 %v3950, 1.0
    %v3952 = vrcp.pop %v3951
    %v3953 = vmul.f32 1.0, %v3952
    %v3954 = vtanh.pop %v3923
    %v3955 = vmul.f32 %v3953, %v3759
    %3957 = vrot.lane.b32.xlu0 %v3954, 64
    %v3958 = vpop.permute.xlu0 %3957
    %v3960 = vmul.f32 %v3953, %v3958
    %3962 = vrot.lane.b32.xlu0 %v3960, 32
    %v3963 = vpop.permute.xlu0 %3962
    %v3965 = vadd.f32 %v3955, %v3963
    %v3966 = vtanh.pop %v3965
    %3968 = vrot.lane.b32.xlu0 %v3966, 64
    %v3969 = vpop.permute.xlu0 %3968
    %v3971 = vmul.f32 %v3953, %v3969
    %3973 = vrot.lane.b32.xlu0 %v3947, 32
    %v3974 = vpop.permute.xlu0 %3973
    %3976 = vst.msk [vmem:[#allocation2 + $0xe] sm:$0x3] %vm502, %v3974
    %3978 = vrot.lane.b32.xlu0 %v3971, 32
    %v3979 = vpop.permute.xlu0 %3978
    %3981 = vst.msk [vmem:[#allocation3] sm:$0x3] %vm502, %v3979
    %v3982 = vld [vmem:[#allocation2 + $0xe] sm:$0x3]
    %v3983 = vld [vmem:[#allocation3 + $0xe] sm:$0x3]
    %v3984 = vld [vmem:[#allocation12] sm:$0x1]
    %v3986 = vlaneseq
    %v3987 = vshrl.u32 %v3986, 7
    %v3988 = vsub.s32 0, %v3987
    %v3989 = vrot.slane %v3984, %v3988
    %v3991 = vmul.f32 %v3982, %v3989
    %v3992 = vsel %vm502, %v3991, 0.0
    %3993 = vadd.xlane.f32.xlu0 %v3992
    %v3994 = vpop.xlane.xlu0 %3993
    %3995 = vrot.lane.b32.xlu0 %v3989, 96
    %v3996 = vpop.permute.xlu0 %3995
    %v3998 = vmul.f32 %v3983, %v3996
    %v3999 = vsel %vm502, %v3998, 0.0
    %4000 = vadd.xlane.f32.xlu0 %v3999
    %v4001 = vpop.xlane.xlu0 %4000
    %v4002 = vadd.f32 %v3994, %v4001
    %v4003 = vld [vmem:[#allocation6] sm:$0x1]
    %v4005 = vlaneseq
    %v4006 = vshrl.u32 %v4005, 7
    %v4007 = vsub.s32 0, %v4006
    %v4008 = vrot.slane %v4003, %v4007
    %v4010 = vadd.f32 %v4002, %v4008
    %v4011 = vxor.u32 %v4010, 2147483648
    %v4012 = vmul.f32 %v4011, 1.442695
    %v4013 = vpow.pop %v4012
    %v4014 = vadd.f32 %v4013, 1.0
    %v4015 = vrcp.pop %v4014
    %v4016 = vmul.f32 1.0, %v4015
    %vm4017 = vcmask 1024
    %4018 = vst.msk [vmem:[%s11] sm:$0x3] %vm4017, %v4016
    // Predicated region
    $region62: #{lstm_model_forward.1} parent=1 // pred_check
      _
    $region63: #{lstm_model_forward.1} parent=1 // pred_check_branch
      %4020 = sbr.rel (0) target = $region65
    $region64: #{lstm_model_forward.1} parent=1 // pred_region
      _
    $region65: #{lstm_model_forward.1} parent=1 // pred_fallthru
      _
    // Predicated region
    $region66: #{lstm_model_forward.1} parent=1 // pred_check
      _
    $region67: #{lstm_model_forward.1} parent=1 // pred_check_branch
      %4022 = sbr.rel (0) target = $region69
    $region68: #{lstm_model_forward.1} parent=1 // pred_region
      _
    $region69: #{lstm_model_forward.1} parent=1 // pred_fallthru
      _
    %4023 = vsyncpa [#allocation8], 1
    %4024 = vsyncpa [#allocation10], 1
    %4025 = vsyncpa [#allocation13], 1

</llo_original>
